<compile_context>
chip_gen: v7x
topology: tpu7x:2x2x1
jax: 0.10.0
libtpu: 0.0.40
codegen_flags: <defaults>
</compile_context>

<pallas_src>
import functools

import jax
import jax.numpy as jnp
from jax import lax
from jax.experimental import pallas as pl
from jax.experimental.pallas import tpu as pltpu

K = 7      # conv kernel size
PAD = 3    # conv padding


def spatial_attention_kernel(wmask_ref, bn_ref, x_ref, o_ref, pad_ref, *,
                             w_spatial, left):
    # wmask_ref: (2*K*K, HW) f32 VMEM -- conv weight * per-tap column-validity mask
    # bn_ref   : (2,)       f32 SMEM -- [bn_scale, bn_shift] (folded eval BN)
    # x_ref    : (Nb, C, HW) VMEM    -- lane-dense block of Nb images
    # o_ref    : (Nb, C, HW) VMEM
    # pad_ref  : (2, Nb, HWP) f32 scratch; interior lanes [left, left+HW)
    nb, num_c, hw = x_ref.shape
    hwp = pad_ref.shape[2]
    inv_c = 1.0 / num_c

    # Zero only the margins; interior is fully overwritten below.  Re-done
    # every step (megacore safety with the "parallel" grid axis).
    pad_ref[:, :, :left] = jnp.zeros((2, nb, left), jnp.float32)
    pad_ref[:, :, left + hw:] = jnp.zeros((2, nb, hwp - left - hw), jnp.float32)

    # Block-wide channel max / mean -> two lane-aligned (Nb, HW) slab stores.
    x0 = x_ref[...]                                               # (Nb, C, HW)
    pad_ref[0, :, left:left + hw] = jnp.max(x0, axis=1).astype(jnp.float32)
    pad_ref[1, :, left:left + hw] = (
        jnp.sum(x0, axis=1, dtype=jnp.float32) * inv_c)

    # 7x7 conv, 2 -> 1 channels, stride 1, pad 3, no bias -- fully unrolled,
    # vectorized over the Nb-image block.  One slab load per (c, dy); the 7 dx
    # taps are static in-register slices.  Column wrap is killed by the
    # weight-folded column masks, row overflow by the zero margins.
    acc = jnp.zeros((nb, hw), jnp.float32)
    for c in range(2):
        for dy in range(K):
            base = left + (dy - PAD) * w_spatial - PAD
            slab = pad_ref[c, :, base:base + hw + 2 * PAD]        # (Nb, HW+2*PAD)
            for dx in range(K):
                tap = (c * K + dy) * K + dx
                acc = acc + slab[:, dx:dx + hw] * wmask_ref[tap:tap + 1, :]

    # Folded BatchNorm2d(1) (inference) + sigmoid (exp on EUP, exact recip).
    att = acc * bn_ref[0] + bn_ref[1]
    att = pl.reciprocal(1.0 + jnp.exp(-att), approx=False)        # (Nb, HW) f32

    # Lane-dense broadcast multiply + store for the whole block, native dtype.
    xv = x_ref[...]
    o_ref[...] = (xv * att[:, None, :].astype(xv.dtype)).astype(o_ref.dtype)


def _num_tensorcores():
    """TensorCores per chip: 2 on megacore / v7x parts, else 1."""
    try:
        kind = jax.devices()[0].device_kind.lower()
    except Exception:
        return 2
    return 2 if any(t in kind for t in ("v4", "v5p", "v7")) else 1


def _pick_block_batch(n, per_image_bytes, max_block_bytes=3 << 20):
    """Largest divisor of n within the per-block byte budget.  Only forces
    >= 2 grid steps on multi-TensorCore parts so both cores get work."""
    cap = max(1, int(max_block_bytes) // max(int(per_image_bytes), 1))
    if _num_tensorcores() >= 2 and n >= 2:
        cap = max(1, min(cap, n // 2))
    cap = min(cap, n)
    nb = 1
    for d in range(1, cap + 1):
        if n % d == 0:
            nb = d
    return nb


def _round_up(v, m):
    return ((v + m - 1) // m) * m


def spatial_attention(x, conv_w, gamma, beta, running_mean, running_var, eps=1e-5):
    N, C, H, W = x.shape
    HW = H * W
    margin = PAD * (W + 1)                 # covers +/-PAD row and column taps
    LEFT = _round_up(margin, 128)          # lane-aligned interior start
    HWP = _round_up(LEFT + HW + margin, 128)

    # Fold eval-mode BatchNorm2d(1) into a scale/shift.
    scale = gamma / jnp.sqrt(running_var + eps)                   # (1,)
    shift = beta - running_mean * scale                           # (1,)
    bn = jnp.concatenate([scale, shift]).astype(jnp.float32)      # (2,)

    # Conv weights folded into per-tap column-validity masks:
    # wmask[(c*K+dy)*K+dx, :] = w[c,dy,dx] * colmask[dx].
    col = jnp.arange(HW, dtype=jnp.int32) % W
    ddx = jnp.arange(-PAD, PAD + 1, dtype=jnp.int32)
    shifted = col[None, :] + ddx[:, None]
    colmask = ((shifted >= 0) & (shifted < W)).astype(jnp.float32)  # (K, HW)
    w = conv_w.reshape(2, K, K).astype(jnp.float32)
    wmask = (w[:, :, :, None] * colmask[None, None, :, :]).reshape(2 * K * K, HW)

    # Lane-dense layout for the heavy path (trailing-dim merge: free reshape).
    x_flat = x.reshape(N, C, HW)

    per_image_bytes = C * HW * x.dtype.itemsize
    nb = _pick_block_batch(N, per_image_bytes)
    grid = (N // nb,)

    kernel = functools.partial(spatial_attention_kernel, w_spatial=W, left=LEFT)

    out_flat = pl.pallas_call(
        kernel,
        out_shape=jax.ShapeDtypeStruct((N, C, HW), x.dtype),
        grid=grid,
        in_specs=[
            pl.BlockSpec((2 * K * K, HW), lambda n: (0, 0)),      # weight*mask table
            pl.BlockSpec(memory_space=pltpu.SMEM),                # BN scale/shift
            pl.BlockSpec((nb, C, HW), lambda n: (n, 0, 0)),       # x block
        ],
        out_specs=pl.BlockSpec((nb, C, HW), lambda n: (n, 0, 0)),
        scratch_shapes=[
            pltpu.VMEM((2, nb, HWP), jnp.float32),
        ],
        compiler_params=pltpu.CompilerParams(
            dimension_semantics=("parallel",),
            vmem_limit_bytes=32 * 1024 * 1024),
    )(wmask, bn, x_flat)

    return out_flat.reshape(N, C, H, W)


def spatial_attention_ref(x, conv_w, gamma, beta, running_mean, running_var, eps=1e-5):
    att1 = jnp.max(x, axis=1, keepdims=True)
    att2 = jnp.mean(x, axis=1, keepdims=True)
    att = jnp.concatenate([att1, att2], axis=1)                   # (N, 2, H, W)
    att = lax.conv_general_dilated(
        att, conv_w, window_strides=(1, 1), padding=((PAD, PAD), (PAD, PAD)),
        dimension_numbers=("NCHW", "OIHW", "NCHW"))
    att = (att - running_mean[None, :, None, None]) / jnp.sqrt(
        running_var[None, :, None, None] + eps)
    att = att * gamma[None, :, None, None] + beta[None, :, None, None]
    att = jax.nn.sigmoid(att)
    return x * att


if __name__ == "__main__":
    key = jax.random.PRNGKey(0)
    kx, kw = jax.random.split(key)

    N, C, H, W = 2, 4, 16, 16
    x = jax.random.normal(kx, (N, C, H, W), dtype=jnp.float32)

    # Deterministic synthetic parameters (shapes from module __init__).
    conv_w = 0.1 * jax.random.normal(kw, (1, 2, K, K), dtype=jnp.float32)
    gamma = jnp.array([1.5], jnp.float32)
    beta = jnp.array([-0.25], jnp.float32)
    running_mean = jnp.array([0.1], jnp.float32)
    running_var = jnp.array([0.8], jnp.float32)

    out = spatial_attention(x, conv_w, gamma, beta, running_mean, running_var)
    out = jax.block_until_ready(out)

    ref = spatial_attention_ref(x, conv_w, gamma, beta, running_mean, running_var)
    assert out.shape == (N, C, H, W)
    assert jnp.allclose(out, ref, atol=1e-4, rtol=1e-4), float(
        jnp.max(jnp.abs(out - ref)))

    print("KERNEL_OK")
</pallas_src>

<mosaic_0001>
module attributes {stable_mosaic.version = 11 : i64} {
  func.func @spatial_attention_kernel(%arg0: i32, %arg1: memref<98x256xf32, #tpu.memory_space<vmem>>, %arg2: memref<2xf32, #tpu.memory_space<smem>>, %arg3: memref<2x4x256xf32, #tpu.memory_space<vmem>>, %arg4: memref<2x4x256xf32, #tpu.memory_space<vmem>>, %arg5: memref<2x2x512xf32, #tpu.memory_space<vmem>>) attributes {dimension_semantics = [#tpu.dimension_semantics<parallel>], iteration_bounds = array<i64: 1>, scalar_prefetch = 0 : i64, scratch_operands = 1 : i64, tpu.core_type = #tpu.core_type<tc>, window_params = [{pipeline_mode = #tpu.pipeline_mode<synchronous>, transform_indices = @transform_0, window_bounds = array<i64: 98, 256>}, {transform_indices = @transform_1, window_bounds = array<i64: 2>}, {transform_indices = @transform_2, window_bounds = array<i64: 2, 4, 256>}, {transform_indices = @transform_3, window_bounds = array<i64: 2, 4, 256>}]} {
    %cst = arith.constant 0.000000e+00 : f32
    %0 = vector.broadcast %cst : f32 to vector<2x2x128xf32>
    %c0 = arith.constant 0 : index
    %c0_0 = arith.constant 0 : index
    %c0_1 = arith.constant 0 : index
    %1 = vector.load %arg5[%c0, %c0_0, %c0_1] : memref<2x2x512xf32, #tpu.memory_space<vmem>>, vector<2x2x128xf32>
    tpu.vector_store %arg5[%c0, %c0_0, %c0_1], %0 {strides = array<i32>} : memref<2x2x512xf32, #tpu.memory_space<vmem>>, vector<2x2x128xf32>,
    %cst_2 = arith.constant 0.000000e+00 : f32
    %2 = vector.broadcast %cst_2 : f32 to vector<2x2x128xf32>
    %c0_3 = arith.constant 0 : index
    %c0_4 = arith.constant 0 : index
    %c384 = arith.constant 384 : index
    %3 = vector.load %arg5[%c0_3, %c0_4, %c384] : memref<2x2x512xf32, #tpu.memory_space<vmem>>, vector<2x2x128xf32>
    tpu.vector_store %arg5[%c0_3, %c0_4, %c384], %2 {strides = array<i32>} : memref<2x2x512xf32, #tpu.memory_space<vmem>>, vector<2x2x128xf32>,
    %c0_5 = arith.constant 0 : index
    %c0_6 = arith.constant 0 : index
    %c0_7 = arith.constant 0 : index
    %4 = vector.load %arg3[%c0_5, %c0_6, %c0_7] : memref<2x4x256xf32, #tpu.memory_space<vmem>>, vector<2x4x256xf32>
    %cst_8 = arith.constant dense<0xFF800000> : vector<2x256xf32>
    %5 = vector.multi_reduction <maximumf>, %4, %cst_8 [1] : vector<2x4x256xf32> to vector<2x256xf32>
    %c0_9 = arith.constant 0 : index
    %c0_10 = arith.constant 0 : index
    %c128 = arith.constant 128 : index
    %6 = vector.load %arg5[%c0_9, %c0_10, %c128] : memref<2x2x512xf32, #tpu.memory_space<vmem>>, vector<1x2x256xf32>
    %7 = vector.shape_cast %6 : vector<1x2x256xf32> to vector<2x256xf32>
    %8 = vector.shape_cast %5 : vector<2x256xf32> to vector<1x2x256xf32>
    tpu.vector_store %arg5[%c0_9, %c0_10, %c128], %8 {strides = array<i32>} : memref<2x2x512xf32, #tpu.memory_space<vmem>>, vector<1x2x256xf32>,
    %cst_11 = arith.constant dense<0.000000e+00> : vector<2x256xf32>
    %9 = vector.multi_reduction <add>, %4, %cst_11 [1] : vector<2x4x256xf32> to vector<2x256xf32>
    %cst_12 = arith.constant 2.500000e-01 : f32
    %10 = vector.broadcast %cst_12 : f32 to vector<2x256xf32>
    %11 = arith.mulf %9, %10 : vector<2x256xf32>
    %c1 = arith.constant 1 : index
    %c0_13 = arith.constant 0 : index
    %c128_14 = arith.constant 128 : index
    %12 = vector.load %arg5[%c1, %c0_13, %c128_14] : memref<2x2x512xf32, #tpu.memory_space<vmem>>, vector<1x2x256xf32>
    %13 = vector.shape_cast %12 : vector<1x2x256xf32> to vector<2x256xf32>
    %14 = vector.shape_cast %11 : vector<2x256xf32> to vector<1x2x256xf32>
    tpu.vector_store %arg5[%c1, %c0_13, %c128_14], %14 {strides = array<i32>} : memref<2x2x512xf32, #tpu.memory_space<vmem>>, vector<1x2x256xf32>,
    %cst_15 = arith.constant 0.000000e+00 : f32
    %15 = vector.broadcast %cst_15 : f32 to vector<2x256xf32>
    %c0_16 = arith.constant 0 : index
    %c0_17 = arith.constant 0 : index
    %c77 = arith.constant 77 : index
    %16 = vector.load %arg5[%c0_16, %c0_17, %c77] : memref<2x2x512xf32, #tpu.memory_space<vmem>>, vector<1x2x262xf32>
    %17 = vector.shape_cast %16 : vector<1x2x262xf32> to vector<2x262xf32>
    %18 = vector.extract_strided_slice %17 {offsets = [0, 0], sizes = [2, 256], strides = [1, 1]} : vector<2x262xf32> to vector<2x256xf32>
    %c0_18 = arith.constant 0 : index
    %c0_19 = arith.constant 0 : index
    %19 = vector.load %arg1[%c0_18, %c0_19] : memref<98x256xf32, #tpu.memory_space<vmem>>, vector<1x256xf32>
    %20 = vector.broadcast %19 : vector<1x256xf32> to vector<2x256xf32>
    %21 = arith.mulf %18, %20 : vector<2x256xf32>
    %22 = arith.addf %15, %21 : vector<2x256xf32>
    %23 = vector.extract_strided_slice %17 {offsets = [0, 1], sizes = [2, 256], strides = [1, 1]} : vector<2x262xf32> to vector<2x256xf32>
    %c1_20 = arith.constant 1 : index
    %c0_21 = arith.constant 0 : index
    %24 = vector.load %arg1[%c1_20, %c0_21] : memref<98x256xf32, #tpu.memory_space<vmem>>, vector<1x256xf32>
    %25 = vector.broadcast %24 : vector<1x256xf32> to vector<2x256xf32>
    %26 = arith.mulf %23, %25 : vector<2x256xf32>
    %27 = arith.addf %22, %26 : vector<2x256xf32>
    %28 = vector.extract_strided_slice %17 {offsets = [0, 2], sizes = [2, 256], strides = [1, 1]} : vector<2x262xf32> to vector<2x256xf32>
    %c2 = arith.constant 2 : index
    %c0_22 = arith.constant 0 : index
    %29 = vector.load %arg1[%c2, %c0_22] : memref<98x256xf32, #tpu.memory_space<vmem>>, vector<1x256xf32>
    %30 = vector.broadcast %29 : vector<1x256xf32> to vector<2x256xf32>
    %31 = arith.mulf %28, %30 : vector<2x256xf32>
    %32 = arith.addf %27, %31 : vector<2x256xf32>
    %33 = vector.extract_strided_slice %17 {offsets = [0, 3], sizes = [2, 256], strides = [1, 1]} : vector<2x262xf32> to vector<2x256xf32>
    %c3 = arith.constant 3 : index
    %c0_23 = arith.constant 0 : index
    %34 = vector.load %arg1[%c3, %c0_23] : memref<98x256xf32, #tpu.memory_space<vmem>>, vector<1x256xf32>
    %35 = vector.broadcast %34 : vector<1x256xf32> to vector<2x256xf32>
    %36 = arith.mulf %33, %35 : vector<2x256xf32>
    %37 = arith.addf %32, %36 : vector<2x256xf32>
    %38 = vector.extract_strided_slice %17 {offsets = [0, 4], sizes = [2, 256], strides = [1, 1]} : vector<2x262xf32> to vector<2x256xf32>
    %c4 = arith.constant 4 : index
    %c0_24 = arith.constant 0 : index
    %39 = vector.load %arg1[%c4, %c0_24] : memref<98x256xf32, #tpu.memory_space<vmem>>, vector<1x256xf32>
    %40 = vector.broadcast %39 : vector<1x256xf32> to vector<2x256xf32>
    %41 = arith.mulf %38, %40 : vector<2x256xf32>
    %42 = arith.addf %37, %41 : vector<2x256xf32>
    %43 = vector.extract_strided_slice %17 {offsets = [0, 5], sizes = [2, 256], strides = [1, 1]} : vector<2x262xf32> to vector<2x256xf32>
    %c5 = arith.constant 5 : index
    %c0_25 = arith.constant 0 : index
    %44 = vector.load %arg1[%c5, %c0_25] : memref<98x256xf32, #tpu.memory_space<vmem>>, vector<1x256xf32>
    %45 = vector.broadcast %44 : vector<1x256xf32> to vector<2x256xf32>
    %46 = arith.mulf %43, %45 : vector<2x256xf32>
    %47 = arith.addf %42, %46 : vector<2x256xf32>
    %48 = vector.extract_strided_slice %17 {offsets = [0, 6], sizes = [2, 256], strides = [1, 1]} : vector<2x262xf32> to vector<2x256xf32>
    %c6 = arith.constant 6 : index
    %c0_26 = arith.constant 0 : index
    %49 = vector.load %arg1[%c6, %c0_26] : memref<98x256xf32, #tpu.memory_space<vmem>>, vector<1x256xf32>
    %50 = vector.broadcast %49 : vector<1x256xf32> to vector<2x256xf32>
    %51 = arith.mulf %48, %50 : vector<2x256xf32>
    %52 = arith.addf %47, %51 : vector<2x256xf32>
    %c0_27 = arith.constant 0 : index
    %c0_28 = arith.constant 0 : index
    %c93 = arith.constant 93 : index
    %53 = vector.load %arg5[%c0_27, %c0_28, %c93] : memref<2x2x512xf32, #tpu.memory_space<vmem>>, vector<1x2x262xf32>
    %54 = vector.shape_cast %53 : vector<1x2x262xf32> to vector<2x262xf32>
    %55 = vector.extract_strided_slice %54 {offsets = [0, 0], sizes = [2, 256], strides = [1, 1]} : vector<2x262xf32> to vector<2x256xf32>
    %c7 = arith.constant 7 : index
    %c0_29 = arith.constant 0 : index
    %56 = vector.load %arg1[%c7, %c0_29] : memref<98x256xf32, #tpu.memory_space<vmem>>, vector<1x256xf32>
    %57 = vector.broadcast %56 : vector<1x256xf32> to vector<2x256xf32>
    %58 = arith.mulf %55, %57 : vector<2x256xf32>
    %59 = arith.addf %52, %58 : vector<2x256xf32>
    %60 = vector.extract_strided_slice %54 {offsets = [0, 1], sizes = [2, 256], strides = [1, 1]} : vector<2x262xf32> to vector<2x256xf32>
    %c8 = arith.constant 8 : index
    %c0_30 = arith.constant 0 : index
    %61 = vector.load %arg1[%c8, %c0_30] : memref<98x256xf32, #tpu.memory_space<vmem>>, vector<1x256xf32>
    %62 = vector.broadcast %61 : vector<1x256xf32> to vector<2x256xf32>
    %63 = arith.mulf %60, %62 : vector<2x256xf32>
    %64 = arith.addf %59, %63 : vector<2x256xf32>
    %65 = vector.extract_strided_slice %54 {offsets = [0, 2], sizes = [2, 256], strides = [1, 1]} : vector<2x262xf32> to vector<2x256xf32>
    %c9 = arith.constant 9 : index
    %c0_31 = arith.constant 0 : index
    %66 = vector.load %arg1[%c9, %c0_31] : memref<98x256xf32, #tpu.memory_space<vmem>>, vector<1x256xf32>
    %67 = vector.broadcast %66 : vector<1x256xf32> to vector<2x256xf32>
    %68 = arith.mulf %65, %67 : vector<2x256xf32>
    %69 = arith.addf %64, %68 : vector<2x256xf32>
    %70 = vector.extract_strided_slice %54 {offsets = [0, 3], sizes = [2, 256], strides = [1, 1]} : vector<2x262xf32> to vector<2x256xf32>
    %c10 = arith.constant 10 : index
    %c0_32 = arith.constant 0 : index
    %71 = vector.load %arg1[%c10, %c0_32] : memref<98x256xf32, #tpu.memory_space<vmem>>, vector<1x256xf32>
    %72 = vector.broadcast %71 : vector<1x256xf32> to vector<2x256xf32>
    %73 = arith.mulf %70, %72 : vector<2x256xf32>
    %74 = arith.addf %69, %73 : vector<2x256xf32>
    %75 = vector.extract_strided_slice %54 {offsets = [0, 4], sizes = [2, 256], strides = [1, 1]} : vector<2x262xf32> to vector<2x256xf32>
    %c11 = arith.constant 11 : index
    %c0_33 = arith.constant 0 : index
    %76 = vector.load %arg1[%c11, %c0_33] : memref<98x256xf32, #tpu.memory_space<vmem>>, vector<1x256xf32>
    %77 = vector.broadcast %76 : vector<1x256xf32> to vector<2x256xf32>
    %78 = arith.mulf %75, %77 : vector<2x256xf32>
    %79 = arith.addf %74, %78 : vector<2x256xf32>
    %80 = vector.extract_strided_slice %54 {offsets = [0, 5], sizes = [2, 256], strides = [1, 1]} : vector<2x262xf32> to vector<2x256xf32>
    %c12 = arith.constant 12 : index
    %c0_34 = arith.constant 0 : index
    %81 = vector.load %arg1[%c12, %c0_34] : memref<98x256xf32, #tpu.memory_space<vmem>>, vector<1x256xf32>
    %82 = vector.broadcast %81 : vector<1x256xf32> to vector<2x256xf32>
    %83 = arith.mulf %80, %82 : vector<2x256xf32>
    %84 = arith.addf %79, %83 : vector<2x256xf32>
    %85 = vector.extract_strided_slice %54 {offsets = [0, 6], sizes = [2, 256], strides = [1, 1]} : vector<2x262xf32> to vector<2x256xf32>
    %c13 = arith.constant 13 : index
    %c0_35 = arith.constant 0 : index
    %86 = vector.load %arg1[%c13, %c0_35] : memref<98x256xf32, #tpu.memory_space<vmem>>, vector<1x256xf32>
    %87 = vector.broadcast %86 : vector<1x256xf32> to vector<2x256xf32>
    %88 = arith.mulf %85, %87 : vector<2x256xf32>
    %89 = arith.addf %84, %88 : vector<2x256xf32>
    %c0_36 = arith.constant 0 : index
    %c0_37 = arith.constant 0 : index
    %c109 = arith.constant 109 : index
    %90 = vector.load %arg5[%c0_36, %c0_37, %c109] : memref<2x2x512xf32, #tpu.memory_space<vmem>>, vector<1x2x262xf32>
    %91 = vector.shape_cast %90 : vector<1x2x262xf32> to vector<2x262xf32>
    %92 = vector.extract_strided_slice %91 {offsets = [0, 0], sizes = [2, 256], strides = [1, 1]} : vector<2x262xf32> to vector<2x256xf32>
    %c14 = arith.constant 14 : index
    %c0_38 = arith.constant 0 : index
    %93 = vector.load %arg1[%c14, %c0_38] : memref<98x256xf32, #tpu.memory_space<vmem>>, vector<1x256xf32>
    %94 = vector.broadcast %93 : vector<1x256xf32> to vector<2x256xf32>
    %95 = arith.mulf %92, %94 : vector<2x256xf32>
    %96 = arith.addf %89, %95 : vector<2x256xf32>
    %97 = vector.extract_strided_slice %91 {offsets = [0, 1], sizes = [2, 256], strides = [1, 1]} : vector<2x262xf32> to vector<2x256xf32>
    %c15 = arith.constant 15 : index
    %c0_39 = arith.constant 0 : index
    %98 = vector.load %arg1[%c15, %c0_39] : memref<98x256xf32, #tpu.memory_space<vmem>>, vector<1x256xf32>
    %99 = vector.broadcast %98 : vector<1x256xf32> to vector<2x256xf32>
    %100 = arith.mulf %97, %99 : vector<2x256xf32>
    %101 = arith.addf %96, %100 : vector<2x256xf32>
    %102 = vector.extract_strided_slice %91 {offsets = [0, 2], sizes = [2, 256], strides = [1, 1]} : vector<2x262xf32> to vector<2x256xf32>
    %c16 = arith.constant 16 : index
    %c0_40 = arith.constant 0 : index
    %103 = vector.load %arg1[%c16, %c0_40] : memref<98x256xf32, #tpu.memory_space<vmem>>, vector<1x256xf32>
    %104 = vector.broadcast %103 : vector<1x256xf32> to vector<2x256xf32>
    %105 = arith.mulf %102, %104 : vector<2x256xf32>
    %106 = arith.addf %101, %105 : vector<2x256xf32>
    %107 = vector.extract_strided_slice %91 {offsets = [0, 3], sizes = [2, 256], strides = [1, 1]} : vector<2x262xf32> to vector<2x256xf32>
    %c17 = arith.constant 17 : index
    %c0_41 = arith.constant 0 : index
    %108 = vector.load %arg1[%c17, %c0_41] : memref<98x256xf32, #tpu.memory_space<vmem>>, vector<1x256xf32>
    %109 = vector.broadcast %108 : vector<1x256xf32> to vector<2x256xf32>
    %110 = arith.mulf %107, %109 : vector<2x256xf32>
    %111 = arith.addf %106, %110 : vector<2x256xf32>
    %112 = vector.extract_strided_slice %91 {offsets = [0, 4], sizes = [2, 256], strides = [1, 1]} : vector<2x262xf32> to vector<2x256xf32>
    %c18 = arith.constant 18 : index
    %c0_42 = arith.constant 0 : index
    %113 = vector.load %arg1[%c18, %c0_42] : memref<98x256xf32, #tpu.memory_space<vmem>>, vector<1x256xf32>
    %114 = vector.broadcast %113 : vector<1x256xf32> to vector<2x256xf32>
    %115 = arith.mulf %112, %114 : vector<2x256xf32>
    %116 = arith.addf %111, %115 : vector<2x256xf32>
    %117 = vector.extract_strided_slice %91 {offsets = [0, 5], sizes = [2, 256], strides = [1, 1]} : vector<2x262xf32> to vector<2x256xf32>
    %c19 = arith.constant 19 : index
    %c0_43 = arith.constant 0 : index
    %118 = vector.load %arg1[%c19, %c0_43] : memref<98x256xf32, #tpu.memory_space<vmem>>, vector<1x256xf32>
    %119 = vector.broadcast %118 : vector<1x256xf32> to vector<2x256xf32>
    %120 = arith.mulf %117, %119 : vector<2x256xf32>
    %121 = arith.addf %116, %120 : vector<2x256xf32>
    %122 = vector.extract_strided_slice %91 {offsets = [0, 6], sizes = [2, 256], strides = [1, 1]} : vector<2x262xf32> to vector<2x256xf32>
    %c20 = arith.constant 20 : index
    %c0_44 = arith.constant 0 : index
    %123 = vector.load %arg1[%c20, %c0_44] : memref<98x256xf32, #tpu.memory_space<vmem>>, vector<1x256xf32>
    %124 = vector.broadcast %123 : vector<1x256xf32> to vector<2x256xf32>
    %125 = arith.mulf %122, %124 : vector<2x256xf32>
    %126 = arith.addf %121, %125 : vector<2x256xf32>
    %c0_45 = arith.constant 0 : index
    %c0_46 = arith.constant 0 : index
    %c125 = arith.constant 125 : index
    %127 = vector.load %arg5[%c0_45, %c0_46, %c125] : memref<2x2x512xf32, #tpu.memory_space<vmem>>, vector<1x2x262xf32>
    %128 = vector.shape_cast %127 : vector<1x2x262xf32> to vector<2x262xf32>
    %129 = vector.extract_strided_slice %128 {offsets = [0, 0], sizes = [2, 256], strides = [1, 1]} : vector<2x262xf32> to vector<2x256xf32>
    %c21 = arith.constant 21 : index
    %c0_47 = arith.constant 0 : index
    %130 = vector.load %arg1[%c21, %c0_47] : memref<98x256xf32, #tpu.memory_space<vmem>>, vector<1x256xf32>
    %131 = vector.broadcast %130 : vector<1x256xf32> to vector<2x256xf32>
    %132 = arith.mulf %129, %131 : vector<2x256xf32>
    %133 = arith.addf %126, %132 : vector<2x256xf32>
    %134 = vector.extract_strided_slice %128 {offsets = [0, 1], sizes = [2, 256], strides = [1, 1]} : vector<2x262xf32> to vector<2x256xf32>
    %c22 = arith.constant 22 : index
    %c0_48 = arith.constant 0 : index
    %135 = vector.load %arg1[%c22, %c0_48] : memref<98x256xf32, #tpu.memory_space<vmem>>, vector<1x256xf32>
    %136 = vector.broadcast %135 : vector<1x256xf32> to vector<2x256xf32>
    %137 = arith.mulf %134, %136 : vector<2x256xf32>
    %138 = arith.addf %133, %137 : vector<2x256xf32>
    %139 = vector.extract_strided_slice %128 {offsets = [0, 2], sizes = [2, 256], strides = [1, 1]} : vector<2x262xf32> to vector<2x256xf32>
    %c23 = arith.constant 23 : index
    %c0_49 = arith.constant 0 : index
    %140 = vector.load %arg1[%c23, %c0_49] : memref<98x256xf32, #tpu.memory_space<vmem>>, vector<1x256xf32>
    %141 = vector.broadcast %140 : vector<1x256xf32> to vector<2x256xf32>
    %142 = arith.mulf %139, %141 : vector<2x256xf32>
    %143 = arith.addf %138, %142 : vector<2x256xf32>
    %144 = vector.extract_strided_slice %128 {offsets = [0, 3], sizes = [2, 256], strides = [1, 1]} : vector<2x262xf32> to vector<2x256xf32>
    %c24 = arith.constant 24 : index
    %c0_50 = arith.constant 0 : index
    %145 = vector.load %arg1[%c24, %c0_50] : memref<98x256xf32, #tpu.memory_space<vmem>>, vector<1x256xf32>
    %146 = vector.broadcast %145 : vector<1x256xf32> to vector<2x256xf32>
    %147 = arith.mulf %144, %146 : vector<2x256xf32>
    %148 = arith.addf %143, %147 : vector<2x256xf32>
    %149 = vector.extract_strided_slice %128 {offsets = [0, 4], sizes = [2, 256], strides = [1, 1]} : vector<2x262xf32> to vector<2x256xf32>
    %c25 = arith.constant 25 : index
    %c0_51 = arith.constant 0 : index
    %150 = vector.load %arg1[%c25, %c0_51] : memref<98x256xf32, #tpu.memory_space<vmem>>, vector<1x256xf32>
    %151 = vector.broadcast %150 : vector<1x256xf32> to vector<2x256xf32>
    %152 = arith.mulf %149, %151 : vector<2x256xf32>
    %153 = arith.addf %148, %152 : vector<2x256xf32>
    %154 = vector.extract_strided_slice %128 {offsets = [0, 5], sizes = [2, 256], strides = [1, 1]} : vector<2x262xf32> to vector<2x256xf32>
    %c26 = arith.constant 26 : index
    %c0_52 = arith.constant 0 : index
    %155 = vector.load %arg1[%c26, %c0_52] : memref<98x256xf32, #tpu.memory_space<vmem>>, vector<1x256xf32>
    %156 = vector.broadcast %155 : vector<1x256xf32> to vector<2x256xf32>
    %157 = arith.mulf %154, %156 : vector<2x256xf32>
    %158 = arith.addf %153, %157 : vector<2x256xf32>
    %159 = vector.extract_strided_slice %128 {offsets = [0, 6], sizes = [2, 256], strides = [1, 1]} : vector<2x262xf32> to vector<2x256xf32>
    %c27 = arith.constant 27 : index
    %c0_53 = arith.constant 0 : index
    %160 = vector.load %arg1[%c27, %c0_53] : memref<98x256xf32, #tpu.memory_space<vmem>>, vector<1x256xf32>
    %161 = vector.broadcast %160 : vector<1x256xf32> to vector<2x256xf32>
    %162 = arith.mulf %159, %161 : vector<2x256xf32>
    %163 = arith.addf %158, %162 : vector<2x256xf32>
    %c0_54 = arith.constant 0 : index
    %c0_55 = arith.constant 0 : index
    %c141 = arith.constant 141 : index
    %164 = vector.load %arg5[%c0_54, %c0_55, %c141] : memref<2x2x512xf32, #tpu.memory_space<vmem>>, vector<1x2x262xf32>
    %165 = vector.shape_cast %164 : vector<1x2x262xf32> to vector<2x262xf32>
    %166 = vector.extract_strided_slice %165 {offsets = [0, 0], sizes = [2, 256], strides = [1, 1]} : vector<2x262xf32> to vector<2x256xf32>
    %c28 = arith.constant 28 : index
    %c0_56 = arith.constant 0 : index
    %167 = vector.load %arg1[%c28, %c0_56] : memref<98x256xf32, #tpu.memory_space<vmem>>, vector<1x256xf32>
    %168 = vector.broadcast %167 : vector<1x256xf32> to vector<2x256xf32>
    %169 = arith.mulf %166, %168 : vector<2x256xf32>
    %170 = arith.addf %163, %169 : vector<2x256xf32>
    %171 = vector.extract_strided_slice %165 {offsets = [0, 1], sizes = [2, 256], strides = [1, 1]} : vector<2x262xf32> to vector<2x256xf32>
    %c29 = arith.constant 29 : index
    %c0_57 = arith.constant 0 : index
    %172 = vector.load %arg1[%c29, %c0_57] : memref<98x256xf32, #tpu.memory_space<vmem>>, vector<1x256xf32>
    %173 = vector.broadcast %172 : vector<1x256xf32> to vector<2x256xf32>
    %174 = arith.mulf %171, %173 : vector<2x256xf32>
    %175 = arith.addf %170, %174 : vector<2x256xf32>
    %176 = vector.extract_strided_slice %165 {offsets = [0, 2], sizes = [2, 256], strides = [1, 1]} : vector<2x262xf32> to vector<2x256xf32>
    %c30 = arith.constant 30 : index
    %c0_58 = arith.constant 0 : index
    %177 = vector.load %arg1[%c30, %c0_58] : memref<98x256xf32, #tpu.memory_space<vmem>>, vector<1x256xf32>
    %178 = vector.broadcast %177 : vector<1x256xf32> to vector<2x256xf32>
    %179 = arith.mulf %176, %178 : vector<2x256xf32>
    %180 = arith.addf %175, %179 : vector<2x256xf32>
    %181 = vector.extract_strided_slice %165 {offsets = [0, 3], sizes = [2, 256], strides = [1, 1]} : vector<2x262xf32> to vector<2x256xf32>
    %c31 = arith.constant 31 : index
    %c0_59 = arith.constant 0 : index
    %182 = vector.load %arg1[%c31, %c0_59] : memref<98x256xf32, #tpu.memory_space<vmem>>, vector<1x256xf32>
    %183 = vector.broadcast %182 : vector<1x256xf32> to vector<2x256xf32>
    %184 = arith.mulf %181, %183 : vector<2x256xf32>
    %185 = arith.addf %180, %184 : vector<2x256xf32>
    %186 = vector.extract_strided_slice %165 {offsets = [0, 4], sizes = [2, 256], strides = [1, 1]} : vector<2x262xf32> to vector<2x256xf32>
    %c32 = arith.constant 32 : index
    %c0_60 = arith.constant 0 : index
    %187 = vector.load %arg1[%c32, %c0_60] : memref<98x256xf32, #tpu.memory_space<vmem>>, vector<1x256xf32>
    %188 = vector.broadcast %187 : vector<1x256xf32> to vector<2x256xf32>
    %189 = arith.mulf %186, %188 : vector<2x256xf32>
    %190 = arith.addf %185, %189 : vector<2x256xf32>
    %191 = vector.extract_strided_slice %165 {offsets = [0, 5], sizes = [2, 256], strides = [1, 1]} : vector<2x262xf32> to vector<2x256xf32>
    %c33 = arith.constant 33 : index
    %c0_61 = arith.constant 0 : index
    %192 = vector.load %arg1[%c33, %c0_61] : memref<98x256xf32, #tpu.memory_space<vmem>>, vector<1x256xf32>
    %193 = vector.broadcast %192 : vector<1x256xf32> to vector<2x256xf32>
    %194 = arith.mulf %191, %193 : vector<2x256xf32>
    %195 = arith.addf %190, %194 : vector<2x256xf32>
    %196 = vector.extract_strided_slice %165 {offsets = [0, 6], sizes = [2, 256], strides = [1, 1]} : vector<2x262xf32> to vector<2x256xf32>
    %c34 = arith.constant 34 : index
    %c0_62 = arith.constant 0 : index
    %197 = vector.load %arg1[%c34, %c0_62] : memref<98x256xf32, #tpu.memory_space<vmem>>, vector<1x256xf32>
    %198 = vector.broadcast %197 : vector<1x256xf32> to vector<2x256xf32>
    %199 = arith.mulf %196, %198 : vector<2x256xf32>
    %200 = arith.addf %195, %199 : vector<2x256xf32>
    %c0_63 = arith.constant 0 : index
    %c0_64 = arith.constant 0 : index
    %c157 = arith.constant 157 : index
    %201 = vector.load %arg5[%c0_63, %c0_64, %c157] : memref<2x2x512xf32, #tpu.memory_space<vmem>>, vector<1x2x262xf32>
    %202 = vector.shape_cast %201 : vector<1x2x262xf32> to vector<2x262xf32>
    %203 = vector.extract_strided_slice %202 {offsets = [0, 0], sizes = [2, 256], strides = [1, 1]} : vector<2x262xf32> to vector<2x256xf32>
    %c35 = arith.constant 35 : index
    %c0_65 = arith.constant 0 : index
    %204 = vector.load %arg1[%c35, %c0_65] : memref<98x256xf32, #tpu.memory_space<vmem>>, vector<1x256xf32>
    %205 = vector.broadcast %204 : vector<1x256xf32> to vector<2x256xf32>
    %206 = arith.mulf %203, %205 : vector<2x256xf32>
    %207 = arith.addf %200, %206 : vector<2x256xf32>
    %208 = vector.extract_strided_slice %202 {offsets = [0, 1], sizes = [2, 256], strides = [1, 1]} : vector<2x262xf32> to vector<2x256xf32>
    %c36 = arith.constant 36 : index
    %c0_66 = arith.constant 0 : index
    %209 = vector.load %arg1[%c36, %c0_66] : memref<98x256xf32, #tpu.memory_space<vmem>>, vector<1x256xf32>
    %210 = vector.broadcast %209 : vector<1x256xf32> to vector<2x256xf32>
    %211 = arith.mulf %208, %210 : vector<2x256xf32>
    %212 = arith.addf %207, %211 : vector<2x256xf32>
    %213 = vector.extract_strided_slice %202 {offsets = [0, 2], sizes = [2, 256], strides = [1, 1]} : vector<2x262xf32> to vector<2x256xf32>
    %c37 = arith.constant 37 : index
    %c0_67 = arith.constant 0 : index
    %214 = vector.load %arg1[%c37, %c0_67] : memref<98x256xf32, #tpu.memory_space<vmem>>, vector<1x256xf32>
    %215 = vector.broadcast %214 : vector<1x256xf32> to vector<2x256xf32>
    %216 = arith.mulf %213, %215 : vector<2x256xf32>
    %217 = arith.addf %212, %216 : vector<2x256xf32>
    %218 = vector.extract_strided_slice %202 {offsets = [0, 3], sizes = [2, 256], strides = [1, 1]} : vector<2x262xf32> to vector<2x256xf32>
    %c38 = arith.constant 38 : index
    %c0_68 = arith.constant 0 : index
    %219 = vector.load %arg1[%c38, %c0_68] : memref<98x256xf32, #tpu.memory_space<vmem>>, vector<1x256xf32>
    %220 = vector.broadcast %219 : vector<1x256xf32> to vector<2x256xf32>
    %221 = arith.mulf %218, %220 : vector<2x256xf32>
    %222 = arith.addf %217, %221 : vector<2x256xf32>
    %223 = vector.extract_strided_slice %202 {offsets = [0, 4], sizes = [2, 256], strides = [1, 1]} : vector<2x262xf32> to vector<2x256xf32>
    %c39 = arith.constant 39 : index
    %c0_69 = arith.constant 0 : index
    %224 = vector.load %arg1[%c39, %c0_69] : memref<98x256xf32, #tpu.memory_space<vmem>>, vector<1x256xf32>
    %225 = vector.broadcast %224 : vector<1x256xf32> to vector<2x256xf32>
    %226 = arith.mulf %223, %225 : vector<2x256xf32>
    %227 = arith.addf %222, %226 : vector<2x256xf32>
    %228 = vector.extract_strided_slice %202 {offsets = [0, 5], sizes = [2, 256], strides = [1, 1]} : vector<2x262xf32> to vector<2x256xf32>
    %c40 = arith.constant 40 : index
    %c0_70 = arith.constant 0 : index
    %229 = vector.load %arg1[%c40, %c0_70] : memref<98x256xf32, #tpu.memory_space<vmem>>, vector<1x256xf32>
    %230 = vector.broadcast %229 : vector<1x256xf32> to vector<2x256xf32>
    %231 = arith.mulf %228, %230 : vector<2x256xf32>
    %232 = arith.addf %227, %231 : vector<2x256xf32>
    %233 = vector.extract_strided_slice %202 {offsets = [0, 6], sizes = [2, 256], strides = [1, 1]} : vector<2x262xf32> to vector<2x256xf32>
    %c41 = arith.constant 41 : index
    %c0_71 = arith.constant 0 : index
    %234 = vector.load %arg1[%c41, %c0_71] : memref<98x256xf32, #tpu.memory_space<vmem>>, vector<1x256xf32>
    %235 = vector.broadcast %234 : vector<1x256xf32> to vector<2x256xf32>
    %236 = arith.mulf %233, %235 : vector<2x256xf32>
    %237 = arith.addf %232, %236 : vector<2x256xf32>
    %c0_72 = arith.constant 0 : index
    %c0_73 = arith.constant 0 : index
    %c173 = arith.constant 173 : index
    %238 = vector.load %arg5[%c0_72, %c0_73, %c173] : memref<2x2x512xf32, #tpu.memory_space<vmem>>, vector<1x2x262xf32>
    %239 = vector.shape_cast %238 : vector<1x2x262xf32> to vector<2x262xf32>
    %240 = vector.extract_strided_slice %239 {offsets = [0, 0], sizes = [2, 256], strides = [1, 1]} : vector<2x262xf32> to vector<2x256xf32>
    %c42 = arith.constant 42 : index
    %c0_74 = arith.constant 0 : index
    %241 = vector.load %arg1[%c42, %c0_74] : memref<98x256xf32, #tpu.memory_space<vmem>>, vector<1x256xf32>
    %242 = vector.broadcast %241 : vector<1x256xf32> to vector<2x256xf32>
    %243 = arith.mulf %240, %242 : vector<2x256xf32>
    %244 = arith.addf %237, %243 : vector<2x256xf32>
    %245 = vector.extract_strided_slice %239 {offsets = [0, 1], sizes = [2, 256], strides = [1, 1]} : vector<2x262xf32> to vector<2x256xf32>
    %c43 = arith.constant 43 : index
    %c0_75 = arith.constant 0 : index
    %246 = vector.load %arg1[%c43, %c0_75] : memref<98x256xf32, #tpu.memory_space<vmem>>, vector<1x256xf32>
    %247 = vector.broadcast %246 : vector<1x256xf32> to vector<2x256xf32>
    %248 = arith.mulf %245, %247 : vector<2x256xf32>
    %249 = arith.addf %244, %248 : vector<2x256xf32>
    %250 = vector.extract_strided_slice %239 {offsets = [0, 2], sizes = [2, 256], strides = [1, 1]} : vector<2x262xf32> to vector<2x256xf32>
    %c44 = arith.constant 44 : index
    %c0_76 = arith.constant 0 : index
    %251 = vector.load %arg1[%c44, %c0_76] : memref<98x256xf32, #tpu.memory_space<vmem>>, vector<1x256xf32>
    %252 = vector.broadcast %251 : vector<1x256xf32> to vector<2x256xf32>
    %253 = arith.mulf %250, %252 : vector<2x256xf32>
    %254 = arith.addf %249, %253 : vector<2x256xf32>
    %255 = vector.extract_strided_slice %239 {offsets = [0, 3], sizes = [2, 256], strides = [1, 1]} : vector<2x262xf32> to vector<2x256xf32>
    %c45 = arith.constant 45 : index
    %c0_77 = arith.constant 0 : index
    %256 = vector.load %arg1[%c45, %c0_77] : memref<98x256xf32, #tpu.memory_space<vmem>>, vector<1x256xf32>
    %257 = vector.broadcast %256 : vector<1x256xf32> to vector<2x256xf32>
    %258 = arith.mulf %255, %257 : vector<2x256xf32>
    %259 = arith.addf %254, %258 : vector<2x256xf32>
    %260 = vector.extract_strided_slice %239 {offsets = [0, 4], sizes = [2, 256], strides = [1, 1]} : vector<2x262xf32> to vector<2x256xf32>
    %c46 = arith.constant 46 : index
    %c0_78 = arith.constant 0 : index
    %261 = vector.load %arg1[%c46, %c0_78] : memref<98x256xf32, #tpu.memory_space<vmem>>, vector<1x256xf32>
    %262 = vector.broadcast %261 : vector<1x256xf32> to vector<2x256xf32>
    %263 = arith.mulf %260, %262 : vector<2x256xf32>
    %264 = arith.addf %259, %263 : vector<2x256xf32>
    %265 = vector.extract_strided_slice %239 {offsets = [0, 5], sizes = [2, 256], strides = [1, 1]} : vector<2x262xf32> to vector<2x256xf32>
    %c47 = arith.constant 47 : index
    %c0_79 = arith.constant 0 : index
    %266 = vector.load %arg1[%c47, %c0_79] : memref<98x256xf32, #tpu.memory_space<vmem>>, vector<1x256xf32>
    %267 = vector.broadcast %266 : vector<1x256xf32> to vector<2x256xf32>
    %268 = arith.mulf %265, %267 : vector<2x256xf32>
    %269 = arith.addf %264, %268 : vector<2x256xf32>
    %270 = vector.extract_strided_slice %239 {offsets = [0, 6], sizes = [2, 256], strides = [1, 1]} : vector<2x262xf32> to vector<2x256xf32>
    %c48 = arith.constant 48 : index
    %c0_80 = arith.constant 0 : index
    %271 = vector.load %arg1[%c48, %c0_80] : memref<98x256xf32, #tpu.memory_space<vmem>>, vector<1x256xf32>
    %272 = vector.broadcast %271 : vector<1x256xf32> to vector<2x256xf32>
    %273 = arith.mulf %270, %272 : vector<2x256xf32>
    %274 = arith.addf %269, %273 : vector<2x256xf32>
    %c1_81 = arith.constant 1 : index
    %c0_82 = arith.constant 0 : index
    %c77_83 = arith.constant 77 : index
    %275 = vector.load %arg5[%c1_81, %c0_82, %c77_83] : memref<2x2x512xf32, #tpu.memory_space<vmem>>, vector<1x2x262xf32>
    %276 = vector.shape_cast %275 : vector<1x2x262xf32> to vector<2x262xf32>
    %277 = vector.extract_strided_slice %276 {offsets = [0, 0], sizes = [2, 256], strides = [1, 1]} : vector<2x262xf32> to vector<2x256xf32>
    %c49 = arith.constant 49 : index
    %c0_84 = arith.constant 0 : index
    %278 = vector.load %arg1[%c49, %c0_84] : memref<98x256xf32, #tpu.memory_space<vmem>>, vector<1x256xf32>
    %279 = vector.broadcast %278 : vector<1x256xf32> to vector<2x256xf32>
    %280 = arith.mulf %277, %279 : vector<2x256xf32>
    %281 = arith.addf %274, %280 : vector<2x256xf32>
    %282 = vector.extract_strided_slice %276 {offsets = [0, 1], sizes = [2, 256], strides = [1, 1]} : vector<2x262xf32> to vector<2x256xf32>
    %c50 = arith.constant 50 : index
    %c0_85 = arith.constant 0 : index
    %283 = vector.load %arg1[%c50, %c0_85] : memref<98x256xf32, #tpu.memory_space<vmem>>, vector<1x256xf32>
    %284 = vector.broadcast %283 : vector<1x256xf32> to vector<2x256xf32>
    %285 = arith.mulf %282, %284 : vector<2x256xf32>
    %286 = arith.addf %281, %285 : vector<2x256xf32>
    %287 = vector.extract_strided_slice %276 {offsets = [0, 2], sizes = [2, 256], strides = [1, 1]} : vector<2x262xf32> to vector<2x256xf32>
    %c51 = arith.constant 51 : index
    %c0_86 = arith.constant 0 : index
    %288 = vector.load %arg1[%c51, %c0_86] : memref<98x256xf32, #tpu.memory_space<vmem>>, vector<1x256xf32>
    %289 = vector.broadcast %288 : vector<1x256xf32> to vector<2x256xf32>
    %290 = arith.mulf %287, %289 : vector<2x256xf32>
    %291 = arith.addf %286, %290 : vector<2x256xf32>
    %292 = vector.extract_strided_slice %276 {offsets = [0, 3], sizes = [2, 256], strides = [1, 1]} : vector<2x262xf32> to vector<2x256xf32>
    %c52 = arith.constant 52 : index
    %c0_87 = arith.constant 0 : index
    %293 = vector.load %arg1[%c52, %c0_87] : memref<98x256xf32, #tpu.memory_space<vmem>>, vector<1x256xf32>
    %294 = vector.broadcast %293 : vector<1x256xf32> to vector<2x256xf32>
    %295 = arith.mulf %292, %294 : vector<2x256xf32>
    %296 = arith.addf %291, %295 : vector<2x256xf32>
    %297 = vector.extract_strided_slice %276 {offsets = [0, 4], sizes = [2, 256], strides = [1, 1]} : vector<2x262xf32> to vector<2x256xf32>
    %c53 = arith.constant 53 : index
    %c0_88 = arith.constant 0 : index
    %298 = vector.load %arg1[%c53, %c0_88] : memref<98x256xf32, #tpu.memory_space<vmem>>, vector<1x256xf32>
    %299 = vector.broadcast %298 : vector<1x256xf32> to vector<2x256xf32>
    %300 = arith.mulf %297, %299 : vector<2x256xf32>
    %301 = arith.addf %296, %300 : vector<2x256xf32>
    %302 = vector.extract_strided_slice %276 {offsets = [0, 5], sizes = [2, 256], strides = [1, 1]} : vector<2x262xf32> to vector<2x256xf32>
    %c54 = arith.constant 54 : index
    %c0_89 = arith.constant 0 : index
    %303 = vector.load %arg1[%c54, %c0_89] : memref<98x256xf32, #tpu.memory_space<vmem>>, vector<1x256xf32>
    %304 = vector.broadcast %303 : vector<1x256xf32> to vector<2x256xf32>
    %305 = arith.mulf %302, %304 : vector<2x256xf32>
    %306 = arith.addf %301, %305 : vector<2x256xf32>
    %307 = vector.extract_strided_slice %276 {offsets = [0, 6], sizes = [2, 256], strides = [1, 1]} : vector<2x262xf32> to vector<2x256xf32>
    %c55 = arith.constant 55 : index
    %c0_90 = arith.constant 0 : index
    %308 = vector.load %arg1[%c55, %c0_90] : memref<98x256xf32, #tpu.memory_space<vmem>>, vector<1x256xf32>
    %309 = vector.broadcast %308 : vector<1x256xf32> to vector<2x256xf32>
    %310 = arith.mulf %307, %309 : vector<2x256xf32>
    %311 = arith.addf %306, %310 : vector<2x256xf32>
    %c1_91 = arith.constant 1 : index
    %c0_92 = arith.constant 0 : index
    %c93_93 = arith.constant 93 : index
    %312 = vector.load %arg5[%c1_91, %c0_92, %c93_93] : memref<2x2x512xf32, #tpu.memory_space<vmem>>, vector<1x2x262xf32>
    %313 = vector.shape_cast %312 : vector<1x2x262xf32> to vector<2x262xf32>
    %314 = vector.extract_strided_slice %313 {offsets = [0, 0], sizes = [2, 256], strides = [1, 1]} : vector<2x262xf32> to vector<2x256xf32>
    %c56 = arith.constant 56 : index
    %c0_94 = arith.constant 0 : index
    %315 = vector.load %arg1[%c56, %c0_94] : memref<98x256xf32, #tpu.memory_space<vmem>>, vector<1x256xf32>
    %316 = vector.broadcast %315 : vector<1x256xf32> to vector<2x256xf32>
    %317 = arith.mulf %314, %316 : vector<2x256xf32>
    %318 = arith.addf %311, %317 : vector<2x256xf32>
    %319 = vector.extract_strided_slice %313 {offsets = [0, 1], sizes = [2, 256], strides = [1, 1]} : vector<2x262xf32> to vector<2x256xf32>
    %c57 = arith.constant 57 : index
    %c0_95 = arith.constant 0 : index
    %320 = vector.load %arg1[%c57, %c0_95] : memref<98x256xf32, #tpu.memory_space<vmem>>, vector<1x256xf32>
    %321 = vector.broadcast %320 : vector<1x256xf32> to vector<2x256xf32>
    %322 = arith.mulf %319, %321 : vector<2x256xf32>
    %323 = arith.addf %318, %322 : vector<2x256xf32>
    %324 = vector.extract_strided_slice %313 {offsets = [0, 2], sizes = [2, 256], strides = [1, 1]} : vector<2x262xf32> to vector<2x256xf32>
    %c58 = arith.constant 58 : index
    %c0_96 = arith.constant 0 : index
    %325 = vector.load %arg1[%c58, %c0_96] : memref<98x256xf32, #tpu.memory_space<vmem>>, vector<1x256xf32>
    %326 = vector.broadcast %325 : vector<1x256xf32> to vector<2x256xf32>
    %327 = arith.mulf %324, %326 : vector<2x256xf32>
    %328 = arith.addf %323, %327 : vector<2x256xf32>
    %329 = vector.extract_strided_slice %313 {offsets = [0, 3], sizes = [2, 256], strides = [1, 1]} : vector<2x262xf32> to vector<2x256xf32>
    %c59 = arith.constant 59 : index
    %c0_97 = arith.constant 0 : index
    %330 = vector.load %arg1[%c59, %c0_97] : memref<98x256xf32, #tpu.memory_space<vmem>>, vector<1x256xf32>
    %331 = vector.broadcast %330 : vector<1x256xf32> to vector<2x256xf32>
    %332 = arith.mulf %329, %331 : vector<2x256xf32>
    %333 = arith.addf %328, %332 : vector<2x256xf32>
    %334 = vector.extract_strided_slice %313 {offsets = [0, 4], sizes = [2, 256], strides = [1, 1]} : vector<2x262xf32> to vector<2x256xf32>
    %c60 = arith.constant 60 : index
    %c0_98 = arith.constant 0 : index
    %335 = vector.load %arg1[%c60, %c0_98] : memref<98x256xf32, #tpu.memory_space<vmem>>, vector<1x256xf32>
    %336 = vector.broadcast %335 : vector<1x256xf32> to vector<2x256xf32>
    %337 = arith.mulf %334, %336 : vector<2x256xf32>
    %338 = arith.addf %333, %337 : vector<2x256xf32>
    %339 = vector.extract_strided_slice %313 {offsets = [0, 5], sizes = [2, 256], strides = [1, 1]} : vector<2x262xf32> to vector<2x256xf32>
    %c61 = arith.constant 61 : index
    %c0_99 = arith.constant 0 : index
    %340 = vector.load %arg1[%c61, %c0_99] : memref<98x256xf32, #tpu.memory_space<vmem>>, vector<1x256xf32>
    %341 = vector.broadcast %340 : vector<1x256xf32> to vector<2x256xf32>
    %342 = arith.mulf %339, %341 : vector<2x256xf32>
    %343 = arith.addf %338, %342 : vector<2x256xf32>
    %344 = vector.extract_strided_slice %313 {offsets = [0, 6], sizes = [2, 256], strides = [1, 1]} : vector<2x262xf32> to vector<2x256xf32>
    %c62 = arith.constant 62 : index
    %c0_100 = arith.constant 0 : index
    %345 = vector.load %arg1[%c62, %c0_100] : memref<98x256xf32, #tpu.memory_space<vmem>>, vector<1x256xf32>
    %346 = vector.broadcast %345 : vector<1x256xf32> to vector<2x256xf32>
    %347 = arith.mulf %344, %346 : vector<2x256xf32>
    %348 = arith.addf %343, %347 : vector<2x256xf32>
    %c1_101 = arith.constant 1 : index
    %c0_102 = arith.constant 0 : index
    %c109_103 = arith.constant 109 : index
    %349 = vector.load %arg5[%c1_101, %c0_102, %c109_103] : memref<2x2x512xf32, #tpu.memory_space<vmem>>, vector<1x2x262xf32>
    %350 = vector.shape_cast %349 : vector<1x2x262xf32> to vector<2x262xf32>
    %351 = vector.extract_strided_slice %350 {offsets = [0, 0], sizes = [2, 256], strides = [1, 1]} : vector<2x262xf32> to vector<2x256xf32>
    %c63 = arith.constant 63 : index
    %c0_104 = arith.constant 0 : index
    %352 = vector.load %arg1[%c63, %c0_104] : memref<98x256xf32, #tpu.memory_space<vmem>>, vector<1x256xf32>
    %353 = vector.broadcast %352 : vector<1x256xf32> to vector<2x256xf32>
    %354 = arith.mulf %351, %353 : vector<2x256xf32>
    %355 = arith.addf %348, %354 : vector<2x256xf32>
    %356 = vector.extract_strided_slice %350 {offsets = [0, 1], sizes = [2, 256], strides = [1, 1]} : vector<2x262xf32> to vector<2x256xf32>
    %c64 = arith.constant 64 : index
    %c0_105 = arith.constant 0 : index
    %357 = vector.load %arg1[%c64, %c0_105] : memref<98x256xf32, #tpu.memory_space<vmem>>, vector<1x256xf32>
    %358 = vector.broadcast %357 : vector<1x256xf32> to vector<2x256xf32>
    %359 = arith.mulf %356, %358 : vector<2x256xf32>
    %360 = arith.addf %355, %359 : vector<2x256xf32>
    %361 = vector.extract_strided_slice %350 {offsets = [0, 2], sizes = [2, 256], strides = [1, 1]} : vector<2x262xf32> to vector<2x256xf32>
    %c65 = arith.constant 65 : index
    %c0_106 = arith.constant 0 : index
    %362 = vector.load %arg1[%c65, %c0_106] : memref<98x256xf32, #tpu.memory_space<vmem>>, vector<1x256xf32>
    %363 = vector.broadcast %362 : vector<1x256xf32> to vector<2x256xf32>
    %364 = arith.mulf %361, %363 : vector<2x256xf32>
    %365 = arith.addf %360, %364 : vector<2x256xf32>
    %366 = vector.extract_strided_slice %350 {offsets = [0, 3], sizes = [2, 256], strides = [1, 1]} : vector<2x262xf32> to vector<2x256xf32>
    %c66 = arith.constant 66 : index
    %c0_107 = arith.constant 0 : index
    %367 = vector.load %arg1[%c66, %c0_107] : memref<98x256xf32, #tpu.memory_space<vmem>>, vector<1x256xf32>
    %368 = vector.broadcast %367 : vector<1x256xf32> to vector<2x256xf32>
    %369 = arith.mulf %366, %368 : vector<2x256xf32>
    %370 = arith.addf %365, %369 : vector<2x256xf32>
    %371 = vector.extract_strided_slice %350 {offsets = [0, 4], sizes = [2, 256], strides = [1, 1]} : vector<2x262xf32> to vector<2x256xf32>
    %c67 = arith.constant 67 : index
    %c0_108 = arith.constant 0 : index
    %372 = vector.load %arg1[%c67, %c0_108] : memref<98x256xf32, #tpu.memory_space<vmem>>, vector<1x256xf32>
    %373 = vector.broadcast %372 : vector<1x256xf32> to vector<2x256xf32>
    %374 = arith.mulf %371, %373 : vector<2x256xf32>
    %375 = arith.addf %370, %374 : vector<2x256xf32>
    %376 = vector.extract_strided_slice %350 {offsets = [0, 5], sizes = [2, 256], strides = [1, 1]} : vector<2x262xf32> to vector<2x256xf32>
    %c68 = arith.constant 68 : index
    %c0_109 = arith.constant 0 : index
    %377 = vector.load %arg1[%c68, %c0_109] : memref<98x256xf32, #tpu.memory_space<vmem>>, vector<1x256xf32>
    %378 = vector.broadcast %377 : vector<1x256xf32> to vector<2x256xf32>
    %379 = arith.mulf %376, %378 : vector<2x256xf32>
    %380 = arith.addf %375, %379 : vector<2x256xf32>
    %381 = vector.extract_strided_slice %350 {offsets = [0, 6], sizes = [2, 256], strides = [1, 1]} : vector<2x262xf32> to vector<2x256xf32>
    %c69 = arith.constant 69 : index
    %c0_110 = arith.constant 0 : index
    %382 = vector.load %arg1[%c69, %c0_110] : memref<98x256xf32, #tpu.memory_space<vmem>>, vector<1x256xf32>
    %383 = vector.broadcast %382 : vector<1x256xf32> to vector<2x256xf32>
    %384 = arith.mulf %381, %383 : vector<2x256xf32>
    %385 = arith.addf %380, %384 : vector<2x256xf32>
    %c1_111 = arith.constant 1 : index
    %c0_112 = arith.constant 0 : index
    %c125_113 = arith.constant 125 : index
    %386 = vector.load %arg5[%c1_111, %c0_112, %c125_113] : memref<2x2x512xf32, #tpu.memory_space<vmem>>, vector<1x2x262xf32>
    %387 = vector.shape_cast %386 : vector<1x2x262xf32> to vector<2x262xf32>
    %388 = vector.extract_strided_slice %387 {offsets = [0, 0], sizes = [2, 256], strides = [1, 1]} : vector<2x262xf32> to vector<2x256xf32>
    %c70 = arith.constant 70 : index
    %c0_114 = arith.constant 0 : index
    %389 = vector.load %arg1[%c70, %c0_114] : memref<98x256xf32, #tpu.memory_space<vmem>>, vector<1x256xf32>
    %390 = vector.broadcast %389 : vector<1x256xf32> to vector<2x256xf32>
    %391 = arith.mulf %388, %390 : vector<2x256xf32>
    %392 = arith.addf %385, %391 : vector<2x256xf32>
    %393 = vector.extract_strided_slice %387 {offsets = [0, 1], sizes = [2, 256], strides = [1, 1]} : vector<2x262xf32> to vector<2x256xf32>
    %c71 = arith.constant 71 : index
    %c0_115 = arith.constant 0 : index
    %394 = vector.load %arg1[%c71, %c0_115] : memref<98x256xf32, #tpu.memory_space<vmem>>, vector<1x256xf32>
    %395 = vector.broadcast %394 : vector<1x256xf32> to vector<2x256xf32>
    %396 = arith.mulf %393, %395 : vector<2x256xf32>
    %397 = arith.addf %392, %396 : vector<2x256xf32>
    %398 = vector.extract_strided_slice %387 {offsets = [0, 2], sizes = [2, 256], strides = [1, 1]} : vector<2x262xf32> to vector<2x256xf32>
    %c72 = arith.constant 72 : index
    %c0_116 = arith.constant 0 : index
    %399 = vector.load %arg1[%c72, %c0_116] : memref<98x256xf32, #tpu.memory_space<vmem>>, vector<1x256xf32>
    %400 = vector.broadcast %399 : vector<1x256xf32> to vector<2x256xf32>
    %401 = arith.mulf %398, %400 : vector<2x256xf32>
    %402 = arith.addf %397, %401 : vector<2x256xf32>
    %403 = vector.extract_strided_slice %387 {offsets = [0, 3], sizes = [2, 256], strides = [1, 1]} : vector<2x262xf32> to vector<2x256xf32>
    %c73 = arith.constant 73 : index
    %c0_117 = arith.constant 0 : index
    %404 = vector.load %arg1[%c73, %c0_117] : memref<98x256xf32, #tpu.memory_space<vmem>>, vector<1x256xf32>
    %405 = vector.broadcast %404 : vector<1x256xf32> to vector<2x256xf32>
    %406 = arith.mulf %403, %405 : vector<2x256xf32>
    %407 = arith.addf %402, %406 : vector<2x256xf32>
    %408 = vector.extract_strided_slice %387 {offsets = [0, 4], sizes = [2, 256], strides = [1, 1]} : vector<2x262xf32> to vector<2x256xf32>
    %c74 = arith.constant 74 : index
    %c0_118 = arith.constant 0 : index
    %409 = vector.load %arg1[%c74, %c0_118] : memref<98x256xf32, #tpu.memory_space<vmem>>, vector<1x256xf32>
    %410 = vector.broadcast %409 : vector<1x256xf32> to vector<2x256xf32>
    %411 = arith.mulf %408, %410 : vector<2x256xf32>
    %412 = arith.addf %407, %411 : vector<2x256xf32>
    %413 = vector.extract_strided_slice %387 {offsets = [0, 5], sizes = [2, 256], strides = [1, 1]} : vector<2x262xf32> to vector<2x256xf32>
    %c75 = arith.constant 75 : index
    %c0_119 = arith.constant 0 : index
    %414 = vector.load %arg1[%c75, %c0_119] : memref<98x256xf32, #tpu.memory_space<vmem>>, vector<1x256xf32>
    %415 = vector.broadcast %414 : vector<1x256xf32> to vector<2x256xf32>
    %416 = arith.mulf %413, %415 : vector<2x256xf32>
    %417 = arith.addf %412, %416 : vector<2x256xf32>
    %418 = vector.extract_strided_slice %387 {offsets = [0, 6], sizes = [2, 256], strides = [1, 1]} : vector<2x262xf32> to vector<2x256xf32>
    %c76 = arith.constant 76 : index
    %c0_120 = arith.constant 0 : index
    %419 = vector.load %arg1[%c76, %c0_120] : memref<98x256xf32, #tpu.memory_space<vmem>>, vector<1x256xf32>
    %420 = vector.broadcast %419 : vector<1x256xf32> to vector<2x256xf32>
    %421 = arith.mulf %418, %420 : vector<2x256xf32>
    %422 = arith.addf %417, %421 : vector<2x256xf32>
    %c1_121 = arith.constant 1 : index
    %c0_122 = arith.constant 0 : index
    %c141_123 = arith.constant 141 : index
    %423 = vector.load %arg5[%c1_121, %c0_122, %c141_123] : memref<2x2x512xf32, #tpu.memory_space<vmem>>, vector<1x2x262xf32>
    %424 = vector.shape_cast %423 : vector<1x2x262xf32> to vector<2x262xf32>
    %425 = vector.extract_strided_slice %424 {offsets = [0, 0], sizes = [2, 256], strides = [1, 1]} : vector<2x262xf32> to vector<2x256xf32>
    %c77_124 = arith.constant 77 : index
    %c0_125 = arith.constant 0 : index
    %426 = vector.load %arg1[%c77_124, %c0_125] : memref<98x256xf32, #tpu.memory_space<vmem>>, vector<1x256xf32>
    %427 = vector.broadcast %426 : vector<1x256xf32> to vector<2x256xf32>
    %428 = arith.mulf %425, %427 : vector<2x256xf32>
    %429 = arith.addf %422, %428 : vector<2x256xf32>
    %430 = vector.extract_strided_slice %424 {offsets = [0, 1], sizes = [2, 256], strides = [1, 1]} : vector<2x262xf32> to vector<2x256xf32>
    %c78 = arith.constant 78 : index
    %c0_126 = arith.constant 0 : index
    %431 = vector.load %arg1[%c78, %c0_126] : memref<98x256xf32, #tpu.memory_space<vmem>>, vector<1x256xf32>
    %432 = vector.broadcast %431 : vector<1x256xf32> to vector<2x256xf32>
    %433 = arith.mulf %430, %432 : vector<2x256xf32>
    %434 = arith.addf %429, %433 : vector<2x256xf32>
    %435 = vector.extract_strided_slice %424 {offsets = [0, 2], sizes = [2, 256], strides = [1, 1]} : vector<2x262xf32> to vector<2x256xf32>
    %c79 = arith.constant 79 : index
    %c0_127 = arith.constant 0 : index
    %436 = vector.load %arg1[%c79, %c0_127] : memref<98x256xf32, #tpu.memory_space<vmem>>, vector<1x256xf32>
    %437 = vector.broadcast %436 : vector<1x256xf32> to vector<2x256xf32>
    %438 = arith.mulf %435, %437 : vector<2x256xf32>
    %439 = arith.addf %434, %438 : vector<2x256xf32>
    %440 = vector.extract_strided_slice %424 {offsets = [0, 3], sizes = [2, 256], strides = [1, 1]} : vector<2x262xf32> to vector<2x256xf32>
    %c80 = arith.constant 80 : index
    %c0_128 = arith.constant 0 : index
    %441 = vector.load %arg1[%c80, %c0_128] : memref<98x256xf32, #tpu.memory_space<vmem>>, vector<1x256xf32>
    %442 = vector.broadcast %441 : vector<1x256xf32> to vector<2x256xf32>
    %443 = arith.mulf %440, %442 : vector<2x256xf32>
    %444 = arith.addf %439, %443 : vector<2x256xf32>
    %445 = vector.extract_strided_slice %424 {offsets = [0, 4], sizes = [2, 256], strides = [1, 1]} : vector<2x262xf32> to vector<2x256xf32>
    %c81 = arith.constant 81 : index
    %c0_129 = arith.constant 0 : index
    %446 = vector.load %arg1[%c81, %c0_129] : memref<98x256xf32, #tpu.memory_space<vmem>>, vector<1x256xf32>
    %447 = vector.broadcast %446 : vector<1x256xf32> to vector<2x256xf32>
    %448 = arith.mulf %445, %447 : vector<2x256xf32>
    %449 = arith.addf %444, %448 : vector<2x256xf32>
    %450 = vector.extract_strided_slice %424 {offsets = [0, 5], sizes = [2, 256], strides = [1, 1]} : vector<2x262xf32> to vector<2x256xf32>
    %c82 = arith.constant 82 : index
    %c0_130 = arith.constant 0 : index
    %451 = vector.load %arg1[%c82, %c0_130] : memref<98x256xf32, #tpu.memory_space<vmem>>, vector<1x256xf32>
    %452 = vector.broadcast %451 : vector<1x256xf32> to vector<2x256xf32>
    %453 = arith.mulf %450, %452 : vector<2x256xf32>
    %454 = arith.addf %449, %453 : vector<2x256xf32>
    %455 = vector.extract_strided_slice %424 {offsets = [0, 6], sizes = [2, 256], strides = [1, 1]} : vector<2x262xf32> to vector<2x256xf32>
    %c83 = arith.constant 83 : index
    %c0_131 = arith.constant 0 : index
    %456 = vector.load %arg1[%c83, %c0_131] : memref<98x256xf32, #tpu.memory_space<vmem>>, vector<1x256xf32>
    %457 = vector.broadcast %456 : vector<1x256xf32> to vector<2x256xf32>
    %458 = arith.mulf %455, %457 : vector<2x256xf32>
    %459 = arith.addf %454, %458 : vector<2x256xf32>
    %c1_132 = arith.constant 1 : index
    %c0_133 = arith.constant 0 : index
    %c157_134 = arith.constant 157 : index
    %460 = vector.load %arg5[%c1_132, %c0_133, %c157_134] : memref<2x2x512xf32, #tpu.memory_space<vmem>>, vector<1x2x262xf32>
    %461 = vector.shape_cast %460 : vector<1x2x262xf32> to vector<2x262xf32>
    %462 = vector.extract_strided_slice %461 {offsets = [0, 0], sizes = [2, 256], strides = [1, 1]} : vector<2x262xf32> to vector<2x256xf32>
    %c84 = arith.constant 84 : index
    %c0_135 = arith.constant 0 : index
    %463 = vector.load %arg1[%c84, %c0_135] : memref<98x256xf32, #tpu.memory_space<vmem>>, vector<1x256xf32>
    %464 = vector.broadcast %463 : vector<1x256xf32> to vector<2x256xf32>
    %465 = arith.mulf %462, %464 : vector<2x256xf32>
    %466 = arith.addf %459, %465 : vector<2x256xf32>
    %467 = vector.extract_strided_slice %461 {offsets = [0, 1], sizes = [2, 256], strides = [1, 1]} : vector<2x262xf32> to vector<2x256xf32>
    %c85 = arith.constant 85 : index
    %c0_136 = arith.constant 0 : index
    %468 = vector.load %arg1[%c85, %c0_136] : memref<98x256xf32, #tpu.memory_space<vmem>>, vector<1x256xf32>
    %469 = vector.broadcast %468 : vector<1x256xf32> to vector<2x256xf32>
    %470 = arith.mulf %467, %469 : vector<2x256xf32>
    %471 = arith.addf %466, %470 : vector<2x256xf32>
    %472 = vector.extract_strided_slice %461 {offsets = [0, 2], sizes = [2, 256], strides = [1, 1]} : vector<2x262xf32> to vector<2x256xf32>
    %c86 = arith.constant 86 : index
    %c0_137 = arith.constant 0 : index
    %473 = vector.load %arg1[%c86, %c0_137] : memref<98x256xf32, #tpu.memory_space<vmem>>, vector<1x256xf32>
    %474 = vector.broadcast %473 : vector<1x256xf32> to vector<2x256xf32>
    %475 = arith.mulf %472, %474 : vector<2x256xf32>
    %476 = arith.addf %471, %475 : vector<2x256xf32>
    %477 = vector.extract_strided_slice %461 {offsets = [0, 3], sizes = [2, 256], strides = [1, 1]} : vector<2x262xf32> to vector<2x256xf32>
    %c87 = arith.constant 87 : index
    %c0_138 = arith.constant 0 : index
    %478 = vector.load %arg1[%c87, %c0_138] : memref<98x256xf32, #tpu.memory_space<vmem>>, vector<1x256xf32>
    %479 = vector.broadcast %478 : vector<1x256xf32> to vector<2x256xf32>
    %480 = arith.mulf %477, %479 : vector<2x256xf32>
    %481 = arith.addf %476, %480 : vector<2x256xf32>
    %482 = vector.extract_strided_slice %461 {offsets = [0, 4], sizes = [2, 256], strides = [1, 1]} : vector<2x262xf32> to vector<2x256xf32>
    %c88 = arith.constant 88 : index
    %c0_139 = arith.constant 0 : index
    %483 = vector.load %arg1[%c88, %c0_139] : memref<98x256xf32, #tpu.memory_space<vmem>>, vector<1x256xf32>
    %484 = vector.broadcast %483 : vector<1x256xf32> to vector<2x256xf32>
    %485 = arith.mulf %482, %484 : vector<2x256xf32>
    %486 = arith.addf %481, %485 : vector<2x256xf32>
    %487 = vector.extract_strided_slice %461 {offsets = [0, 5], sizes = [2, 256], strides = [1, 1]} : vector<2x262xf32> to vector<2x256xf32>
    %c89 = arith.constant 89 : index
    %c0_140 = arith.constant 0 : index
    %488 = vector.load %arg1[%c89, %c0_140] : memref<98x256xf32, #tpu.memory_space<vmem>>, vector<1x256xf32>
    %489 = vector.broadcast %488 : vector<1x256xf32> to vector<2x256xf32>
    %490 = arith.mulf %487, %489 : vector<2x256xf32>
    %491 = arith.addf %486, %490 : vector<2x256xf32>
    %492 = vector.extract_strided_slice %461 {offsets = [0, 6], sizes = [2, 256], strides = [1, 1]} : vector<2x262xf32> to vector<2x256xf32>
    %c90 = arith.constant 90 : index
    %c0_141 = arith.constant 0 : index
    %493 = vector.load %arg1[%c90, %c0_141] : memref<98x256xf32, #tpu.memory_space<vmem>>, vector<1x256xf32>
    %494 = vector.broadcast %493 : vector<1x256xf32> to vector<2x256xf32>
    %495 = arith.mulf %492, %494 : vector<2x256xf32>
    %496 = arith.addf %491, %495 : vector<2x256xf32>
    %c1_142 = arith.constant 1 : index
    %c0_143 = arith.constant 0 : index
    %c173_144 = arith.constant 173 : index
    %497 = vector.load %arg5[%c1_142, %c0_143, %c173_144] : memref<2x2x512xf32, #tpu.memory_space<vmem>>, vector<1x2x262xf32>
    %498 = vector.shape_cast %497 : vector<1x2x262xf32> to vector<2x262xf32>
    %499 = vector.extract_strided_slice %498 {offsets = [0, 0], sizes = [2, 256], strides = [1, 1]} : vector<2x262xf32> to vector<2x256xf32>
    %c91 = arith.constant 91 : index
    %c0_145 = arith.constant 0 : index
    %500 = vector.load %arg1[%c91, %c0_145] : memref<98x256xf32, #tpu.memory_space<vmem>>, vector<1x256xf32>
    %501 = vector.broadcast %500 : vector<1x256xf32> to vector<2x256xf32>
    %502 = arith.mulf %499, %501 : vector<2x256xf32>
    %503 = arith.addf %496, %502 : vector<2x256xf32>
    %504 = vector.extract_strided_slice %498 {offsets = [0, 1], sizes = [2, 256], strides = [1, 1]} : vector<2x262xf32> to vector<2x256xf32>
    %c92 = arith.constant 92 : index
    %c0_146 = arith.constant 0 : index
    %505 = vector.load %arg1[%c92, %c0_146] : memref<98x256xf32, #tpu.memory_space<vmem>>, vector<1x256xf32>
    %506 = vector.broadcast %505 : vector<1x256xf32> to vector<2x256xf32>
    %507 = arith.mulf %504, %506 : vector<2x256xf32>
    %508 = arith.addf %503, %507 : vector<2x256xf32>
    %509 = vector.extract_strided_slice %498 {offsets = [0, 2], sizes = [2, 256], strides = [1, 1]} : vector<2x262xf32> to vector<2x256xf32>
    %c93_147 = arith.constant 93 : index
    %c0_148 = arith.constant 0 : index
    %510 = vector.load %arg1[%c93_147, %c0_148] : memref<98x256xf32, #tpu.memory_space<vmem>>, vector<1x256xf32>
    %511 = vector.broadcast %510 : vector<1x256xf32> to vector<2x256xf32>
    %512 = arith.mulf %509, %511 : vector<2x256xf32>
    %513 = arith.addf %508, %512 : vector<2x256xf32>
    %514 = vector.extract_strided_slice %498 {offsets = [0, 3], sizes = [2, 256], strides = [1, 1]} : vector<2x262xf32> to vector<2x256xf32>
    %c94 = arith.constant 94 : index
    %c0_149 = arith.constant 0 : index
    %515 = vector.load %arg1[%c94, %c0_149] : memref<98x256xf32, #tpu.memory_space<vmem>>, vector<1x256xf32>
    %516 = vector.broadcast %515 : vector<1x256xf32> to vector<2x256xf32>
    %517 = arith.mulf %514, %516 : vector<2x256xf32>
    %518 = arith.addf %513, %517 : vector<2x256xf32>
    %519 = vector.extract_strided_slice %498 {offsets = [0, 4], sizes = [2, 256], strides = [1, 1]} : vector<2x262xf32> to vector<2x256xf32>
    %c95 = arith.constant 95 : index
    %c0_150 = arith.constant 0 : index
    %520 = vector.load %arg1[%c95, %c0_150] : memref<98x256xf32, #tpu.memory_space<vmem>>, vector<1x256xf32>
    %521 = vector.broadcast %520 : vector<1x256xf32> to vector<2x256xf32>
    %522 = arith.mulf %519, %521 : vector<2x256xf32>
    %523 = arith.addf %518, %522 : vector<2x256xf32>
    %524 = vector.extract_strided_slice %498 {offsets = [0, 5], sizes = [2, 256], strides = [1, 1]} : vector<2x262xf32> to vector<2x256xf32>
    %c96 = arith.constant 96 : index
    %c0_151 = arith.constant 0 : index
    %525 = vector.load %arg1[%c96, %c0_151] : memref<98x256xf32, #tpu.memory_space<vmem>>, vector<1x256xf32>
    %526 = vector.broadcast %525 : vector<1x256xf32> to vector<2x256xf32>
    %527 = arith.mulf %524, %526 : vector<2x256xf32>
    %528 = arith.addf %523, %527 : vector<2x256xf32>
    %529 = vector.extract_strided_slice %498 {offsets = [0, 6], sizes = [2, 256], strides = [1, 1]} : vector<2x262xf32> to vector<2x256xf32>
    %c97 = arith.constant 97 : index
    %c0_152 = arith.constant 0 : index
    %530 = vector.load %arg1[%c97, %c0_152] : memref<98x256xf32, #tpu.memory_space<vmem>>, vector<1x256xf32>
    %531 = vector.broadcast %530 : vector<1x256xf32> to vector<2x256xf32>
    %532 = arith.mulf %529, %531 : vector<2x256xf32>
    %533 = arith.addf %528, %532 : vector<2x256xf32>
    %c0_153 = arith.constant 0 : index
    %534 = memref.load %arg2[%c0_153] : memref<2xf32, #tpu.memory_space<smem>>
    %535 = vector.broadcast %534 : f32 to vector<2x256xf32>
    %536 = arith.mulf %533, %535 : vector<2x256xf32>
    %c1_154 = arith.constant 1 : index
    %537 = memref.load %arg2[%c1_154] : memref<2xf32, #tpu.memory_space<smem>>
    %538 = vector.broadcast %537 : f32 to vector<2x256xf32>
    %539 = arith.addf %536, %538 : vector<2x256xf32>
    %cst_155 = arith.constant 0.000000e+00 : f32
    %540 = vector.broadcast %cst_155 : f32 to vector<2x256xf32>
    %541 = arith.subf %540, %539 : vector<2x256xf32>
    %542 = math.exp %541 : vector<2x256xf32>
    %cst_156 = arith.constant 1.000000e+00 : f32
    %543 = vector.broadcast %cst_156 : f32 to vector<2x256xf32>
    %544 = arith.addf %543, %542 : vector<2x256xf32>
    %545 = tpu.reciprocal %544 : vector<2x256xf32> -> vector<2x256xf32>
    %c0_157 = arith.constant 0 : index
    %c0_158 = arith.constant 0 : index
    %c0_159 = arith.constant 0 : index
    %546 = vector.load %arg3[%c0_157, %c0_158, %c0_159] : memref<2x4x256xf32, #tpu.memory_space<vmem>>, vector<2x4x256xf32>
    %547 = vector.shape_cast %545 : vector<2x256xf32> to vector<2x1x256xf32>
    %548 = vector.broadcast %547 : vector<2x1x256xf32> to vector<2x4x256xf32>
    %549 = arith.mulf %546, %548 : vector<2x4x256xf32>
    %c0_160 = arith.constant 0 : index
    %c0_161 = arith.constant 0 : index
    %c0_162 = arith.constant 0 : index
    %550 = vector.load %arg4[%c0_160, %c0_161, %c0_162] : memref<2x4x256xf32, #tpu.memory_space<vmem>>, vector<2x4x256xf32>
    tpu.vector_store %arg4[%c0_160, %c0_161, %c0_162], %549 {strides = array<i32>} : memref<2x4x256xf32, #tpu.memory_space<vmem>>, vector<2x4x256xf32>,
    return
  }
  func.func @transform_0(%arg0: i32) -> (i32, i32) {
    %c0_i32 = arith.constant 0 : i32
    %c0_i32_0 = arith.constant 0 : i32
    %c0_i32_1 = arith.constant 0 : i32
    return %c0_i32, %c0_i32_0 : i32, i32
  }
  func.func @transform_1(%arg0: i32) -> i32 {
    %c0_i32 = arith.constant 0 : i32
    %c0_i32_0 = arith.constant 0 : i32
    return %c0_i32 : i32
  }
  func.func @transform_2(%arg0: i32) -> (i32, i32, i32) {
    %c0_i32 = arith.constant 0 : i32
    %c0_i32_0 = arith.constant 0 : i32
    %c0_i32_1 = arith.constant 0 : i32
    return %arg0, %c0_i32, %c0_i32_0 : i32, i32, i32
  }
  func.func @transform_3(%arg0: i32) -> (i32, i32, i32) {
    %c0_i32 = arith.constant 0 : i32
    %c0_i32_0 = arith.constant 0 : i32
    %c0_i32_1 = arith.constant 0 : i32
    return %arg0, %c0_i32, %c0_i32_0 : i32, i32, i32
  }
}

</mosaic_0001>

<llo_original>
// kernel: tpu_custom_call.1
$region0: #{tpu_custom_call.1}
  #allocation0 [shape = 'u32[]', space=smem, size = 0x4, offset = 0x4, fixed_abs, tag = 'smem constant byte address 0x4 - core index']
  #allocation1 [shape = 'u32[144,128]{1,0:T(1,128)}', space=vmem, size = 0x12000, scoped, tag = 'internal scratch']
  #allocation2 [shape = 'f32[2,2,512]{2,1,0:T(2,128)}', space=vmem, size = 0x2000, scoped, tag = 'scratch operand']
  %s0 = inlined_call_operand.hbm [shape: f32[98,256], index: 0, kind: input, shape index: {}]
  %s1 = inlined_call_operand.vmem [shape: f32[2], index: 1, kind: input, shape index: {}]
  %s2 = inlined_call_operand.hbm [shape: f32[2,4,256], index: 2, kind: input, shape index: {}]
  %s3 = inlined_call_operand.hbm [shape: f32[2,4,256], index: 3, kind: output, shape index: {}]
  %s4 = sld [smem:[#allocation0]]
  $region34: #{tpu_custom_call.1} parent=0
    _
  %s6 = ssub.s32 1, %s4
  %s7 = scalar_select 0, %s6, %s4
  $region1: #{tpu_custom_call.1} parent=0
    #allocation3 [shape = 'u8[106496]{0}', space=vmem, size = 0x1a000, scoped, tag = 'input window, operand 0, single buffered']
    #allocation4 [shape = 's32[1]{0}', space=sflag, size = 0x4, scoped, tag = 'scoped memory for tpu_custom_call.1']
    #allocation5 [shape = 's32[1]{0}', space=sflag, size = 0x4, scoped, tag = 'scoped memory for tpu_custom_call.1']
    #allocation6 [shape = 's32[1]{0}', space=sflag, size = 0x4, scoped, tag = 'scoped memory for tpu_custom_call.1']
    #allocation7 [shape = 'u8[512]{0}', space=smem, size = 0x200, scoped, tag = 'input window, operand 1, single buffered']
    #allocation8 [shape = 'u8[8192]{0}', space=vmem, size = 0x2000, scoped, tag = 'input window, operand 2, single buffered']
    #allocation9 [shape = 's32[1]{0}', space=sflag, size = 0x4, scoped, tag = 'scoped memory for tpu_custom_call.1']
    #allocation10 [shape = 'u8[8192]{0}', space=vmem, size = 0x2000, scoped, tag = 'output window, operand 0, single buffered']
    %8 = vsyncpa [#allocation4], 0
    %9 = vsyncpa [#allocation6], 0
    %10 = vsyncpa [#allocation9], 0
    %11 = vsyncpa [#allocation5], 0
    // Predicated region
    $region2: #{tpu_custom_call.1} parent=1 // pred_check
      _
    $region3: #{tpu_custom_call.1} parent=1 // pred_check_branch
      %13 = sbr.rel (0) target = $region5
    $region4: #{tpu_custom_call.1} parent=1 // pred_region
      %s15 = ssub.s32 3328, 3328
      %16 = vsyncadd [#allocation4], %s15
      %s17 = sshll.u32 [#allocation3], 4
      %s18 = int_to_ptr.vmem [resolvable:$true] %s17
      %23 = dma.hbm_to_vmem [thread:$0]  %s0, 3328, %s18, [#allocation4], 256, 256, 16
    $region5: #{tpu_custom_call.1} parent=1 // pred_fallthru
      _
    // Predicated region
    $region6: #{tpu_custom_call.1} parent=1 // pred_check
      _
    $region7: #{tpu_custom_call.1} parent=1 // pred_check_branch
      %25 = sbr.rel (0) target = $region9
    $region8: #{tpu_custom_call.1} parent=1 // pred_region
      %s27 = ssub.s32 16, 16
      %28 = vsyncadd [#allocation6], %s27
      %s30 = sshll.u32 %s1, 4
      %s31 = int_to_ptr.vmem [resolvable:$true] %s30
      %33 = dma.vmem_to_smem %s31, 16, [#allocation7], [#allocation6]
    $region9: #{tpu_custom_call.1} parent=1 // pred_fallthru
      _
    // Predicated region
    $region10: #{tpu_custom_call.1} parent=1 // pred_check
      _
    $region11: #{tpu_custom_call.1} parent=1 // pred_check_branch
      %35 = sbr.rel (0) target = $region13
    $region12: #{tpu_custom_call.1} parent=1 // pred_region
      %s37 = ssub.s32 256, 256
      %38 = vsyncadd [#allocation9], %s37
      %s39 = sshll.u32 [#allocation8], 4
      %s40 = int_to_ptr.vmem [resolvable:$true] %s39
      %45 = dma.hbm_to_vmem [thread:$0]  %s2, 256, %s40, [#allocation9], 128, 128, 8
    $region13: #{tpu_custom_call.1} parent=1 // pred_fallthru
      _
    // Predicated region
    $region14: #{tpu_custom_call.1} parent=1 // pred_check
      _
    $region15: #{tpu_custom_call.1} parent=1 // pred_check_branch
      %47 = sbr.rel (0) target = $region17
    $region16: #{tpu_custom_call.1} parent=1 // pred_region
      %48 = dma.done [#allocation4], 3328
    $region17: #{tpu_custom_call.1} parent=1 // pred_fallthru
      _
    // Predicated region
    $region18: #{tpu_custom_call.1} parent=1 // pred_check
      _
    $region19: #{tpu_custom_call.1} parent=1 // pred_check_branch
      %50 = sbr.rel (0) target = $region21
    $region20: #{tpu_custom_call.1} parent=1 // pred_region
      %51 = dma.done [#allocation6], 16
    $region21: #{tpu_custom_call.1} parent=1 // pred_fallthru
      _
    // Predicated region
    $region22: #{tpu_custom_call.1} parent=1 // pred_check
      _
    $region23: #{tpu_custom_call.1} parent=1 // pred_check_branch
      %53 = sbr.rel (0) target = $region25
    $region24: #{tpu_custom_call.1} parent=1 // pred_region
      %54 = dma.done [#allocation9], 256
    $region25: #{tpu_custom_call.1} parent=1 // pred_fallthru
      _
    %55 = sfence
    %56 = vst [vmem:[#allocation2] sm:$0x3] 0.0
    %57 = vst [vmem:[#allocation2 + $0x8] sm:$0x3] 0.0
    %58 = vst [vmem:[#allocation2 + $0x6] sm:$0x3] 0.0
    %59 = vst [vmem:[#allocation2 + $0xe] sm:$0x3] 0.0
    %v60 = vld [vmem:[#allocation8] sm:$0xff]
    %v61 = vld [vmem:[#allocation8 + $0x8] sm:$0xff]
    %v64 = vcombine.high %v60, %v60
    %v65 = vcombine.high %v61, %v61
    %vm68 = vcmask 1043456
    %v69 = vsel %vm68, %v60, -inf
    %v70 = vrot.slane %v69, 4
    %v71 = vmax.f32 %v69, %v70
    %v72 = vrot.slane %v71, 2
    %v73 = vmax.f32 %v71, %v72
    %v74 = vrot.slane %v73, 1
    %v75 = vmax.f32 %v73, %v74
    %v76 = vsel %vm68, %v64, -inf
    %v77 = vrot.slane %v76, 4
    %v78 = vmax.f32 %v76, %v77
    %v79 = vrot.slane %v78, 2
    %v80 = vmax.f32 %v78, %v79
    %v81 = vrot.slane %v80, 1
    %v82 = vmax.f32 %v80, %v81
    %v83 = vsel %vm68, %v61, -inf
    %v84 = vrot.slane %v83, 4
    %v85 = vmax.f32 %v83, %v84
    %v86 = vrot.slane %v85, 2
    %v87 = vmax.f32 %v85, %v86
    %v88 = vrot.slane %v87, 1
    %v89 = vmax.f32 %v87, %v88
    %v90 = vsel %vm68, %v65, -inf
    %v91 = vrot.slane %v90, 4
    %v92 = vmax.f32 %v90, %v91
    %v93 = vrot.slane %v92, 2
    %v94 = vmax.f32 %v92, %v93
    %v95 = vrot.slane %v94, 1
    %v96 = vmax.f32 %v94, %v95
    %v101 = vcombine.low %v75, %v82
    %v103 = vunpack.c.l.s4 1983009808
    %v104 = vunpack.c.0.s8 %v103
    %v105 = vlaneseq
    %v106 = vshrl.u32 %v105, 7
    %v107 = vsub.s32 %v104, %v106
    %v108 = vrot.slane %v101, %v107
    %v109 = vcombine.low %v89, %v96
    %v111 = vunpack.c.l.s4 1983009808
    %v112 = vunpack.c.0.s8 %v111
    %v113 = vlaneseq
    %v114 = vshrl.u32 %v113, 7
    %v115 = vsub.s32 %v112, %v114
    %v116 = vrot.slane %v109, %v115
    %vm117 = vcmask 1044484
    %v118 = vsel %vm117, %v108, %v108
    %vm119 = vcmask 1046534
    %v120 = vsel %vm119, %v108, %v118
    %v121 = vrot.slane %v116, 7
    %vm122 = vcmask 1041409
    %v123 = vsel %vm122, %v121, %v120
    %vm124 = vcmask 1043459
    %v125 = vsel %vm124, %v121, %v123
    %vm126 = vcmask 1045509
    %v127 = vsel %vm126, %v121, %v125
    %vm128 = vcmask 1047559
    %v129 = vsel %vm128, %v121, %v127
    %131 = vst [vmem:[#allocation2 + $0x2] sm:$0xf] %v129
    %v132 = vsel %vm68, %v60, 0.0
    %v133 = vrot.slane %v132, 4
    %v134 = vadd.f32 %v132, %v133
    %v135 = vrot.slane %v134, 2
    %v136 = vadd.f32 %v134, %v135
    %v137 = vrot.slane %v136, 1
    %v138 = vadd.f32 %v136, %v137
    %v139 = vsel %vm68, %v64, 0.0
    %v140 = vrot.slane %v139, 4
    %v141 = vadd.f32 %v139, %v140
    %v142 = vrot.slane %v141, 2
    %v143 = vadd.f32 %v141, %v142
    %v144 = vrot.slane %v143, 1
    %v145 = vadd.f32 %v143, %v144
    %v146 = vsel %vm68, %v61, 0.0
    %v147 = vrot.slane %v146, 4
    %v148 = vadd.f32 %v146, %v147
    %v149 = vrot.slane %v148, 2
    %v150 = vadd.f32 %v148, %v149
    %v151 = vrot.slane %v150, 1
    %v152 = vadd.f32 %v150, %v151
    %v153 = vsel %vm68, %v65, 0.0
    %v154 = vrot.slane %v153, 4
    %v155 = vadd.f32 %v153, %v154
    %v156 = vrot.slane %v155, 2
    %v157 = vadd.f32 %v155, %v156
    %v158 = vrot.slane %v157, 1
    %v159 = vadd.f32 %v157, %v158
    %v160 = vmul.f32 %v138, 0.25
    %v161 = vmul.f32 %v145, 0.25
    %v162 = vmul.f32 %v152, 0.25
    %v163 = vmul.f32 %v159, 0.25
    %v168 = vcombine.low %v160, %v161
    %v170 = vunpack.c.l.s4 1983009808
    %v171 = vunpack.c.0.s8 %v170
    %v172 = vlaneseq
    %v173 = vshrl.u32 %v172, 7
    %v174 = vsub.s32 %v171, %v173
    %v175 = vrot.slane %v168, %v174
    %v176 = vcombine.low %v162, %v163
    %v178 = vunpack.c.l.s4 1983009808
    %v179 = vunpack.c.0.s8 %v178
    %v180 = vlaneseq
    %v181 = vshrl.u32 %v180, 7
    %v182 = vsub.s32 %v179, %v181
    %v183 = vrot.slane %v176, %v182
    %v184 = vsel %vm117, %v175, %v175
    %v185 = vsel %vm119, %v175, %v184
    %v186 = vrot.slane %v183, 7
    %v187 = vsel %vm122, %v186, %v185
    %v188 = vsel %vm124, %v186, %v187
    %v189 = vsel %vm126, %v186, %v188
    %v190 = vsel %vm128, %v186, %v189
    %s192 = scalar_lea.vmem [#allocation2], 8
    %193 = vst [vmem:[%s192 + $0x2] sm:$0xf] %v190
    %v194 = vld [vmem:[#allocation2] sm:$0x3f]
    %v195 = vld [vmem:[#allocation3] ss:$8 sm:$0x3]
    %v197 = vlaneseq
    %v198 = vshrl.u32 %v197, 7
    %v199 = vsub.s32 0, %v198
    %v200 = vrot.slane %v195, %v199
    %v201 = vlaneseq
    %v202 = vshrl.u32 %v201, 7
    %v203 = vsub.s32 1, %v202
    %v204 = vrot.slane %v195, %v203
    %v205 = vcombine.low %v200, %v204
    %v207 = vunpack.c.l.s4 1983009808
    %v208 = vunpack.c.0.s8 %v207
    %v209 = vlaneseq
    %v210 = vshrl.u32 %v209, 7
    %v211 = vsub.s32 %v208, %v210
    %v212 = vrot.slane %v205, %v211
    %213 = vrot.lane.b32.xlu0 %v212, 77
    %v214 = vpop.permute.xlu0 %213
    %v215 = vrot.slane %v214, 6
    %vm216 = vcmask 629760
    %v217 = vsel %vm216, %v215, %v214
    %v219 = vmul.f32 %v194, %v217
    %v220 = vadd.f32 %v219, 0.0
    %s221 = scalar_lea.vmem [#allocation3], 1
    %v222 = vld [vmem:[%s221] ss:$8 sm:$0x3]
    %v224 = vlaneseq
    %v225 = vshrl.u32 %v224, 7
    %v226 = vsub.s32 0, %v225
    %v227 = vrot.slane %v222, %v226
    %v228 = vlaneseq
    %v229 = vshrl.u32 %v228, 7
    %v230 = vsub.s32 1, %v229
    %v231 = vrot.slane %v222, %v230
    %v232 = vcombine.low %v227, %v231
    %v234 = vunpack.c.l.s4 1983009808
    %v235 = vunpack.c.0.s8 %v234
    %v236 = vlaneseq
    %v237 = vshrl.u32 %v236, 7
    %v238 = vsub.s32 %v235, %v237
    %v239 = vrot.slane %v232, %v238
    %240 = vrot.lane.b32.xlu0 %v239, 78
    %v241 = vpop.permute.xlu0 %240
    %v242 = vrot.slane %v241, 6
    %vm243 = vcmask 637952
    %v244 = vsel %vm243, %v242, %v241
    %v246 = vmul.f32 %v194, %v244
    %248 = vrot.lane.b32.xlu0 %v246, 127
    %v249 = vpop.permute.xlu0 %248
    %v250 = vrot.slane %v249, 2
    %vm251 = vcmask 1039360
    %v252 = vsel %vm251, %v249, %v250
    %v254 = vadd.f32 %v220, %v252
    %s255 = scalar_lea.vmem [#allocation3], 2
    %v256 = vld [vmem:[%s255] ss:$8 sm:$0x3]
    %v258 = vlaneseq
    %v259 = vshrl.u32 %v258, 7
    %v260 = vsub.s32 0, %v259
    %v261 = vrot.slane %v256, %v260
    %v262 = vlaneseq
    %v263 = vshrl.u32 %v262, 7
    %v264 = vsub.s32 1, %v263
    %v265 = vrot.slane %v256, %v264
    %v266 = vcombine.low %v261, %v265
    %v268 = vunpack.c.l.s4 1983009808
    %v269 = vunpack.c.0.s8 %v268
    %v270 = vlaneseq
    %v271 = vshrl.u32 %v270, 7
    %v272 = vsub.s32 %v269, %v271
    %v273 = vrot.slane %v266, %v272
    %274 = vrot.lane.b32.xlu0 %v273, 79
    %v275 = vpop.permute.xlu0 %274
    %v276 = vrot.slane %v275, 6
    %vm277 = vcmask 646144
    %v278 = vsel %vm277, %v276, %v275
    %v280 = vmul.f32 %v194, %v278
    %282 = vrot.lane.b32.xlu0 %v280, 126
    %v283 = vpop.permute.xlu0 %282
    %v284 = vrot.slane %v283, 2
    %vm285 = vcmask 1031168
    %v286 = vsel %vm285, %v283, %v284
    %v288 = vadd.f32 %v254, %v286
    %s289 = scalar_lea.vmem [#allocation3], 3
    %v290 = vld [vmem:[%s289] ss:$8 sm:$0x3]
    %v292 = vlaneseq
    %v293 = vshrl.u32 %v292, 7
    %v294 = vsub.s32 0, %v293
    %v295 = vrot.slane %v290, %v294
    %v296 = vlaneseq
    %v297 = vshrl.u32 %v296, 7
    %v298 = vsub.s32 1, %v297
    %v299 = vrot.slane %v290, %v298
    %v300 = vcombine.low %v295, %v299
    %v302 = vunpack.c.l.s4 1983009808
    %v303 = vunpack.c.0.s8 %v302
    %v304 = vlaneseq
    %v305 = vshrl.u32 %v304, 7
    %v306 = vsub.s32 %v303, %v305
    %v307 = vrot.slane %v300, %v306
    %308 = vrot.lane.b32.xlu0 %v307, 80
    %v309 = vpop.permute.xlu0 %308
    %v310 = vrot.slane %v309, 6
    %vm311 = vcmask 654336
    %v312 = vsel %vm311, %v310, %v309
    %v314 = vmul.f32 %v194, %v312
    %316 = vrot.lane.b32.xlu0 %v314, 125
    %v317 = vpop.permute.xlu0 %316
    %v318 = vrot.slane %v317, 2
    %vm319 = vcmask 1022976
    %v320 = vsel %vm319, %v317, %v318
    %v322 = vadd.f32 %v288, %v320
    %s323 = scalar_lea.vmem [#allocation3], 4
    %v324 = vld [vmem:[%s323] ss:$8 sm:$0x3]
    %v326 = vlaneseq
    %v327 = vshrl.u32 %v326, 7
    %v328 = vsub.s32 0, %v327
    %v329 = vrot.slane %v324, %v328
    %v330 = vlaneseq
    %v331 = vshrl.u32 %v330, 7
    %v332 = vsub.s32 1, %v331
    %v333 = vrot.slane %v324, %v332
    %v334 = vcombine.low %v329, %v333
    %v336 = vunpack.c.l.s4 1983009808
    %v337 = vunpack.c.0.s8 %v336
    %v338 = vlaneseq
    %v339 = vshrl.u32 %v338, 7
    %v340 = vsub.s32 %v337, %v339
    %v341 = vrot.slane %v334, %v340
    %342 = vrot.lane.b32.xlu0 %v341, 81
    %v343 = vpop.permute.xlu0 %342
    %v344 = vrot.slane %v343, 6
    %vm345 = vcmask 662528
    %v346 = vsel %vm345, %v344, %v343
    %v348 = vmul.f32 %v194, %v346
    %350 = vrot.lane.b32.xlu0 %v348, 124
    %v351 = vpop.permute.xlu0 %350
    %v352 = vrot.slane %v351, 2
    %vm353 = vcmask 1014784
    %v354 = vsel %vm353, %v351, %v352
    %v356 = vadd.f32 %v322, %v354
    %s357 = scalar_lea.vmem [#allocation3], 5
    %v358 = vld [vmem:[%s357] ss:$8 sm:$0x3]
    %v360 = vlaneseq
    %v361 = vshrl.u32 %v360, 7
    %v362 = vsub.s32 0, %v361
    %v363 = vrot.slane %v358, %v362
    %v364 = vlaneseq
    %v365 = vshrl.u32 %v364, 7
    %v366 = vsub.s32 1, %v365
    %v367 = vrot.slane %v358, %v366
    %v368 = vcombine.low %v363, %v367
    %v370 = vunpack.c.l.s4 1983009808
    %v371 = vunpack.c.0.s8 %v370
    %v372 = vlaneseq
    %v373 = vshrl.u32 %v372, 7
    %v374 = vsub.s32 %v371, %v373
    %v375 = vrot.slane %v368, %v374
    %376 = vrot.lane.b32.xlu0 %v375, 82
    %v377 = vpop.permute.xlu0 %376
    %v378 = vrot.slane %v377, 6
    %vm379 = vcmask 670720
    %v380 = vsel %vm379, %v378, %v377
    %v382 = vmul.f32 %v194, %v380
    %384 = vrot.lane.b32.xlu0 %v382, 123
    %v385 = vpop.permute.xlu0 %384
    %v386 = vrot.slane %v385, 2
    %vm387 = vcmask 1006592
    %v388 = vsel %vm387, %v385, %v386
    %v390 = vadd.f32 %v356, %v388
    %s391 = scalar_lea.vmem [#allocation3], 6
    %v392 = vld [vmem:[%s391] ss:$8 sm:$0x3]
    %v394 = vlaneseq
    %v395 = vshrl.u32 %v394, 7
    %v396 = vsub.s32 0, %v395
    %v397 = vrot.slane %v392, %v396
    %v398 = vlaneseq
    %v399 = vshrl.u32 %v398, 7
    %v400 = vsub.s32 1, %v399
    %v401 = vrot.slane %v392, %v400
    %v402 = vcombine.low %v397, %v401
    %v404 = vunpack.c.l.s4 1983009808
    %v405 = vunpack.c.0.s8 %v404
    %v406 = vlaneseq
    %v407 = vshrl.u32 %v406, 7
    %v408 = vsub.s32 %v405, %v407
    %v409 = vrot.slane %v402, %v408
    %410 = vrot.lane.b32.xlu0 %v409, 83
    %v411 = vpop.permute.xlu0 %410
    %v412 = vrot.slane %v411, 6
    %vm413 = vcmask 678912
    %v414 = vsel %vm413, %v412, %v411
    %v416 = vmul.f32 %v194, %v414
    %418 = vrot.lane.b32.xlu0 %v416, 122
    %v419 = vpop.permute.xlu0 %418
    %v420 = vrot.slane %v419, 2
    %vm421 = vcmask 998400
    %v422 = vsel %vm421, %v419, %v420
    %v424 = vadd.f32 %v390, %v422
    %s425 = scalar_lea.vmem [#allocation3], 7
    %v426 = vld [vmem:[%s425] ss:$8 sm:$0x3]
    %v428 = vlaneseq
    %v429 = vshrl.u32 %v428, 7
    %v430 = vsub.s32 0, %v429
    %v431 = vrot.slane %v426, %v430
    %v432 = vlaneseq
    %v433 = vshrl.u32 %v432, 7
    %v434 = vsub.s32 1, %v433
    %v435 = vrot.slane %v426, %v434
    %v436 = vcombine.low %v431, %v435
    %v438 = vunpack.c.l.s4 1983009808
    %v439 = vunpack.c.0.s8 %v438
    %v440 = vlaneseq
    %v441 = vshrl.u32 %v440, 7
    %v442 = vsub.s32 %v439, %v441
    %v443 = vrot.slane %v436, %v442
    %444 = vrot.lane.b32.xlu0 %v443, 93
    %v445 = vpop.permute.xlu0 %444
    %v446 = vrot.slane %v445, 6
    %vm447 = vcmask 760832
    %v448 = vsel %vm447, %v446, %v445
    %v450 = vmul.f32 %v194, %v448
    %452 = vrot.lane.b32.xlu0 %v450, 112
    %v453 = vpop.permute.xlu0 %452
    %v454 = vrot.slane %v453, 2
    %vm455 = vcmask 916480
    %v456 = vsel %vm455, %v453, %v454
    %v458 = vadd.f32 %v424, %v456
    %s459 = scalar_lea.vmem [#allocation3], 16
    %v460 = vld [vmem:[%s459] ss:$8 sm:$0x3]
    %v462 = vlaneseq
    %v463 = vshrl.u32 %v462, 7
    %v464 = vsub.s32 0, %v463
    %v465 = vrot.slane %v460, %v464
    %v466 = vlaneseq
    %v467 = vshrl.u32 %v466, 7
    %v468 = vsub.s32 1, %v467
    %v469 = vrot.slane %v460, %v468
    %v470 = vcombine.low %v465, %v469
    %v472 = vunpack.c.l.s4 1983009808
    %v473 = vunpack.c.0.s8 %v472
    %v474 = vlaneseq
    %v475 = vshrl.u32 %v474, 7
    %v476 = vsub.s32 %v473, %v475
    %v477 = vrot.slane %v470, %v476
    %478 = vrot.lane.b32.xlu0 %v477, 94
    %v479 = vpop.permute.xlu0 %478
    %v480 = vrot.slane %v479, 6
    %vm481 = vcmask 769024
    %v482 = vsel %vm481, %v480, %v479
    %v484 = vmul.f32 %v194, %v482
    %486 = vrot.lane.b32.xlu0 %v484, 111
    %v487 = vpop.permute.xlu0 %486
    %v488 = vrot.slane %v487, 2
    %vm489 = vcmask 908288
    %v490 = vsel %vm489, %v487, %v488
    %v492 = vadd.f32 %v458, %v490
    %s493 = scalar_lea.vmem [#allocation3], 17
    %v494 = vld [vmem:[%s493] ss:$8 sm:$0x3]
    %v496 = vlaneseq
    %v497 = vshrl.u32 %v496, 7
    %v498 = vsub.s32 0, %v497
    %v499 = vrot.slane %v494, %v498
    %v500 = vlaneseq
    %v501 = vshrl.u32 %v500, 7
    %v502 = vsub.s32 1, %v501
    %v503 = vrot.slane %v494, %v502
    %v504 = vcombine.low %v499, %v503
    %v506 = vunpack.c.l.s4 1983009808
    %v507 = vunpack.c.0.s8 %v506
    %v508 = vlaneseq
    %v509 = vshrl.u32 %v508, 7
    %v510 = vsub.s32 %v507, %v509
    %v511 = vrot.slane %v504, %v510
    %512 = vrot.lane.b32.xlu0 %v511, 95
    %v513 = vpop.permute.xlu0 %512
    %v514 = vrot.slane %v513, 6
    %vm515 = vcmask 777216
    %v516 = vsel %vm515, %v514, %v513
    %v518 = vmul.f32 %v194, %v516
    %520 = vrot.lane.b32.xlu0 %v518, 110
    %v521 = vpop.permute.xlu0 %520
    %v522 = vrot.slane %v521, 2
    %vm523 = vcmask 900096
    %v524 = vsel %vm523, %v521, %v522
    %v526 = vadd.f32 %v492, %v524
    %s527 = scalar_lea.vmem [#allocation3], 18
    %v528 = vld [vmem:[%s527] ss:$8 sm:$0x3]
    %v530 = vlaneseq
    %v531 = vshrl.u32 %v530, 7
    %v532 = vsub.s32 0, %v531
    %v533 = vrot.slane %v528, %v532
    %v534 = vlaneseq
    %v535 = vshrl.u32 %v534, 7
    %v536 = vsub.s32 1, %v535
    %v537 = vrot.slane %v528, %v536
    %v538 = vcombine.low %v533, %v537
    %v540 = vunpack.c.l.s4 1983009808
    %v541 = vunpack.c.0.s8 %v540
    %v542 = vlaneseq
    %v543 = vshrl.u32 %v542, 7
    %v544 = vsub.s32 %v541, %v543
    %v545 = vrot.slane %v538, %v544
    %546 = vrot.lane.b32.xlu0 %v545, 96
    %v547 = vpop.permute.xlu0 %546
    %v548 = vrot.slane %v547, 6
    %vm549 = vcmask 785408
    %v550 = vsel %vm549, %v548, %v547
    %v552 = vmul.f32 %v194, %v550
    %554 = vrot.lane.b32.xlu0 %v552, 109
    %v555 = vpop.permute.xlu0 %554
    %v556 = vrot.slane %v555, 2
    %vm557 = vcmask 891904
    %v558 = vsel %vm557, %v555, %v556
    %v560 = vadd.f32 %v526, %v558
    %s561 = scalar_lea.vmem [#allocation3], 19
    %v562 = vld [vmem:[%s561] ss:$8 sm:$0x3]
    %v564 = vlaneseq
    %v565 = vshrl.u32 %v564, 7
    %v566 = vsub.s32 0, %v565
    %v567 = vrot.slane %v562, %v566
    %v568 = vlaneseq
    %v569 = vshrl.u32 %v568, 7
    %v570 = vsub.s32 1, %v569
    %v571 = vrot.slane %v562, %v570
    %v572 = vcombine.low %v567, %v571
    %v574 = vunpack.c.l.s4 1983009808
    %v575 = vunpack.c.0.s8 %v574
    %v576 = vlaneseq
    %v577 = vshrl.u32 %v576, 7
    %v578 = vsub.s32 %v575, %v577
    %v579 = vrot.slane %v572, %v578
    %580 = vrot.lane.b32.xlu0 %v579, 97
    %v581 = vpop.permute.xlu0 %580
    %v582 = vrot.slane %v581, 6
    %vm583 = vcmask 793600
    %v584 = vsel %vm583, %v582, %v581
    %v586 = vmul.f32 %v194, %v584
    %588 = vrot.lane.b32.xlu0 %v586, 108
    %v589 = vpop.permute.xlu0 %588
    %v590 = vrot.slane %v589, 2
    %vm591 = vcmask 883712
    %v592 = vsel %vm591, %v589, %v590
    %v594 = vadd.f32 %v560, %v592
    %s595 = scalar_lea.vmem [#allocation3], 20
    %v596 = vld [vmem:[%s595] ss:$8 sm:$0x3]
    %v598 = vlaneseq
    %v599 = vshrl.u32 %v598, 7
    %v600 = vsub.s32 0, %v599
    %v601 = vrot.slane %v596, %v600
    %v602 = vlaneseq
    %v603 = vshrl.u32 %v602, 7
    %v604 = vsub.s32 1, %v603
    %v605 = vrot.slane %v596, %v604
    %v606 = vcombine.low %v601, %v605
    %v608 = vunpack.c.l.s4 1983009808
    %v609 = vunpack.c.0.s8 %v608
    %v610 = vlaneseq
    %v611 = vshrl.u32 %v610, 7
    %v612 = vsub.s32 %v609, %v611
    %v613 = vrot.slane %v606, %v612
    %614 = vrot.lane.b32.xlu0 %v613, 98
    %v615 = vpop.permute.xlu0 %614
    %v616 = vrot.slane %v615, 6
    %vm617 = vcmask 801792
    %v618 = vsel %vm617, %v616, %v615
    %v620 = vmul.f32 %v194, %v618
    %622 = vrot.lane.b32.xlu0 %v620, 107
    %v623 = vpop.permute.xlu0 %622
    %v624 = vrot.slane %v623, 2
    %vm625 = vcmask 875520
    %v626 = vsel %vm625, %v623, %v624
    %v628 = vadd.f32 %v594, %v626
    %s629 = scalar_lea.vmem [#allocation3], 21
    %v630 = vld [vmem:[%s629] ss:$8 sm:$0x3]
    %v632 = vlaneseq
    %v633 = vshrl.u32 %v632, 7
    %v634 = vsub.s32 0, %v633
    %v635 = vrot.slane %v630, %v634
    %v636 = vlaneseq
    %v637 = vshrl.u32 %v636, 7
    %v638 = vsub.s32 1, %v637
    %v639 = vrot.slane %v630, %v638
    %v640 = vcombine.low %v635, %v639
    %v642 = vunpack.c.l.s4 1983009808
    %v643 = vunpack.c.0.s8 %v642
    %v644 = vlaneseq
    %v645 = vshrl.u32 %v644, 7
    %v646 = vsub.s32 %v643, %v645
    %v647 = vrot.slane %v640, %v646
    %648 = vrot.lane.b32.xlu0 %v647, 99
    %v649 = vpop.permute.xlu0 %648
    %v650 = vrot.slane %v649, 6
    %vm651 = vcmask 809984
    %v652 = vsel %vm651, %v650, %v649
    %v654 = vmul.f32 %v194, %v652
    %656 = vrot.lane.b32.xlu0 %v654, 106
    %v657 = vpop.permute.xlu0 %656
    %v658 = vrot.slane %v657, 2
    %vm659 = vcmask 867328
    %v660 = vsel %vm659, %v657, %v658
    %v662 = vadd.f32 %v628, %v660
    %s663 = scalar_lea.vmem [#allocation3], 22
    %v664 = vld [vmem:[%s663] ss:$8 sm:$0x3]
    %v666 = vlaneseq
    %v667 = vshrl.u32 %v666, 7
    %v668 = vsub.s32 0, %v667
    %v669 = vrot.slane %v664, %v668
    %v670 = vlaneseq
    %v671 = vshrl.u32 %v670, 7
    %v672 = vsub.s32 1, %v671
    %v673 = vrot.slane %v664, %v672
    %v674 = vcombine.low %v669, %v673
    %v676 = vunpack.c.l.s4 1983009808
    %v677 = vunpack.c.0.s8 %v676
    %v678 = vlaneseq
    %v679 = vshrl.u32 %v678, 7
    %v680 = vsub.s32 %v677, %v679
    %v681 = vrot.slane %v674, %v680
    %682 = vrot.lane.b32.xlu0 %v681, 109
    %v683 = vpop.permute.xlu0 %682
    %v684 = vrot.slane %v683, 6
    %v685 = vsel %vm557, %v684, %v683
    %v687 = vmul.f32 %v194, %v685
    %689 = vrot.lane.b32.xlu0 %v687, 96
    %v690 = vpop.permute.xlu0 %689
    %v691 = vrot.slane %v690, 2
    %v692 = vsel %vm549, %v690, %v691
    %v694 = vadd.f32 %v662, %v692
    %s695 = scalar_lea.vmem [#allocation3], 23
    %v696 = vld [vmem:[%s695] ss:$8 sm:$0x3]
    %v698 = vlaneseq
    %v699 = vshrl.u32 %v698, 7
    %v700 = vsub.s32 0, %v699
    %v701 = vrot.slane %v696, %v700
    %v702 = vlaneseq
    %v703 = vshrl.u32 %v702, 7
    %v704 = vsub.s32 1, %v703
    %v705 = vrot.slane %v696, %v704
    %v706 = vcombine.low %v701, %v705
    %v708 = vunpack.c.l.s4 1983009808
    %v709 = vunpack.c.0.s8 %v708
    %v710 = vlaneseq
    %v711 = vshrl.u32 %v710, 7
    %v712 = vsub.s32 %v709, %v711
    %v713 = vrot.slane %v706, %v712
    %714 = vrot.lane.b32.xlu0 %v713, 110
    %v715 = vpop.permute.xlu0 %714
    %v716 = vrot.slane %v715, 6
    %v717 = vsel %vm523, %v716, %v715
    %v719 = vmul.f32 %v194, %v717
    %721 = vrot.lane.b32.xlu0 %v719, 95
    %v722 = vpop.permute.xlu0 %721
    %v723 = vrot.slane %v722, 2
    %v724 = vsel %vm515, %v722, %v723
    %v726 = vadd.f32 %v694, %v724
    %s727 = scalar_lea.vmem [#allocation3], 32
    %v728 = vld [vmem:[%s727] ss:$8 sm:$0x3]
    %v730 = vlaneseq
    %v731 = vshrl.u32 %v730, 7
    %v732 = vsub.s32 0, %v731
    %v733 = vrot.slane %v728, %v732
    %v734 = vlaneseq
    %v735 = vshrl.u32 %v734, 7
    %v736 = vsub.s32 1, %v735
    %v737 = vrot.slane %v728, %v736
    %v738 = vcombine.low %v733, %v737
    %v740 = vunpack.c.l.s4 1983009808
    %v741 = vunpack.c.0.s8 %v740
    %v742 = vlaneseq
    %v743 = vshrl.u32 %v742, 7
    %v744 = vsub.s32 %v741, %v743
    %v745 = vrot.slane %v738, %v744
    %746 = vrot.lane.b32.xlu0 %v745, 111
    %v747 = vpop.permute.xlu0 %746
    %v748 = vrot.slane %v747, 6
    %v749 = vsel %vm489, %v748, %v747
    %v751 = vmul.f32 %v194, %v749
    %753 = vrot.lane.b32.xlu0 %v751, 94
    %v754 = vpop.permute.xlu0 %753
    %v755 = vrot.slane %v754, 2
    %v756 = vsel %vm481, %v754, %v755
    %v758 = vadd.f32 %v726, %v756
    %s759 = scalar_lea.vmem [#allocation3], 33
    %v760 = vld [vmem:[%s759] ss:$8 sm:$0x3]
    %v762 = vlaneseq
    %v763 = vshrl.u32 %v762, 7
    %v764 = vsub.s32 0, %v763
    %v765 = vrot.slane %v760, %v764
    %v766 = vlaneseq
    %v767 = vshrl.u32 %v766, 7
    %v768 = vsub.s32 1, %v767
    %v769 = vrot.slane %v760, %v768
    %v770 = vcombine.low %v765, %v769
    %v772 = vunpack.c.l.s4 1983009808
    %v773 = vunpack.c.0.s8 %v772
    %v774 = vlaneseq
    %v775 = vshrl.u32 %v774, 7
    %v776 = vsub.s32 %v773, %v775
    %v777 = vrot.slane %v770, %v776
    %778 = vrot.lane.b32.xlu0 %v777, 112
    %v779 = vpop.permute.xlu0 %778
    %v780 = vrot.slane %v779, 6
    %v781 = vsel %vm455, %v780, %v779
    %v783 = vmul.f32 %v194, %v781
    %785 = vrot.lane.b32.xlu0 %v783, 93
    %v786 = vpop.permute.xlu0 %785
    %v787 = vrot.slane %v786, 2
    %v788 = vsel %vm447, %v786, %v787
    %v790 = vadd.f32 %v758, %v788
    %s791 = scalar_lea.vmem [#allocation3], 34
    %v792 = vld [vmem:[%s791] ss:$8 sm:$0x3]
    %v794 = vlaneseq
    %v795 = vshrl.u32 %v794, 7
    %v796 = vsub.s32 0, %v795
    %v797 = vrot.slane %v792, %v796
    %v798 = vlaneseq
    %v799 = vshrl.u32 %v798, 7
    %v800 = vsub.s32 1, %v799
    %v801 = vrot.slane %v792, %v800
    %v802 = vcombine.low %v797, %v801
    %v804 = vunpack.c.l.s4 1983009808
    %v805 = vunpack.c.0.s8 %v804
    %v806 = vlaneseq
    %v807 = vshrl.u32 %v806, 7
    %v808 = vsub.s32 %v805, %v807
    %v809 = vrot.slane %v802, %v808
    %810 = vrot.lane.b32.xlu0 %v809, 113
    %v811 = vpop.permute.xlu0 %810
    %v812 = vrot.slane %v811, 6
    %vm813 = vcmask 924672
    %v814 = vsel %vm813, %v812, %v811
    %v816 = vmul.f32 %v194, %v814
    %818 = vrot.lane.b32.xlu0 %v816, 92
    %v819 = vpop.permute.xlu0 %818
    %v820 = vrot.slane %v819, 2
    %vm821 = vcmask 752640
    %v822 = vsel %vm821, %v819, %v820
    %v824 = vadd.f32 %v790, %v822
    %s825 = scalar_lea.vmem [#allocation3], 35
    %v826 = vld [vmem:[%s825] ss:$8 sm:$0x3]
    %v828 = vlaneseq
    %v829 = vshrl.u32 %v828, 7
    %v830 = vsub.s32 0, %v829
    %v831 = vrot.slane %v826, %v830
    %v832 = vlaneseq
    %v833 = vshrl.u32 %v832, 7
    %v834 = vsub.s32 1, %v833
    %v835 = vrot.slane %v826, %v834
    %v836 = vcombine.low %v831, %v835
    %v838 = vunpack.c.l.s4 1983009808
    %v839 = vunpack.c.0.s8 %v838
    %v840 = vlaneseq
    %v841 = vshrl.u32 %v840, 7
    %v842 = vsub.s32 %v839, %v841
    %v843 = vrot.slane %v836, %v842
    %844 = vrot.lane.b32.xlu0 %v843, 114
    %v845 = vpop.permute.xlu0 %844
    %v846 = vrot.slane %v845, 6
    %vm847 = vcmask 932864
    %v848 = vsel %vm847, %v846, %v845
    %v850 = vmul.f32 %v194, %v848
    %852 = vrot.lane.b32.xlu0 %v850, 91
    %v853 = vpop.permute.xlu0 %852
    %v854 = vrot.slane %v853, 2
    %vm855 = vcmask 744448
    %v856 = vsel %vm855, %v853, %v854
    %v858 = vadd.f32 %v824, %v856
    %s859 = scalar_lea.vmem [#allocation3], 36
    %v860 = vld [vmem:[%s859] ss:$8 sm:$0x3]
    %v862 = vlaneseq
    %v863 = vshrl.u32 %v862, 7
    %v864 = vsub.s32 0, %v863
    %v865 = vrot.slane %v860, %v864
    %v866 = vlaneseq
    %v867 = vshrl.u32 %v866, 7
    %v868 = vsub.s32 1, %v867
    %v869 = vrot.slane %v860, %v868
    %v870 = vcombine.low %v865, %v869
    %v872 = vunpack.c.l.s4 1983009808
    %v873 = vunpack.c.0.s8 %v872
    %v874 = vlaneseq
    %v875 = vshrl.u32 %v874, 7
    %v876 = vsub.s32 %v873, %v875
    %v877 = vrot.slane %v870, %v876
    %878 = vrot.lane.b32.xlu0 %v877, 115
    %v879 = vpop.permute.xlu0 %878
    %v880 = vrot.slane %v879, 6
    %vm881 = vcmask 941056
    %v882 = vsel %vm881, %v880, %v879
    %v884 = vmul.f32 %v194, %v882
    %886 = vrot.lane.b32.xlu0 %v884, 90
    %v887 = vpop.permute.xlu0 %886
    %v888 = vrot.slane %v887, 2
    %vm889 = vcmask 736256
    %v890 = vsel %vm889, %v887, %v888
    %v892 = vadd.f32 %v858, %v890
    %v893 = vld [vmem:[#allocation2] sm:$0xff]
    %s894 = scalar_lea.vmem [#allocation3], 37
    %v895 = vld [vmem:[%s894] ss:$8 sm:$0x3]
    %v897 = vlaneseq
    %v898 = vshrl.u32 %v897, 7
    %v899 = vsub.s32 0, %v898
    %v900 = vrot.slane %v895, %v899
    %v901 = vlaneseq
    %v902 = vshrl.u32 %v901, 7
    %v903 = vsub.s32 1, %v902
    %v904 = vrot.slane %v895, %v903
    %v905 = vcombine.low %v900, %v904
    %v907 = vunpack.c.l.s4 1983009808
    %v908 = vunpack.c.0.s8 %v907
    %v909 = vlaneseq
    %v910 = vshrl.u32 %v909, 7
    %v911 = vsub.s32 %v908, %v910
    %v912 = vrot.slane %v905, %v911
    %913 = vrot.lane.b32.xlu0 %v912, 125
    %v914 = vpop.permute.xlu0 %913
    %v915 = vrot.slane %v914, 6
    %v916 = vsel %vm319, %v915, %v914
    %v918 = vmul.f32 %v893, %v916
    %920 = vrot.lane.b32.xlu0 %v918, 80
    %v921 = vpop.permute.xlu0 %920
    %v922 = vrot.slane %v921, 2
    %v923 = vsel %vm311, %v921, %v922
    %v925 = vadd.f32 %v892, %v923
    %s926 = scalar_lea.vmem [#allocation3], 38
    %v927 = vld [vmem:[%s926] ss:$8 sm:$0x3]
    %v929 = vlaneseq
    %v930 = vshrl.u32 %v929, 7
    %v931 = vsub.s32 0, %v930
    %v932 = vrot.slane %v927, %v931
    %v933 = vlaneseq
    %v934 = vshrl.u32 %v933, 7
    %v935 = vsub.s32 1, %v934
    %v936 = vrot.slane %v927, %v935
    %v937 = vcombine.low %v932, %v936
    %v939 = vunpack.c.l.s4 1983009808
    %v940 = vunpack.c.0.s8 %v939
    %v941 = vlaneseq
    %v942 = vshrl.u32 %v941, 7
    %v943 = vsub.s32 %v940, %v942
    %v944 = vrot.slane %v937, %v943
    %945 = vrot.lane.b32.xlu0 %v944, 126
    %v946 = vpop.permute.xlu0 %945
    %v947 = vrot.slane %v946, 6
    %v948 = vsel %vm285, %v947, %v946
    %v950 = vmul.f32 %v893, %v948
    %952 = vrot.lane.b32.xlu0 %v950, 79
    %v953 = vpop.permute.xlu0 %952
    %v954 = vrot.slane %v953, 2
    %v955 = vsel %vm277, %v953, %v954
    %v957 = vadd.f32 %v925, %v955
    %s958 = scalar_lea.vmem [#allocation3], 39
    %v959 = vld [vmem:[%s958] ss:$8 sm:$0x3]
    %v961 = vlaneseq
    %v962 = vshrl.u32 %v961, 7
    %v963 = vsub.s32 0, %v962
    %v964 = vrot.slane %v959, %v963
    %v965 = vlaneseq
    %v966 = vshrl.u32 %v965, 7
    %v967 = vsub.s32 1, %v966
    %v968 = vrot.slane %v959, %v967
    %v969 = vcombine.low %v964, %v968
    %v971 = vunpack.c.l.s4 1983009808
    %v972 = vunpack.c.0.s8 %v971
    %v973 = vlaneseq
    %v974 = vshrl.u32 %v973, 7
    %v975 = vsub.s32 %v972, %v974
    %v976 = vrot.slane %v969, %v975
    %977 = vrot.lane.b32.xlu0 %v976, 127
    %v978 = vpop.permute.xlu0 %977
    %v979 = vrot.slane %v978, 6
    %v980 = vsel %vm251, %v979, %v978
    %v982 = vmul.f32 %v893, %v980
    %984 = vrot.lane.b32.xlu0 %v982, 78
    %v985 = vpop.permute.xlu0 %984
    %v986 = vrot.slane %v985, 2
    %v987 = vsel %vm243, %v985, %v986
    %v989 = vadd.f32 %v957, %v987
    %s990 = scalar_lea.vmem [#allocation3], 48
    %v991 = vld [vmem:[%s990] ss:$8 sm:$0x3]
    %v993 = vlaneseq
    %v994 = vshrl.u32 %v993, 7
    %v995 = vsub.s32 0, %v994
    %v996 = vrot.slane %v991, %v995
    %v997 = vlaneseq
    %v998 = vshrl.u32 %v997, 7
    %v999 = vsub.s32 1, %v998
    %v1000 = vrot.slane %v991, %v999
    %v1002 = vrot.slane %v893, 2
    %v1004 = vcombine.low %v996, %v1000
    %v1006 = vunpack.c.l.s4 1983009808
    %v1007 = vunpack.c.0.s8 %v1006
    %v1008 = vlaneseq
    %v1009 = vshrl.u32 %v1008, 7
    %v1010 = vsub.s32 %v1007, %v1009
    %v1011 = vrot.slane %v1004, %v1010
    %v1013 = vmul.f32 %v1002, %v1011
    %1015 = vrot.lane.b32.xlu0 %v1013, 77
    %v1016 = vpop.permute.xlu0 %1015
    %v1017 = vrot.slane %v1016, 6
    %v1018 = vsel %vm216, %v1017, %v1016
    %v1020 = vadd.f32 %v989, %v1018
    %s1021 = scalar_lea.vmem [#allocation3], 49
    %v1022 = vld [vmem:[%s1021] ss:$8 sm:$0x3]
    %v1024 = vlaneseq
    %v1025 = vshrl.u32 %v1024, 7
    %v1026 = vsub.s32 0, %v1025
    %v1027 = vrot.slane %v1022, %v1026
    %v1028 = vlaneseq
    %v1029 = vshrl.u32 %v1028, 7
    %v1030 = vsub.s32 1, %v1029
    %v1031 = vrot.slane %v1022, %v1030
    %1032 = vrot.lane.b32.xlu0 %v893, 127
    %v1033 = vpop.permute.xlu0 %1032
    %v1034 = vrot.slane %v1033, 2
    %v1035 = vrot.slane %v1033, 4
    %v1036 = vsel %vm251, %v1034, %v1035
    %v1038 = vcombine.low %v1027, %v1031
    %v1040 = vunpack.c.l.s4 1983009808
    %v1041 = vunpack.c.0.s8 %v1040
    %v1042 = vlaneseq
    %v1043 = vshrl.u32 %v1042, 7
    %v1044 = vsub.s32 %v1041, %v1043
    %v1045 = vrot.slane %v1038, %v1044
    %v1047 = vmul.f32 %v1036, %v1045
    %1049 = vrot.lane.b32.xlu0 %v1047, 77
    %v1050 = vpop.permute.xlu0 %1049
    %v1051 = vrot.slane %v1050, 6
    %v1052 = vsel %vm216, %v1051, %v1050
    %v1054 = vadd.f32 %v1020, %v1052
    %s1055 = scalar_lea.vmem [#allocation3], 50
    %v1056 = vld [vmem:[%s1055] ss:$8 sm:$0x3]
    %v1058 = vlaneseq
    %v1059 = vshrl.u32 %v1058, 7
    %v1060 = vsub.s32 0, %v1059
    %v1061 = vrot.slane %v1056, %v1060
    %v1062 = vlaneseq
    %v1063 = vshrl.u32 %v1062, 7
    %v1064 = vsub.s32 1, %v1063
    %v1065 = vrot.slane %v1056, %v1064
    %1066 = vrot.lane.b32.xlu0 %v893, 126
    %v1067 = vpop.permute.xlu0 %1066
    %v1068 = vrot.slane %v1067, 2
    %v1069 = vrot.slane %v1067, 4
    %v1070 = vsel %vm285, %v1068, %v1069
    %v1072 = vcombine.low %v1061, %v1065
    %v1074 = vunpack.c.l.s4 1983009808
    %v1075 = vunpack.c.0.s8 %v1074
    %v1076 = vlaneseq
    %v1077 = vshrl.u32 %v1076, 7
    %v1078 = vsub.s32 %v1075, %v1077
    %v1079 = vrot.slane %v1072, %v1078
    %v1081 = vmul.f32 %v1070, %v1079
    %1083 = vrot.lane.b32.xlu0 %v1081, 77
    %v1084 = vpop.permute.xlu0 %1083
    %v1085 = vrot.slane %v1084, 6
    %v1086 = vsel %vm216, %v1085, %v1084
    %v1088 = vadd.f32 %v1054, %v1086
    %s1089 = scalar_lea.vmem [#allocation3], 51
    %v1090 = vld [vmem:[%s1089] ss:$8 sm:$0x3]
    %v1092 = vlaneseq
    %v1093 = vshrl.u32 %v1092, 7
    %v1094 = vsub.s32 0, %v1093
    %v1095 = vrot.slane %v1090, %v1094
    %v1096 = vlaneseq
    %v1097 = vshrl.u32 %v1096, 7
    %v1098 = vsub.s32 1, %v1097
    %v1099 = vrot.slane %v1090, %v1098
    %1100 = vrot.lane.b32.xlu0 %v893, 125
    %v1101 = vpop.permute.xlu0 %1100
    %v1102 = vrot.slane %v1101, 2
    %v1103 = vrot.slane %v1101, 4
    %v1104 = vsel %vm319, %v1102, %v1103
    %v1106 = vcombine.low %v1095, %v1099
    %v1108 = vunpack.c.l.s4 1983009808
    %v1109 = vunpack.c.0.s8 %v1108
    %v1110 = vlaneseq
    %v1111 = vshrl.u32 %v1110, 7
    %v1112 = vsub.s32 %v1109, %v1111
    %v1113 = vrot.slane %v1106, %v1112
    %v1115 = vmul.f32 %v1104, %v1113
    %1117 = vrot.lane.b32.xlu0 %v1115, 77
    %v1118 = vpop.permute.xlu0 %1117
    %v1119 = vrot.slane %v1118, 6
    %v1120 = vsel %vm216, %v1119, %v1118
    %v1122 = vadd.f32 %v1088, %v1120
    %v1123 = vld [vmem:[#allocation2 + $0x2] sm:$0x3f]
    %s1124 = scalar_lea.vmem [#allocation3], 52
    %v1125 = vld [vmem:[%s1124] ss:$8 sm:$0x3]
    %v1127 = vlaneseq
    %v1128 = vshrl.u32 %v1127, 7
    %v1129 = vsub.s32 0, %v1128
    %v1130 = vrot.slane %v1125, %v1129
    %v1131 = vlaneseq
    %v1132 = vshrl.u32 %v1131, 7
    %v1133 = vsub.s32 1, %v1132
    %v1134 = vrot.slane %v1125, %v1133
    %v1135 = vcombine.low %v1130, %v1134
    %v1137 = vunpack.c.l.s4 1983009808
    %v1138 = vunpack.c.0.s8 %v1137
    %v1139 = vlaneseq
    %v1140 = vshrl.u32 %v1139, 7
    %v1141 = vsub.s32 %v1138, %v1140
    %v1142 = vrot.slane %v1135, %v1141
    %1143 = vrot.lane.b32.xlu0 %v1142, 13
    %v1144 = vpop.permute.xlu0 %1143
    %v1145 = vrot.slane %v1144, 6
    %vm1146 = vcmask 105472
    %v1147 = vsel %vm1146, %v1145, %v1144
    %v1149 = vmul.f32 %v1123, %v1147
    %1151 = vrot.lane.b32.xlu0 %v1149, 64
    %v1152 = vpop.permute.xlu0 %1151
    %v1153 = vrot.slane %v1152, 6
    %vm1154 = vcmask 523264
    %v1155 = vsel %vm1154, %v1153, %v1152
    %v1157 = vadd.f32 %v1122, %v1155
    %s1158 = scalar_lea.vmem [#allocation3], 53
    %v1159 = vld [vmem:[%s1158] ss:$8 sm:$0x3]
    %v1161 = vlaneseq
    %v1162 = vshrl.u32 %v1161, 7
    %v1163 = vsub.s32 0, %v1162
    %v1164 = vrot.slane %v1159, %v1163
    %v1165 = vlaneseq
    %v1166 = vshrl.u32 %v1165, 7
    %v1167 = vsub.s32 1, %v1166
    %v1168 = vrot.slane %v1159, %v1167
    %v1169 = vcombine.low %v1164, %v1168
    %v1171 = vunpack.c.l.s4 1983009808
    %v1172 = vunpack.c.0.s8 %v1171
    %v1173 = vlaneseq
    %v1174 = vshrl.u32 %v1173, 7
    %v1175 = vsub.s32 %v1172, %v1174
    %v1176 = vrot.slane %v1169, %v1175
    %1177 = vrot.lane.b32.xlu0 %v1176, 14
    %v1178 = vpop.permute.xlu0 %1177
    %v1179 = vrot.slane %v1178, 6
    %vm1180 = vcmask 113664
    %v1181 = vsel %vm1180, %v1179, %v1178
    %v1183 = vmul.f32 %v1123, %v1181
    %1185 = vrot.lane.b32.xlu0 %v1183, 63
    %v1186 = vpop.permute.xlu0 %1185
    %v1187 = vrot.slane %v1186, 6
    %vm1188 = vcmask 515072
    %v1189 = vsel %vm1188, %v1187, %v1186
    %v1191 = vadd.f32 %v1157, %v1189
    %s1192 = scalar_lea.vmem [#allocation3], 54
    %v1193 = vld [vmem:[%s1192] ss:$8 sm:$0x3]
    %v1195 = vlaneseq
    %v1196 = vshrl.u32 %v1195, 7
    %v1197 = vsub.s32 0, %v1196
    %v1198 = vrot.slane %v1193, %v1197
    %v1199 = vlaneseq
    %v1200 = vshrl.u32 %v1199, 7
    %v1201 = vsub.s32 1, %v1200
    %v1202 = vrot.slane %v1193, %v1201
    %v1203 = vcombine.low %v1198, %v1202
    %v1205 = vunpack.c.l.s4 1983009808
    %v1206 = vunpack.c.0.s8 %v1205
    %v1207 = vlaneseq
    %v1208 = vshrl.u32 %v1207, 7
    %v1209 = vsub.s32 %v1206, %v1208
    %v1210 = vrot.slane %v1203, %v1209
    %1211 = vrot.lane.b32.xlu0 %v1210, 15
    %v1212 = vpop.permute.xlu0 %1211
    %v1213 = vrot.slane %v1212, 6
    %vm1214 = vcmask 121856
    %v1215 = vsel %vm1214, %v1213, %v1212
    %v1217 = vmul.f32 %v1123, %v1215
    %1219 = vrot.lane.b32.xlu0 %v1217, 62
    %v1220 = vpop.permute.xlu0 %1219
    %v1221 = vrot.slane %v1220, 6
    %vm1222 = vcmask 506880
    %v1223 = vsel %vm1222, %v1221, %v1220
    %v1225 = vadd.f32 %v1191, %v1223
    %s1226 = scalar_lea.vmem [#allocation3], 55
    %v1227 = vld [vmem:[%s1226] ss:$8 sm:$0x3]
    %v1229 = vlaneseq
    %v1230 = vshrl.u32 %v1229, 7
    %v1231 = vsub.s32 0, %v1230
    %v1232 = vrot.slane %v1227, %v1231
    %v1233 = vlaneseq
    %v1234 = vshrl.u32 %v1233, 7
    %v1235 = vsub.s32 1, %v1234
    %v1236 = vrot.slane %v1227, %v1235
    %v1237 = vcombine.low %v1232, %v1236
    %v1239 = vunpack.c.l.s4 1983009808
    %v1240 = vunpack.c.0.s8 %v1239
    %v1241 = vlaneseq
    %v1242 = vshrl.u32 %v1241, 7
    %v1243 = vsub.s32 %v1240, %v1242
    %v1244 = vrot.slane %v1237, %v1243
    %1245 = vrot.lane.b32.xlu0 %v1244, 16
    %v1246 = vpop.permute.xlu0 %1245
    %v1247 = vrot.slane %v1246, 6
    %vm1248 = vcmask 130048
    %v1249 = vsel %vm1248, %v1247, %v1246
    %v1251 = vmul.f32 %v1123, %v1249
    %1253 = vrot.lane.b32.xlu0 %v1251, 61
    %v1254 = vpop.permute.xlu0 %1253
    %v1255 = vrot.slane %v1254, 6
    %vm1256 = vcmask 498688
    %v1257 = vsel %vm1256, %v1255, %v1254
    %v1259 = vadd.f32 %v1225, %v1257
    %s1260 = scalar_lea.vmem [#allocation3], 64
    %v1261 = vld [vmem:[%s1260] ss:$8 sm:$0x3]
    %v1263 = vlaneseq
    %v1264 = vshrl.u32 %v1263, 7
    %v1265 = vsub.s32 0, %v1264
    %v1266 = vrot.slane %v1261, %v1265
    %v1267 = vlaneseq
    %v1268 = vshrl.u32 %v1267, 7
    %v1269 = vsub.s32 1, %v1268
    %v1270 = vrot.slane %v1261, %v1269
    %v1271 = vcombine.low %v1266, %v1270
    %v1273 = vunpack.c.l.s4 1983009808
    %v1274 = vunpack.c.0.s8 %v1273
    %v1275 = vlaneseq
    %v1276 = vshrl.u32 %v1275, 7
    %v1277 = vsub.s32 %v1274, %v1276
    %v1278 = vrot.slane %v1271, %v1277
    %1279 = vrot.lane.b32.xlu0 %v1278, 17
    %v1280 = vpop.permute.xlu0 %1279
    %v1281 = vrot.slane %v1280, 6
    %vm1282 = vcmask 138240
    %v1283 = vsel %vm1282, %v1281, %v1280
    %v1285 = vmul.f32 %v1123, %v1283
    %1287 = vrot.lane.b32.xlu0 %v1285, 60
    %v1288 = vpop.permute.xlu0 %1287
    %v1289 = vrot.slane %v1288, 6
    %vm1290 = vcmask 490496
    %v1291 = vsel %vm1290, %v1289, %v1288
    %v1293 = vadd.f32 %v1259, %v1291
    %s1294 = scalar_lea.vmem [#allocation3], 65
    %v1295 = vld [vmem:[%s1294] ss:$8 sm:$0x3]
    %v1297 = vlaneseq
    %v1298 = vshrl.u32 %v1297, 7
    %v1299 = vsub.s32 0, %v1298
    %v1300 = vrot.slane %v1295, %v1299
    %v1301 = vlaneseq
    %v1302 = vshrl.u32 %v1301, 7
    %v1303 = vsub.s32 1, %v1302
    %v1304 = vrot.slane %v1295, %v1303
    %v1305 = vcombine.low %v1300, %v1304
    %v1307 = vunpack.c.l.s4 1983009808
    %v1308 = vunpack.c.0.s8 %v1307
    %v1309 = vlaneseq
    %v1310 = vshrl.u32 %v1309, 7
    %v1311 = vsub.s32 %v1308, %v1310
    %v1312 = vrot.slane %v1305, %v1311
    %1313 = vrot.lane.b32.xlu0 %v1312, 18
    %v1314 = vpop.permute.xlu0 %1313
    %v1315 = vrot.slane %v1314, 6
    %vm1316 = vcmask 146432
    %v1317 = vsel %vm1316, %v1315, %v1314
    %v1319 = vmul.f32 %v1123, %v1317
    %1321 = vrot.lane.b32.xlu0 %v1319, 59
    %v1322 = vpop.permute.xlu0 %1321
    %v1323 = vrot.slane %v1322, 6
    %vm1324 = vcmask 482304
    %v1325 = vsel %vm1324, %v1323, %v1322
    %v1327 = vadd.f32 %v1293, %v1325
    %s1328 = scalar_lea.vmem [#allocation3], 66
    %v1329 = vld [vmem:[%s1328] ss:$8 sm:$0x3]
    %v1331 = vlaneseq
    %v1332 = vshrl.u32 %v1331, 7
    %v1333 = vsub.s32 0, %v1332
    %v1334 = vrot.slane %v1329, %v1333
    %v1335 = vlaneseq
    %v1336 = vshrl.u32 %v1335, 7
    %v1337 = vsub.s32 1, %v1336
    %v1338 = vrot.slane %v1329, %v1337
    %v1339 = vcombine.low %v1334, %v1338
    %v1341 = vunpack.c.l.s4 1983009808
    %v1342 = vunpack.c.0.s8 %v1341
    %v1343 = vlaneseq
    %v1344 = vshrl.u32 %v1343, 7
    %v1345 = vsub.s32 %v1342, %v1344
    %v1346 = vrot.slane %v1339, %v1345
    %1347 = vrot.lane.b32.xlu0 %v1346, 19
    %v1348 = vpop.permute.xlu0 %1347
    %v1349 = vrot.slane %v1348, 6
    %vm1350 = vcmask 154624
    %v1351 = vsel %vm1350, %v1349, %v1348
    %v1353 = vmul.f32 %v1123, %v1351
    %1355 = vrot.lane.b32.xlu0 %v1353, 58
    %v1356 = vpop.permute.xlu0 %1355
    %v1357 = vrot.slane %v1356, 6
    %vm1358 = vcmask 474112
    %v1359 = vsel %vm1358, %v1357, %v1356
    %v1361 = vadd.f32 %v1327, %v1359
    %s1362 = scalar_lea.vmem [#allocation3], 67
    %v1363 = vld [vmem:[%s1362] ss:$8 sm:$0x3]
    %v1365 = vlaneseq
    %v1366 = vshrl.u32 %v1365, 7
    %v1367 = vsub.s32 0, %v1366
    %v1368 = vrot.slane %v1363, %v1367
    %v1369 = vlaneseq
    %v1370 = vshrl.u32 %v1369, 7
    %v1371 = vsub.s32 1, %v1370
    %v1372 = vrot.slane %v1363, %v1371
    %v1373 = vcombine.low %v1368, %v1372
    %v1375 = vunpack.c.l.s4 1983009808
    %v1376 = vunpack.c.0.s8 %v1375
    %v1377 = vlaneseq
    %v1378 = vshrl.u32 %v1377, 7
    %v1379 = vsub.s32 %v1376, %v1378
    %v1380 = vrot.slane %v1373, %v1379
    %1381 = vrot.lane.b32.xlu0 %v1380, 29
    %v1382 = vpop.permute.xlu0 %1381
    %v1383 = vrot.slane %v1382, 6
    %vm1384 = vcmask 236544
    %v1385 = vsel %vm1384, %v1383, %v1382
    %v1387 = vmul.f32 %v1123, %v1385
    %1389 = vrot.lane.b32.xlu0 %v1387, 48
    %v1390 = vpop.permute.xlu0 %1389
    %v1391 = vrot.slane %v1390, 6
    %vm1392 = vcmask 392192
    %v1393 = vsel %vm1392, %v1391, %v1390
    %v1395 = vadd.f32 %v1361, %v1393
    %s1396 = scalar_lea.vmem [#allocation3], 68
    %v1397 = vld [vmem:[%s1396] ss:$8 sm:$0x3]
    %v1399 = vlaneseq
    %v1400 = vshrl.u32 %v1399, 7
    %v1401 = vsub.s32 0, %v1400
    %v1402 = vrot.slane %v1397, %v1401
    %v1403 = vlaneseq
    %v1404 = vshrl.u32 %v1403, 7
    %v1405 = vsub.s32 1, %v1404
    %v1406 = vrot.slane %v1397, %v1405
    %v1407 = vcombine.low %v1402, %v1406
    %v1409 = vunpack.c.l.s4 1983009808
    %v1410 = vunpack.c.0.s8 %v1409
    %v1411 = vlaneseq
    %v1412 = vshrl.u32 %v1411, 7
    %v1413 = vsub.s32 %v1410, %v1412
    %v1414 = vrot.slane %v1407, %v1413
    %1415 = vrot.lane.b32.xlu0 %v1414, 30
    %v1416 = vpop.permute.xlu0 %1415
    %v1417 = vrot.slane %v1416, 6
    %vm1418 = vcmask 244736
    %v1419 = vsel %vm1418, %v1417, %v1416
    %v1421 = vmul.f32 %v1123, %v1419
    %1423 = vrot.lane.b32.xlu0 %v1421, 47
    %v1424 = vpop.permute.xlu0 %1423
    %v1425 = vrot.slane %v1424, 6
    %vm1426 = vcmask 384000
    %v1427 = vsel %vm1426, %v1425, %v1424
    %v1429 = vadd.f32 %v1395, %v1427
    %s1430 = scalar_lea.vmem [#allocation3], 69
    %v1431 = vld [vmem:[%s1430] ss:$8 sm:$0x3]
    %v1433 = vlaneseq
    %v1434 = vshrl.u32 %v1433, 7
    %v1435 = vsub.s32 0, %v1434
    %v1436 = vrot.slane %v1431, %v1435
    %v1437 = vlaneseq
    %v1438 = vshrl.u32 %v1437, 7
    %v1439 = vsub.s32 1, %v1438
    %v1440 = vrot.slane %v1431, %v1439
    %v1441 = vcombine.low %v1436, %v1440
    %v1443 = vunpack.c.l.s4 1983009808
    %v1444 = vunpack.c.0.s8 %v1443
    %v1445 = vlaneseq
    %v1446 = vshrl.u32 %v1445, 7
    %v1447 = vsub.s32 %v1444, %v1446
    %v1448 = vrot.slane %v1441, %v1447
    %1449 = vrot.lane.b32.xlu0 %v1448, 31
    %v1450 = vpop.permute.xlu0 %1449
    %v1451 = vrot.slane %v1450, 6
    %vm1452 = vcmask 252928
    %v1453 = vsel %vm1452, %v1451, %v1450
    %v1455 = vmul.f32 %v1123, %v1453
    %1457 = vrot.lane.b32.xlu0 %v1455, 46
    %v1458 = vpop.permute.xlu0 %1457
    %v1459 = vrot.slane %v1458, 6
    %vm1460 = vcmask 375808
    %v1461 = vsel %vm1460, %v1459, %v1458
    %v1463 = vadd.f32 %v1429, %v1461
    %s1464 = scalar_lea.vmem [#allocation3], 70
    %v1465 = vld [vmem:[%s1464] ss:$8 sm:$0x3]
    %v1467 = vlaneseq
    %v1468 = vshrl.u32 %v1467, 7
    %v1469 = vsub.s32 0, %v1468
    %v1470 = vrot.slane %v1465, %v1469
    %v1471 = vlaneseq
    %v1472 = vshrl.u32 %v1471, 7
    %v1473 = vsub.s32 1, %v1472
    %v1474 = vrot.slane %v1465, %v1473
    %v1475 = vcombine.low %v1470, %v1474
    %v1477 = vunpack.c.l.s4 1983009808
    %v1478 = vunpack.c.0.s8 %v1477
    %v1479 = vlaneseq
    %v1480 = vshrl.u32 %v1479, 7
    %v1481 = vsub.s32 %v1478, %v1480
    %v1482 = vrot.slane %v1475, %v1481
    %1483 = vrot.lane.b32.xlu0 %v1482, 32
    %v1484 = vpop.permute.xlu0 %1483
    %v1485 = vrot.slane %v1484, 6
    %vm1486 = vcmask 261120
    %v1487 = vsel %vm1486, %v1485, %v1484
    %v1489 = vmul.f32 %v1123, %v1487
    %1491 = vrot.lane.b32.xlu0 %v1489, 45
    %v1492 = vpop.permute.xlu0 %1491
    %v1493 = vrot.slane %v1492, 6
    %vm1494 = vcmask 367616
    %v1495 = vsel %vm1494, %v1493, %v1492
    %v1497 = vadd.f32 %v1463, %v1495
    %s1498 = scalar_lea.vmem [#allocation3], 71
    %v1499 = vld [vmem:[%s1498] ss:$8 sm:$0x3]
    %v1501 = vlaneseq
    %v1502 = vshrl.u32 %v1501, 7
    %v1503 = vsub.s32 0, %v1502
    %v1504 = vrot.slane %v1499, %v1503
    %v1505 = vlaneseq
    %v1506 = vshrl.u32 %v1505, 7
    %v1507 = vsub.s32 1, %v1506
    %v1508 = vrot.slane %v1499, %v1507
    %v1509 = vcombine.low %v1504, %v1508
    %v1511 = vunpack.c.l.s4 1983009808
    %v1512 = vunpack.c.0.s8 %v1511
    %v1513 = vlaneseq
    %v1514 = vshrl.u32 %v1513, 7
    %v1515 = vsub.s32 %v1512, %v1514
    %v1516 = vrot.slane %v1509, %v1515
    %1517 = vrot.lane.b32.xlu0 %v1516, 33
    %v1518 = vpop.permute.xlu0 %1517
    %v1519 = vrot.slane %v1518, 6
    %vm1520 = vcmask 269312
    %v1521 = vsel %vm1520, %v1519, %v1518
    %v1523 = vmul.f32 %v1123, %v1521
    %1525 = vrot.lane.b32.xlu0 %v1523, 44
    %v1526 = vpop.permute.xlu0 %1525
    %v1527 = vrot.slane %v1526, 6
    %vm1528 = vcmask 359424
    %v1529 = vsel %vm1528, %v1527, %v1526
    %v1531 = vadd.f32 %v1497, %v1529
    %s1532 = scalar_lea.vmem [#allocation3], 80
    %v1533 = vld [vmem:[%s1532] ss:$8 sm:$0x3]
    %v1535 = vlaneseq
    %v1536 = vshrl.u32 %v1535, 7
    %v1537 = vsub.s32 0, %v1536
    %v1538 = vrot.slane %v1533, %v1537
    %v1539 = vlaneseq
    %v1540 = vshrl.u32 %v1539, 7
    %v1541 = vsub.s32 1, %v1540
    %v1542 = vrot.slane %v1533, %v1541
    %v1543 = vcombine.low %v1538, %v1542
    %v1545 = vunpack.c.l.s4 1983009808
    %v1546 = vunpack.c.0.s8 %v1545
    %v1547 = vlaneseq
    %v1548 = vshrl.u32 %v1547, 7
    %v1549 = vsub.s32 %v1546, %v1548
    %v1550 = vrot.slane %v1543, %v1549
    %1551 = vrot.lane.b32.xlu0 %v1550, 34
    %v1552 = vpop.permute.xlu0 %1551
    %v1553 = vrot.slane %v1552, 6
    %vm1554 = vcmask 277504
    %v1555 = vsel %vm1554, %v1553, %v1552
    %v1557 = vmul.f32 %v1123, %v1555
    %1559 = vrot.lane.b32.xlu0 %v1557, 43
    %v1560 = vpop.permute.xlu0 %1559
    %v1561 = vrot.slane %v1560, 6
    %vm1562 = vcmask 351232
    %v1563 = vsel %vm1562, %v1561, %v1560
    %v1565 = vadd.f32 %v1531, %v1563
    %s1566 = scalar_lea.vmem [#allocation3], 81
    %v1567 = vld [vmem:[%s1566] ss:$8 sm:$0x3]
    %v1569 = vlaneseq
    %v1570 = vshrl.u32 %v1569, 7
    %v1571 = vsub.s32 0, %v1570
    %v1572 = vrot.slane %v1567, %v1571
    %v1573 = vlaneseq
    %v1574 = vshrl.u32 %v1573, 7
    %v1575 = vsub.s32 1, %v1574
    %v1576 = vrot.slane %v1567, %v1575
    %v1577 = vcombine.low %v1572, %v1576
    %v1579 = vunpack.c.l.s4 1983009808
    %v1580 = vunpack.c.0.s8 %v1579
    %v1581 = vlaneseq
    %v1582 = vshrl.u32 %v1581, 7
    %v1583 = vsub.s32 %v1580, %v1582
    %v1584 = vrot.slane %v1577, %v1583
    %1585 = vrot.lane.b32.xlu0 %v1584, 35
    %v1586 = vpop.permute.xlu0 %1585
    %v1587 = vrot.slane %v1586, 6
    %vm1588 = vcmask 285696
    %v1589 = vsel %vm1588, %v1587, %v1586
    %v1591 = vmul.f32 %v1123, %v1589
    %1593 = vrot.lane.b32.xlu0 %v1591, 42
    %v1594 = vpop.permute.xlu0 %1593
    %v1595 = vrot.slane %v1594, 6
    %vm1596 = vcmask 343040
    %v1597 = vsel %vm1596, %v1595, %v1594
    %v1599 = vadd.f32 %v1565, %v1597
    %s1600 = scalar_lea.vmem [#allocation3], 82
    %v1601 = vld [vmem:[%s1600] ss:$8 sm:$0x3]
    %v1603 = vlaneseq
    %v1604 = vshrl.u32 %v1603, 7
    %v1605 = vsub.s32 0, %v1604
    %v1606 = vrot.slane %v1601, %v1605
    %v1607 = vlaneseq
    %v1608 = vshrl.u32 %v1607, 7
    %v1609 = vsub.s32 1, %v1608
    %v1610 = vrot.slane %v1601, %v1609
    %v1611 = vcombine.low %v1606, %v1610
    %v1613 = vunpack.c.l.s4 1983009808
    %v1614 = vunpack.c.0.s8 %v1613
    %v1615 = vlaneseq
    %v1616 = vshrl.u32 %v1615, 7
    %v1617 = vsub.s32 %v1614, %v1616
    %v1618 = vrot.slane %v1611, %v1617
    %1619 = vrot.lane.b32.xlu0 %v1618, 45
    %v1620 = vpop.permute.xlu0 %1619
    %v1621 = vrot.slane %v1620, 6
    %v1622 = vsel %vm1494, %v1621, %v1620
    %v1624 = vmul.f32 %v1123, %v1622
    %1626 = vrot.lane.b32.xlu0 %v1624, 32
    %v1627 = vpop.permute.xlu0 %1626
    %v1628 = vrot.slane %v1627, 6
    %v1629 = vsel %vm1486, %v1628, %v1627
    %v1631 = vadd.f32 %v1599, %v1629
    %s1632 = scalar_lea.vmem [#allocation3], 83
    %v1633 = vld [vmem:[%s1632] ss:$8 sm:$0x3]
    %v1635 = vlaneseq
    %v1636 = vshrl.u32 %v1635, 7
    %v1637 = vsub.s32 0, %v1636
    %v1638 = vrot.slane %v1633, %v1637
    %v1639 = vlaneseq
    %v1640 = vshrl.u32 %v1639, 7
    %v1641 = vsub.s32 1, %v1640
    %v1642 = vrot.slane %v1633, %v1641
    %v1643 = vcombine.low %v1638, %v1642
    %v1645 = vunpack.c.l.s4 1983009808
    %v1646 = vunpack.c.0.s8 %v1645
    %v1647 = vlaneseq
    %v1648 = vshrl.u32 %v1647, 7
    %v1649 = vsub.s32 %v1646, %v1648
    %v1650 = vrot.slane %v1643, %v1649
    %1651 = vrot.lane.b32.xlu0 %v1650, 46
    %v1652 = vpop.permute.xlu0 %1651
    %v1653 = vrot.slane %v1652, 6
    %v1654 = vsel %vm1460, %v1653, %v1652
    %v1656 = vmul.f32 %v1123, %v1654
    %1658 = vrot.lane.b32.xlu0 %v1656, 31
    %v1659 = vpop.permute.xlu0 %1658
    %v1660 = vrot.slane %v1659, 6
    %v1661 = vsel %vm1452, %v1660, %v1659
    %v1663 = vadd.f32 %v1631, %v1661
    %s1664 = scalar_lea.vmem [#allocation3], 84
    %v1665 = vld [vmem:[%s1664] ss:$8 sm:$0x3]
    %v1667 = vlaneseq
    %v1668 = vshrl.u32 %v1667, 7
    %v1669 = vsub.s32 0, %v1668
    %v1670 = vrot.slane %v1665, %v1669
    %v1671 = vlaneseq
    %v1672 = vshrl.u32 %v1671, 7
    %v1673 = vsub.s32 1, %v1672
    %v1674 = vrot.slane %v1665, %v1673
    %v1675 = vcombine.low %v1670, %v1674
    %v1677 = vunpack.c.l.s4 1983009808
    %v1678 = vunpack.c.0.s8 %v1677
    %v1679 = vlaneseq
    %v1680 = vshrl.u32 %v1679, 7
    %v1681 = vsub.s32 %v1678, %v1680
    %v1682 = vrot.slane %v1675, %v1681
    %1683 = vrot.lane.b32.xlu0 %v1682, 47
    %v1684 = vpop.permute.xlu0 %1683
    %v1685 = vrot.slane %v1684, 6
    %v1686 = vsel %vm1426, %v1685, %v1684
    %v1688 = vmul.f32 %v1123, %v1686
    %1690 = vrot.lane.b32.xlu0 %v1688, 30
    %v1691 = vpop.permute.xlu0 %1690
    %v1692 = vrot.slane %v1691, 6
    %v1693 = vsel %vm1418, %v1692, %v1691
    %v1695 = vadd.f32 %v1663, %v1693
    %s1696 = scalar_lea.vmem [#allocation3], 85
    %v1697 = vld [vmem:[%s1696] ss:$8 sm:$0x3]
    %v1699 = vlaneseq
    %v1700 = vshrl.u32 %v1699, 7
    %v1701 = vsub.s32 0, %v1700
    %v1702 = vrot.slane %v1697, %v1701
    %v1703 = vlaneseq
    %v1704 = vshrl.u32 %v1703, 7
    %v1705 = vsub.s32 1, %v1704
    %v1706 = vrot.slane %v1697, %v1705
    %v1707 = vcombine.low %v1702, %v1706
    %v1709 = vunpack.c.l.s4 1983009808
    %v1710 = vunpack.c.0.s8 %v1709
    %v1711 = vlaneseq
    %v1712 = vshrl.u32 %v1711, 7
    %v1713 = vsub.s32 %v1710, %v1712
    %v1714 = vrot.slane %v1707, %v1713
    %1715 = vrot.lane.b32.xlu0 %v1714, 48
    %v1716 = vpop.permute.xlu0 %1715
    %v1717 = vrot.slane %v1716, 6
    %v1718 = vsel %vm1392, %v1717, %v1716
    %v1720 = vmul.f32 %v1123, %v1718
    %1722 = vrot.lane.b32.xlu0 %v1720, 29
    %v1723 = vpop.permute.xlu0 %1722
    %v1724 = vrot.slane %v1723, 6
    %v1725 = vsel %vm1384, %v1724, %v1723
    %v1727 = vadd.f32 %v1695, %v1725
    %s1728 = scalar_lea.vmem [#allocation3], 86
    %v1729 = vld [vmem:[%s1728] ss:$8 sm:$0x3]
    %v1731 = vlaneseq
    %v1732 = vshrl.u32 %v1731, 7
    %v1733 = vsub.s32 0, %v1732
    %v1734 = vrot.slane %v1729, %v1733
    %v1735 = vlaneseq
    %v1736 = vshrl.u32 %v1735, 7
    %v1737 = vsub.s32 1, %v1736
    %v1738 = vrot.slane %v1729, %v1737
    %v1739 = vcombine.low %v1734, %v1738
    %v1741 = vunpack.c.l.s4 1983009808
    %v1742 = vunpack.c.0.s8 %v1741
    %v1743 = vlaneseq
    %v1744 = vshrl.u32 %v1743, 7
    %v1745 = vsub.s32 %v1742, %v1744
    %v1746 = vrot.slane %v1739, %v1745
    %1747 = vrot.lane.b32.xlu0 %v1746, 49
    %v1748 = vpop.permute.xlu0 %1747
    %v1749 = vrot.slane %v1748, 6
    %vm1750 = vcmask 400384
    %v1751 = vsel %vm1750, %v1749, %v1748
    %v1753 = vmul.f32 %v1123, %v1751
    %1755 = vrot.lane.b32.xlu0 %v1753, 28
    %v1756 = vpop.permute.xlu0 %1755
    %v1757 = vrot.slane %v1756, 6
    %vm1758 = vcmask 228352
    %v1759 = vsel %vm1758, %v1757, %v1756
    %v1761 = vadd.f32 %v1727, %v1759
    %s1762 = scalar_lea.vmem [#allocation3], 87
    %v1763 = vld [vmem:[%s1762] ss:$8 sm:$0x3]
    %v1765 = vlaneseq
    %v1766 = vshrl.u32 %v1765, 7
    %v1767 = vsub.s32 0, %v1766
    %v1768 = vrot.slane %v1763, %v1767
    %v1769 = vlaneseq
    %v1770 = vshrl.u32 %v1769, 7
    %v1771 = vsub.s32 1, %v1770
    %v1772 = vrot.slane %v1763, %v1771
    %v1773 = vcombine.low %v1768, %v1772
    %v1775 = vunpack.c.l.s4 1983009808
    %v1776 = vunpack.c.0.s8 %v1775
    %v1777 = vlaneseq
    %v1778 = vshrl.u32 %v1777, 7
    %v1779 = vsub.s32 %v1776, %v1778
    %v1780 = vrot.slane %v1773, %v1779
    %1781 = vrot.lane.b32.xlu0 %v1780, 50
    %v1782 = vpop.permute.xlu0 %1781
    %v1783 = vrot.slane %v1782, 6
    %vm1784 = vcmask 408576
    %v1785 = vsel %vm1784, %v1783, %v1782
    %v1787 = vmul.f32 %v1123, %v1785
    %1789 = vrot.lane.b32.xlu0 %v1787, 27
    %v1790 = vpop.permute.xlu0 %1789
    %v1791 = vrot.slane %v1790, 6
    %vm1792 = vcmask 220160
    %v1793 = vsel %vm1792, %v1791, %v1790
    %v1795 = vadd.f32 %v1761, %v1793
    %s1796 = scalar_lea.vmem [#allocation3], 96
    %v1797 = vld [vmem:[%s1796] ss:$8 sm:$0x3]
    %v1799 = vlaneseq
    %v1800 = vshrl.u32 %v1799, 7
    %v1801 = vsub.s32 0, %v1800
    %v1802 = vrot.slane %v1797, %v1801
    %v1803 = vlaneseq
    %v1804 = vshrl.u32 %v1803, 7
    %v1805 = vsub.s32 1, %v1804
    %v1806 = vrot.slane %v1797, %v1805
    %v1807 = vcombine.low %v1802, %v1806
    %v1809 = vunpack.c.l.s4 1983009808
    %v1810 = vunpack.c.0.s8 %v1809
    %v1811 = vlaneseq
    %v1812 = vshrl.u32 %v1811, 7
    %v1813 = vsub.s32 %v1810, %v1812
    %v1814 = vrot.slane %v1807, %v1813
    %1815 = vrot.lane.b32.xlu0 %v1814, 51
    %v1816 = vpop.permute.xlu0 %1815
    %v1817 = vrot.slane %v1816, 6
    %vm1818 = vcmask 416768
    %v1819 = vsel %vm1818, %v1817, %v1816
    %v1821 = vmul.f32 %v1123, %v1819
    %1823 = vrot.lane.b32.xlu0 %v1821, 26
    %v1824 = vpop.permute.xlu0 %1823
    %v1825 = vrot.slane %v1824, 6
    %vm1826 = vcmask 211968
    %v1827 = vsel %vm1826, %v1825, %v1824
    %v1829 = vadd.f32 %v1795, %v1827
    %v1830 = vld [vmem:[%s192] sm:$0x3f]
    %s1831 = scalar_lea.vmem [#allocation3], 97
    %v1832 = vld [vmem:[%s1831] ss:$8 sm:$0x3]
    %v1834 = vlaneseq
    %v1835 = vshrl.u32 %v1834, 7
    %v1836 = vsub.s32 0, %v1835
    %v1837 = vrot.slane %v1832, %v1836
    %v1838 = vlaneseq
    %v1839 = vshrl.u32 %v1838, 7
    %v1840 = vsub.s32 1, %v1839
    %v1841 = vrot.slane %v1832, %v1840
    %v1842 = vcombine.low %v1837, %v1841
    %v1844 = vunpack.c.l.s4 1983009808
    %v1845 = vunpack.c.0.s8 %v1844
    %v1846 = vlaneseq
    %v1847 = vshrl.u32 %v1846, 7
    %v1848 = vsub.s32 %v1845, %v1847
    %v1849 = vrot.slane %v1842, %v1848
    %1850 = vrot.lane.b32.xlu0 %v1849, 77
    %v1851 = vpop.permute.xlu0 %1850
    %v1852 = vrot.slane %v1851, 6
    %v1853 = vsel %vm216, %v1852, %v1851
    %v1855 = vmul.f32 %v1830, %v1853
    %v1856 = vadd.f32 %v1829, %v1855
    %s1857 = scalar_lea.vmem [#allocation3], 98
    %v1858 = vld [vmem:[%s1857] ss:$8 sm:$0x3]
    %v1860 = vlaneseq
    %v1861 = vshrl.u32 %v1860, 7
    %v1862 = vsub.s32 0, %v1861
    %v1863 = vrot.slane %v1858, %v1862
    %v1864 = vlaneseq
    %v1865 = vshrl.u32 %v1864, 7
    %v1866 = vsub.s32 1, %v1865
    %v1867 = vrot.slane %v1858, %v1866
    %v1868 = vcombine.low %v1863, %v1867
    %v1870 = vunpack.c.l.s4 1983009808
    %v1871 = vunpack.c.0.s8 %v1870
    %v1872 = vlaneseq
    %v1873 = vshrl.u32 %v1872, 7
    %v1874 = vsub.s32 %v1871, %v1873
    %v1875 = vrot.slane %v1868, %v1874
    %1876 = vrot.lane.b32.xlu0 %v1875, 78
    %v1877 = vpop.permute.xlu0 %1876
    %v1878 = vrot.slane %v1877, 6
    %v1879 = vsel %vm243, %v1878, %v1877
    %v1881 = vmul.f32 %v1830, %v1879
    %1883 = vrot.lane.b32.xlu0 %v1881, 127
    %v1884 = vpop.permute.xlu0 %1883
    %v1885 = vrot.slane %v1884, 2
    %v1886 = vsel %vm251, %v1884, %v1885
    %v1888 = vadd.f32 %v1856, %v1886
    %s1889 = scalar_lea.vmem [#allocation3], 99
    %v1890 = vld [vmem:[%s1889] ss:$8 sm:$0x3]
    %v1892 = vlaneseq
    %v1893 = vshrl.u32 %v1892, 7
    %v1894 = vsub.s32 0, %v1893
    %v1895 = vrot.slane %v1890, %v1894
    %v1896 = vlaneseq
    %v1897 = vshrl.u32 %v1896, 7
    %v1898 = vsub.s32 1, %v1897
    %v1899 = vrot.slane %v1890, %v1898
    %v1900 = vcombine.low %v1895, %v1899
    %v1902 = vunpack.c.l.s4 1983009808
    %v1903 = vunpack.c.0.s8 %v1902
    %v1904 = vlaneseq
    %v1905 = vshrl.u32 %v1904, 7
    %v1906 = vsub.s32 %v1903, %v1905
    %v1907 = vrot.slane %v1900, %v1906
    %1908 = vrot.lane.b32.xlu0 %v1907, 79
    %v1909 = vpop.permute.xlu0 %1908
    %v1910 = vrot.slane %v1909, 6
    %v1911 = vsel %vm277, %v1910, %v1909
    %v1913 = vmul.f32 %v1830, %v1911
    %1915 = vrot.lane.b32.xlu0 %v1913, 126
    %v1916 = vpop.permute.xlu0 %1915
    %v1917 = vrot.slane %v1916, 2
    %v1918 = vsel %vm285, %v1916, %v1917
    %v1920 = vadd.f32 %v1888, %v1918
    %s1921 = scalar_lea.vmem [#allocation3], 100
    %v1922 = vld [vmem:[%s1921] ss:$8 sm:$0x3]
    %v1924 = vlaneseq
    %v1925 = vshrl.u32 %v1924, 7
    %v1926 = vsub.s32 0, %v1925
    %v1927 = vrot.slane %v1922, %v1926
    %v1928 = vlaneseq
    %v1929 = vshrl.u32 %v1928, 7
    %v1930 = vsub.s32 1, %v1929
    %v1931 = vrot.slane %v1922, %v1930
    %v1932 = vcombine.low %v1927, %v1931
    %v1934 = vunpack.c.l.s4 1983009808
    %v1935 = vunpack.c.0.s8 %v1934
    %v1936 = vlaneseq
    %v1937 = vshrl.u32 %v1936, 7
    %v1938 = vsub.s32 %v1935, %v1937
    %v1939 = vrot.slane %v1932, %v1938
    %1940 = vrot.lane.b32.xlu0 %v1939, 80
    %v1941 = vpop.permute.xlu0 %1940
    %v1942 = vrot.slane %v1941, 6
    %v1943 = vsel %vm311, %v1942, %v1941
    %v1945 = vmul.f32 %v1830, %v1943
    %1947 = vrot.lane.b32.xlu0 %v1945, 125
    %v1948 = vpop.permute.xlu0 %1947
    %v1949 = vrot.slane %v1948, 2
    %v1950 = vsel %vm319, %v1948, %v1949
    %v1952 = vadd.f32 %v1920, %v1950
    %s1953 = scalar_lea.vmem [#allocation3], 101
    %v1954 = vld [vmem:[%s1953] ss:$8 sm:$0x3]
    %v1956 = vlaneseq
    %v1957 = vshrl.u32 %v1956, 7
    %v1958 = vsub.s32 0, %v1957
    %v1959 = vrot.slane %v1954, %v1958
    %v1960 = vlaneseq
    %v1961 = vshrl.u32 %v1960, 7
    %v1962 = vsub.s32 1, %v1961
    %v1963 = vrot.slane %v1954, %v1962
    %v1964 = vcombine.low %v1959, %v1963
    %v1966 = vunpack.c.l.s4 1983009808
    %v1967 = vunpack.c.0.s8 %v1966
    %v1968 = vlaneseq
    %v1969 = vshrl.u32 %v1968, 7
    %v1970 = vsub.s32 %v1967, %v1969
    %v1971 = vrot.slane %v1964, %v1970
    %1972 = vrot.lane.b32.xlu0 %v1971, 81
    %v1973 = vpop.permute.xlu0 %1972
    %v1974 = vrot.slane %v1973, 6
    %v1975 = vsel %vm345, %v1974, %v1973
    %v1977 = vmul.f32 %v1830, %v1975
    %1979 = vrot.lane.b32.xlu0 %v1977, 124
    %v1980 = vpop.permute.xlu0 %1979
    %v1981 = vrot.slane %v1980, 2
    %v1982 = vsel %vm353, %v1980, %v1981
    %v1984 = vadd.f32 %v1952, %v1982
    %s1985 = scalar_lea.vmem [#allocation3], 102
    %v1986 = vld [vmem:[%s1985] ss:$8 sm:$0x3]
    %v1988 = vlaneseq
    %v1989 = vshrl.u32 %v1988, 7
    %v1990 = vsub.s32 0, %v1989
    %v1991 = vrot.slane %v1986, %v1990
    %v1992 = vlaneseq
    %v1993 = vshrl.u32 %v1992, 7
    %v1994 = vsub.s32 1, %v1993
    %v1995 = vrot.slane %v1986, %v1994
    %v1996 = vcombine.low %v1991, %v1995
    %v1998 = vunpack.c.l.s4 1983009808
    %v1999 = vunpack.c.0.s8 %v1998
    %v2000 = vlaneseq
    %v2001 = vshrl.u32 %v2000, 7
    %v2002 = vsub.s32 %v1999, %v2001
    %v2003 = vrot.slane %v1996, %v2002
    %2004 = vrot.lane.b32.xlu0 %v2003, 82
    %v2005 = vpop.permute.xlu0 %2004
    %v2006 = vrot.slane %v2005, 6
    %v2007 = vsel %vm379, %v2006, %v2005
    %v2009 = vmul.f32 %v1830, %v2007
    %2011 = vrot.lane.b32.xlu0 %v2009, 123
    %v2012 = vpop.permute.xlu0 %2011
    %v2013 = vrot.slane %v2012, 2
    %v2014 = vsel %vm387, %v2012, %v2013
    %v2016 = vadd.f32 %v1984, %v2014
    %s2017 = scalar_lea.vmem [#allocation3], 103
    %v2018 = vld [vmem:[%s2017] ss:$8 sm:$0x3]
    %v2020 = vlaneseq
    %v2021 = vshrl.u32 %v2020, 7
    %v2022 = vsub.s32 0, %v2021
    %v2023 = vrot.slane %v2018, %v2022
    %v2024 = vlaneseq
    %v2025 = vshrl.u32 %v2024, 7
    %v2026 = vsub.s32 1, %v2025
    %v2027 = vrot.slane %v2018, %v2026
    %v2028 = vcombine.low %v2023, %v2027
    %v2030 = vunpack.c.l.s4 1983009808
    %v2031 = vunpack.c.0.s8 %v2030
    %v2032 = vlaneseq
    %v2033 = vshrl.u32 %v2032, 7
    %v2034 = vsub.s32 %v2031, %v2033
    %v2035 = vrot.slane %v2028, %v2034
    %2036 = vrot.lane.b32.xlu0 %v2035, 83
    %v2037 = vpop.permute.xlu0 %2036
    %v2038 = vrot.slane %v2037, 6
    %v2039 = vsel %vm413, %v2038, %v2037
    %v2041 = vmul.f32 %v1830, %v2039
    %2043 = vrot.lane.b32.xlu0 %v2041, 122
    %v2044 = vpop.permute.xlu0 %2043
    %v2045 = vrot.slane %v2044, 2
    %v2046 = vsel %vm421, %v2044, %v2045
    %v2048 = vadd.f32 %v2016, %v2046
    %s2049 = scalar_lea.vmem [#allocation3], 112
    %v2050 = vld [vmem:[%s2049] ss:$8 sm:$0x3]
    %v2052 = vlaneseq
    %v2053 = vshrl.u32 %v2052, 7
    %v2054 = vsub.s32 0, %v2053
    %v2055 = vrot.slane %v2050, %v2054
    %v2056 = vlaneseq
    %v2057 = vshrl.u32 %v2056, 7
    %v2058 = vsub.s32 1, %v2057
    %v2059 = vrot.slane %v2050, %v2058
    %v2060 = vcombine.low %v2055, %v2059
    %v2062 = vunpack.c.l.s4 1983009808
    %v2063 = vunpack.c.0.s8 %v2062
    %v2064 = vlaneseq
    %v2065 = vshrl.u32 %v2064, 7
    %v2066 = vsub.s32 %v2063, %v2065
    %v2067 = vrot.slane %v2060, %v2066
    %2068 = vrot.lane.b32.xlu0 %v2067, 93
    %v2069 = vpop.permute.xlu0 %2068
    %v2070 = vrot.slane %v2069, 6
    %v2071 = vsel %vm447, %v2070, %v2069
    %v2073 = vmul.f32 %v1830, %v2071
    %2075 = vrot.lane.b32.xlu0 %v2073, 112
    %v2076 = vpop.permute.xlu0 %2075
    %v2077 = vrot.slane %v2076, 2
    %v2078 = vsel %vm455, %v2076, %v2077
    %v2080 = vadd.f32 %v2048, %v2078
    %s2081 = scalar_lea.vmem [#allocation3], 113
    %v2082 = vld [vmem:[%s2081] ss:$8 sm:$0x3]
    %v2084 = vlaneseq
    %v2085 = vshrl.u32 %v2084, 7
    %v2086 = vsub.s32 0, %v2085
    %v2087 = vrot.slane %v2082, %v2086
    %v2088 = vlaneseq
    %v2089 = vshrl.u32 %v2088, 7
    %v2090 = vsub.s32 1, %v2089
    %v2091 = vrot.slane %v2082, %v2090
    %v2092 = vcombine.low %v2087, %v2091
    %v2094 = vunpack.c.l.s4 1983009808
    %v2095 = vunpack.c.0.s8 %v2094
    %v2096 = vlaneseq
    %v2097 = vshrl.u32 %v2096, 7
    %v2098 = vsub.s32 %v2095, %v2097
    %v2099 = vrot.slane %v2092, %v2098
    %2100 = vrot.lane.b32.xlu0 %v2099, 94
    %v2101 = vpop.permute.xlu0 %2100
    %v2102 = vrot.slane %v2101, 6
    %v2103 = vsel %vm481, %v2102, %v2101
    %v2105 = vmul.f32 %v1830, %v2103
    %2107 = vrot.lane.b32.xlu0 %v2105, 111
    %v2108 = vpop.permute.xlu0 %2107
    %v2109 = vrot.slane %v2108, 2
    %v2110 = vsel %vm489, %v2108, %v2109
    %v2112 = vadd.f32 %v2080, %v2110
    %s2113 = scalar_lea.vmem [#allocation3], 114
    %v2114 = vld [vmem:[%s2113] ss:$8 sm:$0x3]
    %v2116 = vlaneseq
    %v2117 = vshrl.u32 %v2116, 7
    %v2118 = vsub.s32 0, %v2117
    %v2119 = vrot.slane %v2114, %v2118
    %v2120 = vlaneseq
    %v2121 = vshrl.u32 %v2120, 7
    %v2122 = vsub.s32 1, %v2121
    %v2123 = vrot.slane %v2114, %v2122
    %v2124 = vcombine.low %v2119, %v2123
    %v2126 = vunpack.c.l.s4 1983009808
    %v2127 = vunpack.c.0.s8 %v2126
    %v2128 = vlaneseq
    %v2129 = vshrl.u32 %v2128, 7
    %v2130 = vsub.s32 %v2127, %v2129
    %v2131 = vrot.slane %v2124, %v2130
    %2132 = vrot.lane.b32.xlu0 %v2131, 95
    %v2133 = vpop.permute.xlu0 %2132
    %v2134 = vrot.slane %v2133, 6
    %v2135 = vsel %vm515, %v2134, %v2133
    %v2137 = vmul.f32 %v1830, %v2135
    %2139 = vrot.lane.b32.xlu0 %v2137, 110
    %v2140 = vpop.permute.xlu0 %2139
    %v2141 = vrot.slane %v2140, 2
    %v2142 = vsel %vm523, %v2140, %v2141
    %v2144 = vadd.f32 %v2112, %v2142
    %s2145 = scalar_lea.vmem [#allocation3], 115
    %v2146 = vld [vmem:[%s2145] ss:$8 sm:$0x3]
    %v2148 = vlaneseq
    %v2149 = vshrl.u32 %v2148, 7
    %v2150 = vsub.s32 0, %v2149
    %v2151 = vrot.slane %v2146, %v2150
    %v2152 = vlaneseq
    %v2153 = vshrl.u32 %v2152, 7
    %v2154 = vsub.s32 1, %v2153
    %v2155 = vrot.slane %v2146, %v2154
    %v2156 = vcombine.low %v2151, %v2155
    %v2158 = vunpack.c.l.s4 1983009808
    %v2159 = vunpack.c.0.s8 %v2158
    %v2160 = vlaneseq
    %v2161 = vshrl.u32 %v2160, 7
    %v2162 = vsub.s32 %v2159, %v2161
    %v2163 = vrot.slane %v2156, %v2162
    %2164 = vrot.lane.b32.xlu0 %v2163, 96
    %v2165 = vpop.permute.xlu0 %2164
    %v2166 = vrot.slane %v2165, 6
    %v2167 = vsel %vm549, %v2166, %v2165
    %v2169 = vmul.f32 %v1830, %v2167
    %2171 = vrot.lane.b32.xlu0 %v2169, 109
    %v2172 = vpop.permute.xlu0 %2171
    %v2173 = vrot.slane %v2172, 2
    %v2174 = vsel %vm557, %v2172, %v2173
    %v2176 = vadd.f32 %v2144, %v2174
    %s2177 = scalar_lea.vmem [#allocation3], 116
    %v2178 = vld [vmem:[%s2177] ss:$8 sm:$0x3]
    %v2180 = vlaneseq
    %v2181 = vshrl.u32 %v2180, 7
    %v2182 = vsub.s32 0, %v2181
    %v2183 = vrot.slane %v2178, %v2182
    %v2184 = vlaneseq
    %v2185 = vshrl.u32 %v2184, 7
    %v2186 = vsub.s32 1, %v2185
    %v2187 = vrot.slane %v2178, %v2186
    %v2188 = vcombine.low %v2183, %v2187
    %v2190 = vunpack.c.l.s4 1983009808
    %v2191 = vunpack.c.0.s8 %v2190
    %v2192 = vlaneseq
    %v2193 = vshrl.u32 %v2192, 7
    %v2194 = vsub.s32 %v2191, %v2193
    %v2195 = vrot.slane %v2188, %v2194
    %2196 = vrot.lane.b32.xlu0 %v2195, 97
    %v2197 = vpop.permute.xlu0 %2196
    %v2198 = vrot.slane %v2197, 6
    %v2199 = vsel %vm583, %v2198, %v2197
    %v2201 = vmul.f32 %v1830, %v2199
    %2203 = vrot.lane.b32.xlu0 %v2201, 108
    %v2204 = vpop.permute.xlu0 %2203
    %v2205 = vrot.slane %v2204, 2
    %v2206 = vsel %vm591, %v2204, %v2205
    %v2208 = vadd.f32 %v2176, %v2206
    %s2209 = scalar_lea.vmem [#allocation3], 117
    %v2210 = vld [vmem:[%s2209] ss:$8 sm:$0x3]
    %v2212 = vlaneseq
    %v2213 = vshrl.u32 %v2212, 7
    %v2214 = vsub.s32 0, %v2213
    %v2215 = vrot.slane %v2210, %v2214
    %v2216 = vlaneseq
    %v2217 = vshrl.u32 %v2216, 7
    %v2218 = vsub.s32 1, %v2217
    %v2219 = vrot.slane %v2210, %v2218
    %v2220 = vcombine.low %v2215, %v2219
    %v2222 = vunpack.c.l.s4 1983009808
    %v2223 = vunpack.c.0.s8 %v2222
    %v2224 = vlaneseq
    %v2225 = vshrl.u32 %v2224, 7
    %v2226 = vsub.s32 %v2223, %v2225
    %v2227 = vrot.slane %v2220, %v2226
    %2228 = vrot.lane.b32.xlu0 %v2227, 98
    %v2229 = vpop.permute.xlu0 %2228
    %v2230 = vrot.slane %v2229, 6
    %v2231 = vsel %vm617, %v2230, %v2229
    %v2233 = vmul.f32 %v1830, %v2231
    %2235 = vrot.lane.b32.xlu0 %v2233, 107
    %v2236 = vpop.permute.xlu0 %2235
    %v2237 = vrot.slane %v2236, 2
    %v2238 = vsel %vm625, %v2236, %v2237
    %v2240 = vadd.f32 %v2208, %v2238
    %s2241 = scalar_lea.vmem [#allocation3], 118
    %v2242 = vld [vmem:[%s2241] ss:$8 sm:$0x3]
    %v2244 = vlaneseq
    %v2245 = vshrl.u32 %v2244, 7
    %v2246 = vsub.s32 0, %v2245
    %v2247 = vrot.slane %v2242, %v2246
    %v2248 = vlaneseq
    %v2249 = vshrl.u32 %v2248, 7
    %v2250 = vsub.s32 1, %v2249
    %v2251 = vrot.slane %v2242, %v2250
    %v2252 = vcombine.low %v2247, %v2251
    %v2254 = vunpack.c.l.s4 1983009808
    %v2255 = vunpack.c.0.s8 %v2254
    %v2256 = vlaneseq
    %v2257 = vshrl.u32 %v2256, 7
    %v2258 = vsub.s32 %v2255, %v2257
    %v2259 = vrot.slane %v2252, %v2258
    %2260 = vrot.lane.b32.xlu0 %v2259, 99
    %v2261 = vpop.permute.xlu0 %2260
    %v2262 = vrot.slane %v2261, 6
    %v2263 = vsel %vm651, %v2262, %v2261
    %v2265 = vmul.f32 %v1830, %v2263
    %2267 = vrot.lane.b32.xlu0 %v2265, 106
    %v2268 = vpop.permute.xlu0 %2267
    %v2269 = vrot.slane %v2268, 2
    %v2270 = vsel %vm659, %v2268, %v2269
    %v2272 = vadd.f32 %v2240, %v2270
    %s2273 = scalar_lea.vmem [#allocation3], 119
    %v2274 = vld [vmem:[%s2273] ss:$8 sm:$0x3]
    %v2276 = vlaneseq
    %v2277 = vshrl.u32 %v2276, 7
    %v2278 = vsub.s32 0, %v2277
    %v2279 = vrot.slane %v2274, %v2278
    %v2280 = vlaneseq
    %v2281 = vshrl.u32 %v2280, 7
    %v2282 = vsub.s32 1, %v2281
    %v2283 = vrot.slane %v2274, %v2282
    %v2284 = vcombine.low %v2279, %v2283
    %v2286 = vunpack.c.l.s4 1983009808
    %v2287 = vunpack.c.0.s8 %v2286
    %v2288 = vlaneseq
    %v2289 = vshrl.u32 %v2288, 7
    %v2290 = vsub.s32 %v2287, %v2289
    %v2291 = vrot.slane %v2284, %v2290
    %2292 = vrot.lane.b32.xlu0 %v2291, 109
    %v2293 = vpop.permute.xlu0 %2292
    %v2294 = vrot.slane %v2293, 6
    %v2295 = vsel %vm557, %v2294, %v2293
    %v2297 = vmul.f32 %v1830, %v2295
    %2299 = vrot.lane.b32.xlu0 %v2297, 96
    %v2300 = vpop.permute.xlu0 %2299
    %v2301 = vrot.slane %v2300, 2
    %v2302 = vsel %vm549, %v2300, %v2301
    %v2304 = vadd.f32 %v2272, %v2302
    %s2305 = scalar_lea.vmem [#allocation3], 128
    %v2306 = vld [vmem:[%s2305] ss:$8 sm:$0x3]
    %v2308 = vlaneseq
    %v2309 = vshrl.u32 %v2308, 7
    %v2310 = vsub.s32 0, %v2309
    %v2311 = vrot.slane %v2306, %v2310
    %v2312 = vlaneseq
    %v2313 = vshrl.u32 %v2312, 7
    %v2314 = vsub.s32 1, %v2313
    %v2315 = vrot.slane %v2306, %v2314
    %v2316 = vcombine.low %v2311, %v2315
    %v2318 = vunpack.c.l.s4 1983009808
    %v2319 = vunpack.c.0.s8 %v2318
    %v2320 = vlaneseq
    %v2321 = vshrl.u32 %v2320, 7
    %v2322 = vsub.s32 %v2319, %v2321
    %v2323 = vrot.slane %v2316, %v2322
    %2324 = vrot.lane.b32.xlu0 %v2323, 110
    %v2325 = vpop.permute.xlu0 %2324
    %v2326 = vrot.slane %v2325, 6
    %v2327 = vsel %vm523, %v2326, %v2325
    %v2329 = vmul.f32 %v1830, %v2327
    %2331 = vrot.lane.b32.xlu0 %v2329, 95
    %v2332 = vpop.permute.xlu0 %2331
    %v2333 = vrot.slane %v2332, 2
    %v2334 = vsel %vm515, %v2332, %v2333
    %v2336 = vadd.f32 %v2304, %v2334
    %s2337 = scalar_lea.vmem [#allocation3], 129
    %v2338 = vld [vmem:[%s2337] ss:$8 sm:$0x3]
    %v2340 = vlaneseq
    %v2341 = vshrl.u32 %v2340, 7
    %v2342 = vsub.s32 0, %v2341
    %v2343 = vrot.slane %v2338, %v2342
    %v2344 = vlaneseq
    %v2345 = vshrl.u32 %v2344, 7
    %v2346 = vsub.s32 1, %v2345
    %v2347 = vrot.slane %v2338, %v2346
    %v2348 = vcombine.low %v2343, %v2347
    %v2350 = vunpack.c.l.s4 1983009808
    %v2351 = vunpack.c.0.s8 %v2350
    %v2352 = vlaneseq
    %v2353 = vshrl.u32 %v2352, 7
    %v2354 = vsub.s32 %v2351, %v2353
    %v2355 = vrot.slane %v2348, %v2354
    %2356 = vrot.lane.b32.xlu0 %v2355, 111
    %v2357 = vpop.permute.xlu0 %2356
    %v2358 = vrot.slane %v2357, 6
    %v2359 = vsel %vm489, %v2358, %v2357
    %v2361 = vmul.f32 %v1830, %v2359
    %2363 = vrot.lane.b32.xlu0 %v2361, 94
    %v2364 = vpop.permute.xlu0 %2363
    %v2365 = vrot.slane %v2364, 2
    %v2366 = vsel %vm481, %v2364, %v2365
    %v2368 = vadd.f32 %v2336, %v2366
    %s2369 = scalar_lea.vmem [#allocation3], 130
    %v2370 = vld [vmem:[%s2369] ss:$8 sm:$0x3]
    %v2372 = vlaneseq
    %v2373 = vshrl.u32 %v2372, 7
    %v2374 = vsub.s32 0, %v2373
    %v2375 = vrot.slane %v2370, %v2374
    %v2376 = vlaneseq
    %v2377 = vshrl.u32 %v2376, 7
    %v2378 = vsub.s32 1, %v2377
    %v2379 = vrot.slane %v2370, %v2378
    %v2380 = vcombine.low %v2375, %v2379
    %v2382 = vunpack.c.l.s4 1983009808
    %v2383 = vunpack.c.0.s8 %v2382
    %v2384 = vlaneseq
    %v2385 = vshrl.u32 %v2384, 7
    %v2386 = vsub.s32 %v2383, %v2385
    %v2387 = vrot.slane %v2380, %v2386
    %2388 = vrot.lane.b32.xlu0 %v2387, 112
    %v2389 = vpop.permute.xlu0 %2388
    %v2390 = vrot.slane %v2389, 6
    %v2391 = vsel %vm455, %v2390, %v2389
    %v2393 = vmul.f32 %v1830, %v2391
    %2395 = vrot.lane.b32.xlu0 %v2393, 93
    %v2396 = vpop.permute.xlu0 %2395
    %v2397 = vrot.slane %v2396, 2
    %v2398 = vsel %vm447, %v2396, %v2397
    %v2400 = vadd.f32 %v2368, %v2398
    %s2401 = scalar_lea.vmem [#allocation3], 131
    %v2402 = vld [vmem:[%s2401] ss:$8 sm:$0x3]
    %v2404 = vlaneseq
    %v2405 = vshrl.u32 %v2404, 7
    %v2406 = vsub.s32 0, %v2405
    %v2407 = vrot.slane %v2402, %v2406
    %v2408 = vlaneseq
    %v2409 = vshrl.u32 %v2408, 7
    %v2410 = vsub.s32 1, %v2409
    %v2411 = vrot.slane %v2402, %v2410
    %v2412 = vcombine.low %v2407, %v2411
    %v2414 = vunpack.c.l.s4 1983009808
    %v2415 = vunpack.c.0.s8 %v2414
    %v2416 = vlaneseq
    %v2417 = vshrl.u32 %v2416, 7
    %v2418 = vsub.s32 %v2415, %v2417
    %v2419 = vrot.slane %v2412, %v2418
    %2420 = vrot.lane.b32.xlu0 %v2419, 113
    %v2421 = vpop.permute.xlu0 %2420
    %v2422 = vrot.slane %v2421, 6
    %v2423 = vsel %vm813, %v2422, %v2421
    %v2425 = vmul.f32 %v1830, %v2423
    %2427 = vrot.lane.b32.xlu0 %v2425, 92
    %v2428 = vpop.permute.xlu0 %2427
    %v2429 = vrot.slane %v2428, 2
    %v2430 = vsel %vm821, %v2428, %v2429
    %v2432 = vadd.f32 %v2400, %v2430
    %s2433 = scalar_lea.vmem [#allocation3], 132
    %v2434 = vld [vmem:[%s2433] ss:$8 sm:$0x3]
    %v2436 = vlaneseq
    %v2437 = vshrl.u32 %v2436, 7
    %v2438 = vsub.s32 0, %v2437
    %v2439 = vrot.slane %v2434, %v2438
    %v2440 = vlaneseq
    %v2441 = vshrl.u32 %v2440, 7
    %v2442 = vsub.s32 1, %v2441
    %v2443 = vrot.slane %v2434, %v2442
    %v2444 = vcombine.low %v2439, %v2443
    %v2446 = vunpack.c.l.s4 1983009808
    %v2447 = vunpack.c.0.s8 %v2446
    %v2448 = vlaneseq
    %v2449 = vshrl.u32 %v2448, 7
    %v2450 = vsub.s32 %v2447, %v2449
    %v2451 = vrot.slane %v2444, %v2450
    %2452 = vrot.lane.b32.xlu0 %v2451, 114
    %v2453 = vpop.permute.xlu0 %2452
    %v2454 = vrot.slane %v2453, 6
    %v2455 = vsel %vm847, %v2454, %v2453
    %v2457 = vmul.f32 %v1830, %v2455
    %2459 = vrot.lane.b32.xlu0 %v2457, 91
    %v2460 = vpop.permute.xlu0 %2459
    %v2461 = vrot.slane %v2460, 2
    %v2462 = vsel %vm855, %v2460, %v2461
    %v2464 = vadd.f32 %v2432, %v2462
    %s2465 = scalar_lea.vmem [#allocation3], 133
    %v2466 = vld [vmem:[%s2465] ss:$8 sm:$0x3]
    %v2468 = vlaneseq
    %v2469 = vshrl.u32 %v2468, 7
    %v2470 = vsub.s32 0, %v2469
    %v2471 = vrot.slane %v2466, %v2470
    %v2472 = vlaneseq
    %v2473 = vshrl.u32 %v2472, 7
    %v2474 = vsub.s32 1, %v2473
    %v2475 = vrot.slane %v2466, %v2474
    %v2476 = vcombine.low %v2471, %v2475
    %v2478 = vunpack.c.l.s4 1983009808
    %v2479 = vunpack.c.0.s8 %v2478
    %v2480 = vlaneseq
    %v2481 = vshrl.u32 %v2480, 7
    %v2482 = vsub.s32 %v2479, %v2481
    %v2483 = vrot.slane %v2476, %v2482
    %2484 = vrot.lane.b32.xlu0 %v2483, 115
    %v2485 = vpop.permute.xlu0 %2484
    %v2486 = vrot.slane %v2485, 6
    %v2487 = vsel %vm881, %v2486, %v2485
    %v2489 = vmul.f32 %v1830, %v2487
    %2491 = vrot.lane.b32.xlu0 %v2489, 90
    %v2492 = vpop.permute.xlu0 %2491
    %v2493 = vrot.slane %v2492, 2
    %v2494 = vsel %vm889, %v2492, %v2493
    %v2496 = vadd.f32 %v2464, %v2494
    %v2497 = vld [vmem:[%s192] sm:$0xff]
    %s2498 = scalar_lea.vmem [#allocation3], 134
    %v2499 = vld [vmem:[%s2498] ss:$8 sm:$0x3]
    %v2501 = vlaneseq
    %v2502 = vshrl.u32 %v2501, 7
    %v2503 = vsub.s32 0, %v2502
    %v2504 = vrot.slane %v2499, %v2503
    %v2505 = vlaneseq
    %v2506 = vshrl.u32 %v2505, 7
    %v2507 = vsub.s32 1, %v2506
    %v2508 = vrot.slane %v2499, %v2507
    %v2509 = vcombine.low %v2504, %v2508
    %v2511 = vunpack.c.l.s4 1983009808
    %v2512 = vunpack.c.0.s8 %v2511
    %v2513 = vlaneseq
    %v2514 = vshrl.u32 %v2513, 7
    %v2515 = vsub.s32 %v2512, %v2514
    %v2516 = vrot.slane %v2509, %v2515
    %2517 = vrot.lane.b32.xlu0 %v2516, 125
    %v2518 = vpop.permute.xlu0 %2517
    %v2519 = vrot.slane %v2518, 6
    %v2520 = vsel %vm319, %v2519, %v2518
    %v2522 = vmul.f32 %v2497, %v2520
    %2524 = vrot.lane.b32.xlu0 %v2522, 80
    %v2525 = vpop.permute.xlu0 %2524
    %v2526 = vrot.slane %v2525, 2
    %v2527 = vsel %vm311, %v2525, %v2526
    %v2529 = vadd.f32 %v2496, %v2527
    %s2530 = scalar_lea.vmem [#allocation3], 135
    %v2531 = vld [vmem:[%s2530] ss:$8 sm:$0x3]
    %v2533 = vlaneseq
    %v2534 = vshrl.u32 %v2533, 7
    %v2535 = vsub.s32 0, %v2534
    %v2536 = vrot.slane %v2531, %v2535
    %v2537 = vlaneseq
    %v2538 = vshrl.u32 %v2537, 7
    %v2539 = vsub.s32 1, %v2538
    %v2540 = vrot.slane %v2531, %v2539
    %v2541 = vcombine.low %v2536, %v2540
    %v2543 = vunpack.c.l.s4 1983009808
    %v2544 = vunpack.c.0.s8 %v2543
    %v2545 = vlaneseq
    %v2546 = vshrl.u32 %v2545, 7
    %v2547 = vsub.s32 %v2544, %v2546
    %v2548 = vrot.slane %v2541, %v2547
    %2549 = vrot.lane.b32.xlu0 %v2548, 126
    %v2550 = vpop.permute.xlu0 %2549
    %v2551 = vrot.slane %v2550, 6
    %v2552 = vsel %vm285, %v2551, %v2550
    %v2554 = vmul.f32 %v2497, %v2552
    %2556 = vrot.lane.b32.xlu0 %v2554, 79
    %v2557 = vpop.permute.xlu0 %2556
    %v2558 = vrot.slane %v2557, 2
    %v2559 = vsel %vm277, %v2557, %v2558
    %v2561 = vadd.f32 %v2529, %v2559
    %s2562 = scalar_lea.vmem [#allocation3], 144
    %v2563 = vld [vmem:[%s2562] ss:$8 sm:$0x3]
    %v2565 = vlaneseq
    %v2566 = vshrl.u32 %v2565, 7
    %v2567 = vsub.s32 0, %v2566
    %v2568 = vrot.slane %v2563, %v2567
    %v2569 = vlaneseq
    %v2570 = vshrl.u32 %v2569, 7
    %v2571 = vsub.s32 1, %v2570
    %v2572 = vrot.slane %v2563, %v2571
    %v2573 = vcombine.low %v2568, %v2572
    %v2575 = vunpack.c.l.s4 1983009808
    %v2576 = vunpack.c.0.s8 %v2575
    %v2577 = vlaneseq
    %v2578 = vshrl.u32 %v2577, 7
    %v2579 = vsub.s32 %v2576, %v2578
    %v2580 = vrot.slane %v2573, %v2579
    %2581 = vrot.lane.b32.xlu0 %v2580, 127
    %v2582 = vpop.permute.xlu0 %2581
    %v2583 = vrot.slane %v2582, 6
    %v2584 = vsel %vm251, %v2583, %v2582
    %v2586 = vmul.f32 %v2497, %v2584
    %2588 = vrot.lane.b32.xlu0 %v2586, 78
    %v2589 = vpop.permute.xlu0 %2588
    %v2590 = vrot.slane %v2589, 2
    %v2591 = vsel %vm243, %v2589, %v2590
    %v2593 = vadd.f32 %v2561, %v2591
    %s2594 = scalar_lea.vmem [#allocation3], 145
    %v2595 = vld [vmem:[%s2594] ss:$8 sm:$0x3]
    %v2597 = vlaneseq
    %v2598 = vshrl.u32 %v2597, 7
    %v2599 = vsub.s32 0, %v2598
    %v2600 = vrot.slane %v2595, %v2599
    %v2601 = vlaneseq
    %v2602 = vshrl.u32 %v2601, 7
    %v2603 = vsub.s32 1, %v2602
    %v2604 = vrot.slane %v2595, %v2603
    %v2606 = vrot.slane %v2497, 2
    %v2608 = vcombine.low %v2600, %v2604
    %v2610 = vunpack.c.l.s4 1983009808
    %v2611 = vunpack.c.0.s8 %v2610
    %v2612 = vlaneseq
    %v2613 = vshrl.u32 %v2612, 7
    %v2614 = vsub.s32 %v2611, %v2613
    %v2615 = vrot.slane %v2608, %v2614
    %v2617 = vmul.f32 %v2606, %v2615
    %2619 = vrot.lane.b32.xlu0 %v2617, 77
    %v2620 = vpop.permute.xlu0 %2619
    %v2621 = vrot.slane %v2620, 6
    %v2622 = vsel %vm216, %v2621, %v2620
    %v2624 = vadd.f32 %v2593, %v2622
    %s2625 = scalar_lea.vmem [#allocation3], 146
    %v2626 = vld [vmem:[%s2625] ss:$8 sm:$0x3]
    %v2628 = vlaneseq
    %v2629 = vshrl.u32 %v2628, 7
    %v2630 = vsub.s32 0, %v2629
    %v2631 = vrot.slane %v2626, %v2630
    %v2632 = vlaneseq
    %v2633 = vshrl.u32 %v2632, 7
    %v2634 = vsub.s32 1, %v2633
    %v2635 = vrot.slane %v2626, %v2634
    %2636 = vrot.lane.b32.xlu0 %v2497, 127
    %v2637 = vpop.permute.xlu0 %2636
    %v2638 = vrot.slane %v2637, 2
    %v2639 = vrot.slane %v2637, 4
    %v2640 = vsel %vm251, %v2638, %v2639
    %v2642 = vcombine.low %v2631, %v2635
    %v2644 = vunpack.c.l.s4 1983009808
    %v2645 = vunpack.c.0.s8 %v2644
    %v2646 = vlaneseq
    %v2647 = vshrl.u32 %v2646, 7
    %v2648 = vsub.s32 %v2645, %v2647
    %v2649 = vrot.slane %v2642, %v2648
    %v2651 = vmul.f32 %v2640, %v2649
    %2653 = vrot.lane.b32.xlu0 %v2651, 77
    %v2654 = vpop.permute.xlu0 %2653
    %v2655 = vrot.slane %v2654, 6
    %v2656 = vsel %vm216, %v2655, %v2654
    %v2658 = vadd.f32 %v2624, %v2656
    %s2659 = scalar_lea.vmem [#allocation3], 147
    %v2660 = vld [vmem:[%s2659] ss:$8 sm:$0x3]
    %v2662 = vlaneseq
    %v2663 = vshrl.u32 %v2662, 7
    %v2664 = vsub.s32 0, %v2663
    %v2665 = vrot.slane %v2660, %v2664
    %v2666 = vlaneseq
    %v2667 = vshrl.u32 %v2666, 7
    %v2668 = vsub.s32 1, %v2667
    %v2669 = vrot.slane %v2660, %v2668
    %2670 = vrot.lane.b32.xlu0 %v2497, 126
    %v2671 = vpop.permute.xlu0 %2670
    %v2672 = vrot.slane %v2671, 2
    %v2673 = vrot.slane %v2671, 4
    %v2674 = vsel %vm285, %v2672, %v2673
    %v2676 = vcombine.low %v2665, %v2669
    %v2678 = vunpack.c.l.s4 1983009808
    %v2679 = vunpack.c.0.s8 %v2678
    %v2680 = vlaneseq
    %v2681 = vshrl.u32 %v2680, 7
    %v2682 = vsub.s32 %v2679, %v2681
    %v2683 = vrot.slane %v2676, %v2682
    %v2685 = vmul.f32 %v2674, %v2683
    %2687 = vrot.lane.b32.xlu0 %v2685, 77
    %v2688 = vpop.permute.xlu0 %2687
    %v2689 = vrot.slane %v2688, 6
    %v2690 = vsel %vm216, %v2689, %v2688
    %v2692 = vadd.f32 %v2658, %v2690
    %s2693 = scalar_lea.vmem [#allocation3], 148
    %v2694 = vld [vmem:[%s2693] ss:$8 sm:$0x3]
    %v2696 = vlaneseq
    %v2697 = vshrl.u32 %v2696, 7
    %v2698 = vsub.s32 0, %v2697
    %v2699 = vrot.slane %v2694, %v2698
    %v2700 = vlaneseq
    %v2701 = vshrl.u32 %v2700, 7
    %v2702 = vsub.s32 1, %v2701
    %v2703 = vrot.slane %v2694, %v2702
    %2704 = vrot.lane.b32.xlu0 %v2497, 125
    %v2705 = vpop.permute.xlu0 %2704
    %v2706 = vrot.slane %v2705, 2
    %v2707 = vrot.slane %v2705, 4
    %v2708 = vsel %vm319, %v2706, %v2707
    %v2710 = vcombine.low %v2699, %v2703
    %v2712 = vunpack.c.l.s4 1983009808
    %v2713 = vunpack.c.0.s8 %v2712
    %v2714 = vlaneseq
    %v2715 = vshrl.u32 %v2714, 7
    %v2716 = vsub.s32 %v2713, %v2715
    %v2717 = vrot.slane %v2710, %v2716
    %v2719 = vmul.f32 %v2708, %v2717
    %2721 = vrot.lane.b32.xlu0 %v2719, 77
    %v2722 = vpop.permute.xlu0 %2721
    %v2723 = vrot.slane %v2722, 6
    %v2724 = vsel %vm216, %v2723, %v2722
    %v2726 = vadd.f32 %v2692, %v2724
    %v2727 = vld [vmem:[%s192 + $0x2] sm:$0x3f]
    %s2728 = scalar_lea.vmem [#allocation3], 149
    %v2729 = vld [vmem:[%s2728] ss:$8 sm:$0x3]
    %v2731 = vlaneseq
    %v2732 = vshrl.u32 %v2731, 7
    %v2733 = vsub.s32 0, %v2732
    %v2734 = vrot.slane %v2729, %v2733
    %v2735 = vlaneseq
    %v2736 = vshrl.u32 %v2735, 7
    %v2737 = vsub.s32 1, %v2736
    %v2738 = vrot.slane %v2729, %v2737
    %v2739 = vcombine.low %v2734, %v2738
    %v2741 = vunpack.c.l.s4 1983009808
    %v2742 = vunpack.c.0.s8 %v2741
    %v2743 = vlaneseq
    %v2744 = vshrl.u32 %v2743, 7
    %v2745 = vsub.s32 %v2742, %v2744
    %v2746 = vrot.slane %v2739, %v2745
    %2747 = vrot.lane.b32.xlu0 %v2746, 13
    %v2748 = vpop.permute.xlu0 %2747
    %v2749 = vrot.slane %v2748, 6
    %v2750 = vsel %vm1146, %v2749, %v2748
    %v2752 = vmul.f32 %v2727, %v2750
    %2754 = vrot.lane.b32.xlu0 %v2752, 64
    %v2755 = vpop.permute.xlu0 %2754
    %v2756 = vrot.slane %v2755, 6
    %v2757 = vsel %vm1154, %v2756, %v2755
    %v2759 = vadd.f32 %v2726, %v2757
    %s2760 = scalar_lea.vmem [#allocation3], 150
    %v2761 = vld [vmem:[%s2760] ss:$8 sm:$0x3]
    %v2763 = vlaneseq
    %v2764 = vshrl.u32 %v2763, 7
    %v2765 = vsub.s32 0, %v2764
    %v2766 = vrot.slane %v2761, %v2765
    %v2767 = vlaneseq
    %v2768 = vshrl.u32 %v2767, 7
    %v2769 = vsub.s32 1, %v2768
    %v2770 = vrot.slane %v2761, %v2769
    %v2771 = vcombine.low %v2766, %v2770
    %v2773 = vunpack.c.l.s4 1983009808
    %v2774 = vunpack.c.0.s8 %v2773
    %v2775 = vlaneseq
    %v2776 = vshrl.u32 %v2775, 7
    %v2777 = vsub.s32 %v2774, %v2776
    %v2778 = vrot.slane %v2771, %v2777
    %2779 = vrot.lane.b32.xlu0 %v2778, 14
    %v2780 = vpop.permute.xlu0 %2779
    %v2781 = vrot.slane %v2780, 6
    %v2782 = vsel %vm1180, %v2781, %v2780
    %v2784 = vmul.f32 %v2727, %v2782
    %2786 = vrot.lane.b32.xlu0 %v2784, 63
    %v2787 = vpop.permute.xlu0 %2786
    %v2788 = vrot.slane %v2787, 6
    %v2789 = vsel %vm1188, %v2788, %v2787
    %v2791 = vadd.f32 %v2759, %v2789
    %s2792 = scalar_lea.vmem [#allocation3], 151
    %v2793 = vld [vmem:[%s2792] ss:$8 sm:$0x3]
    %v2795 = vlaneseq
    %v2796 = vshrl.u32 %v2795, 7
    %v2797 = vsub.s32 0, %v2796
    %v2798 = vrot.slane %v2793, %v2797
    %v2799 = vlaneseq
    %v2800 = vshrl.u32 %v2799, 7
    %v2801 = vsub.s32 1, %v2800
    %v2802 = vrot.slane %v2793, %v2801
    %v2803 = vcombine.low %v2798, %v2802
    %v2805 = vunpack.c.l.s4 1983009808
    %v2806 = vunpack.c.0.s8 %v2805
    %v2807 = vlaneseq
    %v2808 = vshrl.u32 %v2807, 7
    %v2809 = vsub.s32 %v2806, %v2808
    %v2810 = vrot.slane %v2803, %v2809
    %2811 = vrot.lane.b32.xlu0 %v2810, 15
    %v2812 = vpop.permute.xlu0 %2811
    %v2813 = vrot.slane %v2812, 6
    %v2814 = vsel %vm1214, %v2813, %v2812
    %v2816 = vmul.f32 %v2727, %v2814
    %2818 = vrot.lane.b32.xlu0 %v2816, 62
    %v2819 = vpop.permute.xlu0 %2818
    %v2820 = vrot.slane %v2819, 6
    %v2821 = vsel %vm1222, %v2820, %v2819
    %v2823 = vadd.f32 %v2791, %v2821
    %s2824 = scalar_lea.vmem [#allocation3], 160
    %v2825 = vld [vmem:[%s2824] ss:$8 sm:$0x3]
    %v2827 = vlaneseq
    %v2828 = vshrl.u32 %v2827, 7
    %v2829 = vsub.s32 0, %v2828
    %v2830 = vrot.slane %v2825, %v2829
    %v2831 = vlaneseq
    %v2832 = vshrl.u32 %v2831, 7
    %v2833 = vsub.s32 1, %v2832
    %v2834 = vrot.slane %v2825, %v2833
    %v2835 = vcombine.low %v2830, %v2834
    %v2837 = vunpack.c.l.s4 1983009808
    %v2838 = vunpack.c.0.s8 %v2837
    %v2839 = vlaneseq
    %v2840 = vshrl.u32 %v2839, 7
    %v2841 = vsub.s32 %v2838, %v2840
    %v2842 = vrot.slane %v2835, %v2841
    %2843 = vrot.lane.b32.xlu0 %v2842, 16
    %v2844 = vpop.permute.xlu0 %2843
    %v2845 = vrot.slane %v2844, 6
    %v2846 = vsel %vm1248, %v2845, %v2844
    %v2848 = vmul.f32 %v2727, %v2846
    %2850 = vrot.lane.b32.xlu0 %v2848, 61
    %v2851 = vpop.permute.xlu0 %2850
    %v2852 = vrot.slane %v2851, 6
    %v2853 = vsel %vm1256, %v2852, %v2851
    %v2855 = vadd.f32 %v2823, %v2853
    %s2856 = scalar_lea.vmem [#allocation3], 161
    %v2857 = vld [vmem:[%s2856] ss:$8 sm:$0x3]
    %v2859 = vlaneseq
    %v2860 = vshrl.u32 %v2859, 7
    %v2861 = vsub.s32 0, %v2860
    %v2862 = vrot.slane %v2857, %v2861
    %v2863 = vlaneseq
    %v2864 = vshrl.u32 %v2863, 7
    %v2865 = vsub.s32 1, %v2864
    %v2866 = vrot.slane %v2857, %v2865
    %v2867 = vcombine.low %v2862, %v2866
    %v2869 = vunpack.c.l.s4 1983009808
    %v2870 = vunpack.c.0.s8 %v2869
    %v2871 = vlaneseq
    %v2872 = vshrl.u32 %v2871, 7
    %v2873 = vsub.s32 %v2870, %v2872
    %v2874 = vrot.slane %v2867, %v2873
    %2875 = vrot.lane.b32.xlu0 %v2874, 17
    %v2876 = vpop.permute.xlu0 %2875
    %v2877 = vrot.slane %v2876, 6
    %v2878 = vsel %vm1282, %v2877, %v2876
    %v2880 = vmul.f32 %v2727, %v2878
    %2882 = vrot.lane.b32.xlu0 %v2880, 60
    %v2883 = vpop.permute.xlu0 %2882
    %v2884 = vrot.slane %v2883, 6
    %v2885 = vsel %vm1290, %v2884, %v2883
    %v2887 = vadd.f32 %v2855, %v2885
    %s2888 = scalar_lea.vmem [#allocation3], 162
    %v2889 = vld [vmem:[%s2888] ss:$8 sm:$0x3]
    %v2891 = vlaneseq
    %v2892 = vshrl.u32 %v2891, 7
    %v2893 = vsub.s32 0, %v2892
    %v2894 = vrot.slane %v2889, %v2893
    %v2895 = vlaneseq
    %v2896 = vshrl.u32 %v2895, 7
    %v2897 = vsub.s32 1, %v2896
    %v2898 = vrot.slane %v2889, %v2897
    %v2899 = vcombine.low %v2894, %v2898
    %v2901 = vunpack.c.l.s4 1983009808
    %v2902 = vunpack.c.0.s8 %v2901
    %v2903 = vlaneseq
    %v2904 = vshrl.u32 %v2903, 7
    %v2905 = vsub.s32 %v2902, %v2904
    %v2906 = vrot.slane %v2899, %v2905
    %2907 = vrot.lane.b32.xlu0 %v2906, 18
    %v2908 = vpop.permute.xlu0 %2907
    %v2909 = vrot.slane %v2908, 6
    %v2910 = vsel %vm1316, %v2909, %v2908
    %v2912 = vmul.f32 %v2727, %v2910
    %2914 = vrot.lane.b32.xlu0 %v2912, 59
    %v2915 = vpop.permute.xlu0 %2914
    %v2916 = vrot.slane %v2915, 6
    %v2917 = vsel %vm1324, %v2916, %v2915
    %v2919 = vadd.f32 %v2887, %v2917
    %s2920 = scalar_lea.vmem [#allocation3], 163
    %v2921 = vld [vmem:[%s2920] ss:$8 sm:$0x3]
    %v2923 = vlaneseq
    %v2924 = vshrl.u32 %v2923, 7
    %v2925 = vsub.s32 0, %v2924
    %v2926 = vrot.slane %v2921, %v2925
    %v2927 = vlaneseq
    %v2928 = vshrl.u32 %v2927, 7
    %v2929 = vsub.s32 1, %v2928
    %v2930 = vrot.slane %v2921, %v2929
    %v2931 = vcombine.low %v2926, %v2930
    %v2933 = vunpack.c.l.s4 1983009808
    %v2934 = vunpack.c.0.s8 %v2933
    %v2935 = vlaneseq
    %v2936 = vshrl.u32 %v2935, 7
    %v2937 = vsub.s32 %v2934, %v2936
    %v2938 = vrot.slane %v2931, %v2937
    %2939 = vrot.lane.b32.xlu0 %v2938, 19
    %v2940 = vpop.permute.xlu0 %2939
    %v2941 = vrot.slane %v2940, 6
    %v2942 = vsel %vm1350, %v2941, %v2940
    %v2944 = vmul.f32 %v2727, %v2942
    %2946 = vrot.lane.b32.xlu0 %v2944, 58
    %v2947 = vpop.permute.xlu0 %2946
    %v2948 = vrot.slane %v2947, 6
    %v2949 = vsel %vm1358, %v2948, %v2947
    %v2951 = vadd.f32 %v2919, %v2949
    %s2952 = scalar_lea.vmem [#allocation3], 164
    %v2953 = vld [vmem:[%s2952] ss:$8 sm:$0x3]
    %v2955 = vlaneseq
    %v2956 = vshrl.u32 %v2955, 7
    %v2957 = vsub.s32 0, %v2956
    %v2958 = vrot.slane %v2953, %v2957
    %v2959 = vlaneseq
    %v2960 = vshrl.u32 %v2959, 7
    %v2961 = vsub.s32 1, %v2960
    %v2962 = vrot.slane %v2953, %v2961
    %v2963 = vcombine.low %v2958, %v2962
    %v2965 = vunpack.c.l.s4 1983009808
    %v2966 = vunpack.c.0.s8 %v2965
    %v2967 = vlaneseq
    %v2968 = vshrl.u32 %v2967, 7
    %v2969 = vsub.s32 %v2966, %v2968
    %v2970 = vrot.slane %v2963, %v2969
    %2971 = vrot.lane.b32.xlu0 %v2970, 29
    %v2972 = vpop.permute.xlu0 %2971
    %v2973 = vrot.slane %v2972, 6
    %v2974 = vsel %vm1384, %v2973, %v2972
    %v2976 = vmul.f32 %v2727, %v2974
    %2978 = vrot.lane.b32.xlu0 %v2976, 48
    %v2979 = vpop.permute.xlu0 %2978
    %v2980 = vrot.slane %v2979, 6
    %v2981 = vsel %vm1392, %v2980, %v2979
    %v2983 = vadd.f32 %v2951, %v2981
    %s2984 = scalar_lea.vmem [#allocation3], 165
    %v2985 = vld [vmem:[%s2984] ss:$8 sm:$0x3]
    %v2987 = vlaneseq
    %v2988 = vshrl.u32 %v2987, 7
    %v2989 = vsub.s32 0, %v2988
    %v2990 = vrot.slane %v2985, %v2989
    %v2991 = vlaneseq
    %v2992 = vshrl.u32 %v2991, 7
    %v2993 = vsub.s32 1, %v2992
    %v2994 = vrot.slane %v2985, %v2993
    %v2995 = vcombine.low %v2990, %v2994
    %v2997 = vunpack.c.l.s4 1983009808
    %v2998 = vunpack.c.0.s8 %v2997
    %v2999 = vlaneseq
    %v3000 = vshrl.u32 %v2999, 7
    %v3001 = vsub.s32 %v2998, %v3000
    %v3002 = vrot.slane %v2995, %v3001
    %3003 = vrot.lane.b32.xlu0 %v3002, 30
    %v3004 = vpop.permute.xlu0 %3003
    %v3005 = vrot.slane %v3004, 6
    %v3006 = vsel %vm1418, %v3005, %v3004
    %v3008 = vmul.f32 %v2727, %v3006
    %3010 = vrot.lane.b32.xlu0 %v3008, 47
    %v3011 = vpop.permute.xlu0 %3010
    %v3012 = vrot.slane %v3011, 6
    %v3013 = vsel %vm1426, %v3012, %v3011
    %v3015 = vadd.f32 %v2983, %v3013
    %s3016 = scalar_lea.vmem [#allocation3], 166
    %v3017 = vld [vmem:[%s3016] ss:$8 sm:$0x3]
    %v3019 = vlaneseq
    %v3020 = vshrl.u32 %v3019, 7
    %v3021 = vsub.s32 0, %v3020
    %v3022 = vrot.slane %v3017, %v3021
    %v3023 = vlaneseq
    %v3024 = vshrl.u32 %v3023, 7
    %v3025 = vsub.s32 1, %v3024
    %v3026 = vrot.slane %v3017, %v3025
    %v3027 = vcombine.low %v3022, %v3026
    %v3029 = vunpack.c.l.s4 1983009808
    %v3030 = vunpack.c.0.s8 %v3029
    %v3031 = vlaneseq
    %v3032 = vshrl.u32 %v3031, 7
    %v3033 = vsub.s32 %v3030, %v3032
    %v3034 = vrot.slane %v3027, %v3033
    %3035 = vrot.lane.b32.xlu0 %v3034, 31
    %v3036 = vpop.permute.xlu0 %3035
    %v3037 = vrot.slane %v3036, 6
    %v3038 = vsel %vm1452, %v3037, %v3036
    %v3040 = vmul.f32 %v2727, %v3038
    %3042 = vrot.lane.b32.xlu0 %v3040, 46
    %v3043 = vpop.permute.xlu0 %3042
    %v3044 = vrot.slane %v3043, 6
    %v3045 = vsel %vm1460, %v3044, %v3043
    %v3047 = vadd.f32 %v3015, %v3045
    %s3048 = scalar_lea.vmem [#allocation3], 167
    %v3049 = vld [vmem:[%s3048] ss:$8 sm:$0x3]
    %v3051 = vlaneseq
    %v3052 = vshrl.u32 %v3051, 7
    %v3053 = vsub.s32 0, %v3052
    %v3054 = vrot.slane %v3049, %v3053
    %v3055 = vlaneseq
    %v3056 = vshrl.u32 %v3055, 7
    %v3057 = vsub.s32 1, %v3056
    %v3058 = vrot.slane %v3049, %v3057
    %v3059 = vcombine.low %v3054, %v3058
    %v3061 = vunpack.c.l.s4 1983009808
    %v3062 = vunpack.c.0.s8 %v3061
    %v3063 = vlaneseq
    %v3064 = vshrl.u32 %v3063, 7
    %v3065 = vsub.s32 %v3062, %v3064
    %v3066 = vrot.slane %v3059, %v3065
    %3067 = vrot.lane.b32.xlu0 %v3066, 32
    %v3068 = vpop.permute.xlu0 %3067
    %v3069 = vrot.slane %v3068, 6
    %v3070 = vsel %vm1486, %v3069, %v3068
    %v3072 = vmul.f32 %v2727, %v3070
    %3074 = vrot.lane.b32.xlu0 %v3072, 45
    %v3075 = vpop.permute.xlu0 %3074
    %v3076 = vrot.slane %v3075, 6
    %v3077 = vsel %vm1494, %v3076, %v3075
    %v3079 = vadd.f32 %v3047, %v3077
    %s3080 = scalar_lea.vmem [#allocation3], 176
    %v3081 = vld [vmem:[%s3080] ss:$8 sm:$0x3]
    %v3083 = vlaneseq
    %v3084 = vshrl.u32 %v3083, 7
    %v3085 = vsub.s32 0, %v3084
    %v3086 = vrot.slane %v3081, %v3085
    %v3087 = vlaneseq
    %v3088 = vshrl.u32 %v3087, 7
    %v3089 = vsub.s32 1, %v3088
    %v3090 = vrot.slane %v3081, %v3089
    %v3091 = vcombine.low %v3086, %v3090
    %v3093 = vunpack.c.l.s4 1983009808
    %v3094 = vunpack.c.0.s8 %v3093
    %v3095 = vlaneseq
    %v3096 = vshrl.u32 %v3095, 7
    %v3097 = vsub.s32 %v3094, %v3096
    %v3098 = vrot.slane %v3091, %v3097
    %3099 = vrot.lane.b32.xlu0 %v3098, 33
    %v3100 = vpop.permute.xlu0 %3099
    %v3101 = vrot.slane %v3100, 6
    %v3102 = vsel %vm1520, %v3101, %v3100
    %v3104 = vmul.f32 %v2727, %v3102
    %3106 = vrot.lane.b32.xlu0 %v3104, 44
    %v3107 = vpop.permute.xlu0 %3106
    %v3108 = vrot.slane %v3107, 6
    %v3109 = vsel %vm1528, %v3108, %v3107
    %v3111 = vadd.f32 %v3079, %v3109
    %s3112 = scalar_lea.vmem [#allocation3], 177
    %v3113 = vld [vmem:[%s3112] ss:$8 sm:$0x3]
    %v3115 = vlaneseq
    %v3116 = vshrl.u32 %v3115, 7
    %v3117 = vsub.s32 0, %v3116
    %v3118 = vrot.slane %v3113, %v3117
    %v3119 = vlaneseq
    %v3120 = vshrl.u32 %v3119, 7
    %v3121 = vsub.s32 1, %v3120
    %v3122 = vrot.slane %v3113, %v3121
    %v3123 = vcombine.low %v3118, %v3122
    %v3125 = vunpack.c.l.s4 1983009808
    %v3126 = vunpack.c.0.s8 %v3125
    %v3127 = vlaneseq
    %v3128 = vshrl.u32 %v3127, 7
    %v3129 = vsub.s32 %v3126, %v3128
    %v3130 = vrot.slane %v3123, %v3129
    %3131 = vrot.lane.b32.xlu0 %v3130, 34
    %v3132 = vpop.permute.xlu0 %3131
    %v3133 = vrot.slane %v3132, 6
    %v3134 = vsel %vm1554, %v3133, %v3132
    %v3136 = vmul.f32 %v2727, %v3134
    %3138 = vrot.lane.b32.xlu0 %v3136, 43
    %v3139 = vpop.permute.xlu0 %3138
    %v3140 = vrot.slane %v3139, 6
    %v3141 = vsel %vm1562, %v3140, %v3139
    %v3143 = vadd.f32 %v3111, %v3141
    %s3144 = scalar_lea.vmem [#allocation3], 178
    %v3145 = vld [vmem:[%s3144] ss:$8 sm:$0x3]
    %v3147 = vlaneseq
    %v3148 = vshrl.u32 %v3147, 7
    %v3149 = vsub.s32 0, %v3148
    %v3150 = vrot.slane %v3145, %v3149
    %v3151 = vlaneseq
    %v3152 = vshrl.u32 %v3151, 7
    %v3153 = vsub.s32 1, %v3152
    %v3154 = vrot.slane %v3145, %v3153
    %v3155 = vcombine.low %v3150, %v3154
    %v3157 = vunpack.c.l.s4 1983009808
    %v3158 = vunpack.c.0.s8 %v3157
    %v3159 = vlaneseq
    %v3160 = vshrl.u32 %v3159, 7
    %v3161 = vsub.s32 %v3158, %v3160
    %v3162 = vrot.slane %v3155, %v3161
    %3163 = vrot.lane.b32.xlu0 %v3162, 35
    %v3164 = vpop.permute.xlu0 %3163
    %v3165 = vrot.slane %v3164, 6
    %v3166 = vsel %vm1588, %v3165, %v3164
    %v3168 = vmul.f32 %v2727, %v3166
    %3170 = vrot.lane.b32.xlu0 %v3168, 42
    %v3171 = vpop.permute.xlu0 %3170
    %v3172 = vrot.slane %v3171, 6
    %v3173 = vsel %vm1596, %v3172, %v3171
    %v3175 = vadd.f32 %v3143, %v3173
    %s3176 = scalar_lea.vmem [#allocation3], 179
    %v3177 = vld [vmem:[%s3176] ss:$8 sm:$0x3]
    %v3179 = vlaneseq
    %v3180 = vshrl.u32 %v3179, 7
    %v3181 = vsub.s32 0, %v3180
    %v3182 = vrot.slane %v3177, %v3181
    %v3183 = vlaneseq
    %v3184 = vshrl.u32 %v3183, 7
    %v3185 = vsub.s32 1, %v3184
    %v3186 = vrot.slane %v3177, %v3185
    %v3187 = vcombine.low %v3182, %v3186
    %v3189 = vunpack.c.l.s4 1983009808
    %v3190 = vunpack.c.0.s8 %v3189
    %v3191 = vlaneseq
    %v3192 = vshrl.u32 %v3191, 7
    %v3193 = vsub.s32 %v3190, %v3192
    %v3194 = vrot.slane %v3187, %v3193
    %3195 = vrot.lane.b32.xlu0 %v3194, 45
    %v3196 = vpop.permute.xlu0 %3195
    %v3197 = vrot.slane %v3196, 6
    %v3198 = vsel %vm1494, %v3197, %v3196
    %v3200 = vmul.f32 %v2727, %v3198
    %3202 = vrot.lane.b32.xlu0 %v3200, 32
    %v3203 = vpop.permute.xlu0 %3202
    %v3204 = vrot.slane %v3203, 6
    %v3205 = vsel %vm1486, %v3204, %v3203
    %v3207 = vadd.f32 %v3175, %v3205
    %s3208 = scalar_lea.vmem [#allocation3], 180
    %v3209 = vld [vmem:[%s3208] ss:$8 sm:$0x3]
    %v3211 = vlaneseq
    %v3212 = vshrl.u32 %v3211, 7
    %v3213 = vsub.s32 0, %v3212
    %v3214 = vrot.slane %v3209, %v3213
    %v3215 = vlaneseq
    %v3216 = vshrl.u32 %v3215, 7
    %v3217 = vsub.s32 1, %v3216
    %v3218 = vrot.slane %v3209, %v3217
    %v3219 = vcombine.low %v3214, %v3218
    %v3221 = vunpack.c.l.s4 1983009808
    %v3222 = vunpack.c.0.s8 %v3221
    %v3223 = vlaneseq
    %v3224 = vshrl.u32 %v3223, 7
    %v3225 = vsub.s32 %v3222, %v3224
    %v3226 = vrot.slane %v3219, %v3225
    %3227 = vrot.lane.b32.xlu0 %v3226, 46
    %v3228 = vpop.permute.xlu0 %3227
    %v3229 = vrot.slane %v3228, 6
    %v3230 = vsel %vm1460, %v3229, %v3228
    %v3232 = vmul.f32 %v2727, %v3230
    %3234 = vrot.lane.b32.xlu0 %v3232, 31
    %v3235 = vpop.permute.xlu0 %3234
    %v3236 = vrot.slane %v3235, 6
    %v3237 = vsel %vm1452, %v3236, %v3235
    %v3239 = vadd.f32 %v3207, %v3237
    %s3240 = scalar_lea.vmem [#allocation3], 181
    %v3241 = vld [vmem:[%s3240] ss:$8 sm:$0x3]
    %v3243 = vlaneseq
    %v3244 = vshrl.u32 %v3243, 7
    %v3245 = vsub.s32 0, %v3244
    %v3246 = vrot.slane %v3241, %v3245
    %v3247 = vlaneseq
    %v3248 = vshrl.u32 %v3247, 7
    %v3249 = vsub.s32 1, %v3248
    %v3250 = vrot.slane %v3241, %v3249
    %v3251 = vcombine.low %v3246, %v3250
    %v3253 = vunpack.c.l.s4 1983009808
    %v3254 = vunpack.c.0.s8 %v3253
    %v3255 = vlaneseq
    %v3256 = vshrl.u32 %v3255, 7
    %v3257 = vsub.s32 %v3254, %v3256
    %v3258 = vrot.slane %v3251, %v3257
    %3259 = vrot.lane.b32.xlu0 %v3258, 47
    %v3260 = vpop.permute.xlu0 %3259
    %v3261 = vrot.slane %v3260, 6
    %v3262 = vsel %vm1426, %v3261, %v3260
    %v3264 = vmul.f32 %v2727, %v3262
    %3266 = vrot.lane.b32.xlu0 %v3264, 30
    %v3267 = vpop.permute.xlu0 %3266
    %v3268 = vrot.slane %v3267, 6
    %v3269 = vsel %vm1418, %v3268, %v3267
    %v3271 = vadd.f32 %v3239, %v3269
    %s3272 = scalar_lea.vmem [#allocation3], 182
    %v3273 = vld [vmem:[%s3272] ss:$8 sm:$0x3]
    %v3275 = vlaneseq
    %v3276 = vshrl.u32 %v3275, 7
    %v3277 = vsub.s32 0, %v3276
    %v3278 = vrot.slane %v3273, %v3277
    %v3279 = vlaneseq
    %v3280 = vshrl.u32 %v3279, 7
    %v3281 = vsub.s32 1, %v3280
    %v3282 = vrot.slane %v3273, %v3281
    %v3283 = vcombine.low %v3278, %v3282
    %v3285 = vunpack.c.l.s4 1983009808
    %v3286 = vunpack.c.0.s8 %v3285
    %v3287 = vlaneseq
    %v3288 = vshrl.u32 %v3287, 7
    %v3289 = vsub.s32 %v3286, %v3288
    %v3290 = vrot.slane %v3283, %v3289
    %3291 = vrot.lane.b32.xlu0 %v3290, 48
    %v3292 = vpop.permute.xlu0 %3291
    %v3293 = vrot.slane %v3292, 6
    %v3294 = vsel %vm1392, %v3293, %v3292
    %v3296 = vmul.f32 %v2727, %v3294
    %3298 = vrot.lane.b32.xlu0 %v3296, 29
    %v3299 = vpop.permute.xlu0 %3298
    %v3300 = vrot.slane %v3299, 6
    %v3301 = vsel %vm1384, %v3300, %v3299
    %v3303 = vadd.f32 %v3271, %v3301
    %s3304 = scalar_lea.vmem [#allocation3], 183
    %v3305 = vld [vmem:[%s3304] ss:$8 sm:$0x3]
    %v3307 = vlaneseq
    %v3308 = vshrl.u32 %v3307, 7
    %v3309 = vsub.s32 0, %v3308
    %v3310 = vrot.slane %v3305, %v3309
    %v3311 = vlaneseq
    %v3312 = vshrl.u32 %v3311, 7
    %v3313 = vsub.s32 1, %v3312
    %v3314 = vrot.slane %v3305, %v3313
    %v3315 = vcombine.low %v3310, %v3314
    %v3317 = vunpack.c.l.s4 1983009808
    %v3318 = vunpack.c.0.s8 %v3317
    %v3319 = vlaneseq
    %v3320 = vshrl.u32 %v3319, 7
    %v3321 = vsub.s32 %v3318, %v3320
    %v3322 = vrot.slane %v3315, %v3321
    %3323 = vrot.lane.b32.xlu0 %v3322, 49
    %v3324 = vpop.permute.xlu0 %3323
    %v3325 = vrot.slane %v3324, 6
    %v3326 = vsel %vm1750, %v3325, %v3324
    %v3328 = vmul.f32 %v2727, %v3326
    %3330 = vrot.lane.b32.xlu0 %v3328, 28
    %v3331 = vpop.permute.xlu0 %3330
    %v3332 = vrot.slane %v3331, 6
    %v3333 = vsel %vm1758, %v3332, %v3331
    %v3335 = vadd.f32 %v3303, %v3333
    %s3336 = scalar_lea.vmem [#allocation3], 192
    %v3337 = vld [vmem:[%s3336] ss:$8 sm:$0x3]
    %v3339 = vlaneseq
    %v3340 = vshrl.u32 %v3339, 7
    %v3341 = vsub.s32 0, %v3340
    %v3342 = vrot.slane %v3337, %v3341
    %v3343 = vlaneseq
    %v3344 = vshrl.u32 %v3343, 7
    %v3345 = vsub.s32 1, %v3344
    %v3346 = vrot.slane %v3337, %v3345
    %v3347 = vcombine.low %v3342, %v3346
    %v3349 = vunpack.c.l.s4 1983009808
    %v3350 = vunpack.c.0.s8 %v3349
    %v3351 = vlaneseq
    %v3352 = vshrl.u32 %v3351, 7
    %v3353 = vsub.s32 %v3350, %v3352
    %v3354 = vrot.slane %v3347, %v3353
    %3355 = vrot.lane.b32.xlu0 %v3354, 50
    %v3356 = vpop.permute.xlu0 %3355
    %v3357 = vrot.slane %v3356, 6
    %v3358 = vsel %vm1784, %v3357, %v3356
    %v3360 = vmul.f32 %v2727, %v3358
    %3362 = vrot.lane.b32.xlu0 %v3360, 27
    %v3363 = vpop.permute.xlu0 %3362
    %v3364 = vrot.slane %v3363, 6
    %v3365 = vsel %vm1792, %v3364, %v3363
    %v3367 = vadd.f32 %v3335, %v3365
    %s3368 = scalar_lea.vmem [#allocation3], 193
    %v3369 = vld [vmem:[%s3368] ss:$8 sm:$0x3]
    %v3371 = vlaneseq
    %v3372 = vshrl.u32 %v3371, 7
    %v3373 = vsub.s32 0, %v3372
    %v3374 = vrot.slane %v3369, %v3373
    %v3375 = vlaneseq
    %v3376 = vshrl.u32 %v3375, 7
    %v3377 = vsub.s32 1, %v3376
    %v3378 = vrot.slane %v3369, %v3377
    %v3379 = vcombine.low %v3374, %v3378
    %v3381 = vunpack.c.l.s4 1983009808
    %v3382 = vunpack.c.0.s8 %v3381
    %v3383 = vlaneseq
    %v3384 = vshrl.u32 %v3383, 7
    %v3385 = vsub.s32 %v3382, %v3384
    %v3386 = vrot.slane %v3379, %v3385
    %3387 = vrot.lane.b32.xlu0 %v3386, 51
    %v3388 = vpop.permute.xlu0 %3387
    %v3389 = vrot.slane %v3388, 6
    %v3390 = vsel %vm1818, %v3389, %v3388
    %v3392 = vmul.f32 %v2727, %v3390
    %3394 = vrot.lane.b32.xlu0 %v3392, 26
    %v3395 = vpop.permute.xlu0 %3394
    %v3396 = vrot.slane %v3395, 6
    %v3397 = vsel %vm1826, %v3396, %v3395
    %v3399 = vadd.f32 %v3367, %v3397
    %s3400 = sld [smem:[#allocation7]]
    %v3401 = vstv %s3400
    %v3402 = vmul.f32 %v3399, %v3401
    %s3403 = sld [smem:[#allocation7 + $0x1]]
    %v3404 = vstv %s3403
    %v3405 = vadd.f32 %v3402, %v3404
    %v3406 = vsub.f32 0.0, %v3405
    %v3407 = vmul.f32 %v3406, 1.442695
    %v3408 = vpow.pop %v3407
    %v3409 = vadd.f32 %v3408, 1.0
    %v3410 = vrcp.pop %v3409
    %v3411 = vld [vmem:[#allocation8] sm:$0xff]
    %v3412 = vld [vmem:[#allocation8 + $0x8] sm:$0xff]
    %v3415 = vunpack.c.l.s4 1966171168
    %v3416 = vunpack.c.0.s8 %v3415
    %v3417 = vlaneseq
    %v3418 = vshrl.u32 %v3417, 7
    %v3419 = vsub.s32 %v3416, %v3418
    %v3420 = vrot.slane %v3410, %v3419
    %v3421 = vcombine.high %v3420, %v3420
    %v3422 = vlaneseq
    %v3423 = vshrl.u32 %v3422, 7
    %v3424 = vsub.s32 0, %v3423
    %v3425 = vrot.slane %v3420, %v3424
    %v3426 = vlaneseq
    %v3427 = vshrl.u32 %v3426, 7
    %v3428 = vsub.s32 1, %v3427
    %v3429 = vrot.slane %v3420, %v3428
    %v3430 = vlaneseq
    %v3431 = vshrl.u32 %v3430, 7
    %v3432 = vsub.s32 2, %v3431
    %v3433 = vrot.slane %v3420, %v3432
    %v3434 = vlaneseq
    %v3435 = vshrl.u32 %v3434, 7
    %v3436 = vsub.s32 0, %v3435
    %v3437 = vrot.slane %v3421, %v3436
    %v3438 = vlaneseq
    %v3439 = vshrl.u32 %v3438, 7
    %v3440 = vsub.s32 1, %v3439
    %v3441 = vrot.slane %v3421, %v3440
    %v3442 = vlaneseq
    %v3443 = vshrl.u32 %v3442, 7
    %v3444 = vsub.s32 2, %v3443
    %v3445 = vrot.slane %v3421, %v3444
    %v3446 = vcombine.low %v3425, %v3429
    %v3447 = vcombine.low %v3437, %v3441
    %3448 = vrot.lane.b32.xlu0 %v3446, 51
    %v3449 = vpop.permute.xlu0 %3448
    %3450 = vrot.lane.b32.xlu0 %v3433, 51
    %v3451 = vpop.permute.xlu0 %3450
    %3452 = vrot.lane.b32.xlu0 %v3447, 51
    %v3453 = vpop.permute.xlu0 %3452
    %3454 = vrot.lane.b32.xlu0 %v3445, 51
    %v3455 = vpop.permute.xlu0 %3454
    %v3456 = vrot.slane %v3449, 4
    %v3457 = vrot.slane %v3451, 4
    %v3458 = vrot.slane %v3453, 4
    %v3459 = vrot.slane %v3455, 4
    %v3460 = vsel %vm68, %v3456, %v3457
    %v3461 = vsel %vm1818, %v3449, %v3460
    %v3462 = vsel %vm68, %v3458, %v3459
    %v3463 = vsel %vm1818, %v3453, %v3462
    %v3466 = vmul.f32 %v3411, %v3461
    %v3467 = vmul.f32 %v3412, %v3463
    %3468 = vst [vmem:[#allocation10] sm:$0xff] %v3466
    %3469 = vst [vmem:[#allocation10 + $0x8] sm:$0xff] %v3467
    // Predicated region
    $region26: #{tpu_custom_call.1} parent=1 // pred_check
      _
    $region27: #{tpu_custom_call.1} parent=1 // pred_check_branch
      %3471 = sbr.rel (0) target = $region29
    $region28: #{tpu_custom_call.1} parent=1 // pred_region
      %s3473 = ssub.s32 256, 256
      %3474 = vsyncadd [#allocation5], %s3473
      %s3475 = sshll.u32 [#allocation10], 4
      %s3476 = int_to_ptr.vmem [resolvable:$true] %s3475
      %3481 = dma.vmem_to_hbm [thread:$0]  %s3476, 256, %s3, [#allocation5], 128, 128, 8
    $region29: #{tpu_custom_call.1} parent=1 // pred_fallthru
      _
    // Predicated region
    $region30: #{tpu_custom_call.1} parent=1 // pred_check
      _
    $region31: #{tpu_custom_call.1} parent=1 // pred_check_branch
      %3483 = sbr.rel (0) target = $region33
    $region32: #{tpu_custom_call.1} parent=1 // pred_region
      %3484 = dma.done [#allocation5], 256
    $region33: #{tpu_custom_call.1} parent=1 // pred_fallthru
      _
    %3485 = vsyncpa [#allocation4], 1
    %3486 = vsyncpa [#allocation9], 1
    %3487 = vsyncpa [#allocation5], 1
    %3488 = vsyncpa [#allocation6], 1

</llo_original>
